<compile_context>
chip_gen: v6e
topology: v6e:2x2x1
jax: 0.10.0
libtpu: 0.0.40
codegen_flags: <defaults>
</compile_context>

<pallas_src>
import functools

import numpy as np
import jax
import jax.numpy as jnp
from jax.experimental import pallas as pl
from jax.experimental.pallas import tpu as pltpu


# ----------------------------------------------------------------------------- helpers
def _ru(x, m):
    return (x + m - 1) // m * m


def _ru_c(c):
    return max(8, _ru(c, 8))          # channel padding (sublane multiples of 8)


def _padded_dims(h, w):
    """Padded spatial grid (+1 halo each side) and its lane-padded flat size."""
    hp, wp = h + 2, w + 2
    return hp, wp, _ru(hp * wp, 128)


# ---------------------------------------------------------- static selection operators
def _pool_matrices(h, w):
    """4 x (Min, Mout) 0/1 matrices: window element k of MaxPool2d(2, stride=2, pad=1)."""
    hp, wp, m_in = _padded_dims(h, w)
    oh, ow = h // 2 + 1, w // 2 + 1
    _, owp, m_out = _padded_dims(oh, ow)
    p = np.zeros((4, m_in, m_out), np.float32)
    for ky in range(2):
        for kx in range(2):
            k = ky * 2 + kx
            for oy in range(oh):
                for ox in range(ow):
                    iy, ix = 2 * oy - 1 + ky, 2 * ox - 1 + kx
                    if 0 <= iy < h and 0 <= ix < w:
                        p[k, (iy + 1) * wp + (ix + 1), (oy + 1) * owp + (ox + 1)] = 1.0
    return jnp.asarray(p, jnp.bfloat16), (oh, ow)


def _upsample_matrix(h, w, scale):
    """(Min, Mout) 0/1 matrix implementing nearest-neighbour Upsample(scale)."""
    hp, wp, m_in = _padded_dims(h, w)
    oh, ow = h * scale, w * scale
    _, owp, m_out = _padded_dims(oh, ow)
    u = np.zeros((m_in, m_out), np.float32)
    for y in range(h):
        for x in range(w):
            for i in range(scale):
                for j in range(scale):
                    u[(y + 1) * wp + (x + 1),
                      (y * scale + i + 1) * owp + (x * scale + j + 1)] = 1.0
    return jnp.asarray(u, jnp.bfloat16), (oh, ow)


def _interior_mask(h, w):
    """(1, Mp) mask of valid (non-halo) pixels on the padded grid."""
    _, wp, mp = _padded_dims(h, w)
    m = np.zeros((1, mp), np.float32)
    for y in range(h):
        for x in range(w):
            m[0, (y + 1) * wp + (x + 1)] = 1.0
    return jnp.asarray(m, jnp.float32)


def _fuse_conv_weights(w, b, cin_p, cout_p):
    """(O, I, 3, 3) torch weights -> (Cout_p, 9*Cin_p) bf16, col = (dy*3+dx)*Cin_p + ci."""
    co, ci = w.shape[0], w.shape[1]
    wt = jnp.transpose(w, (0, 2, 3, 1))                                  # (co, 3, 3, ci)
    wt = jnp.pad(wt, ((0, cout_p - co), (0, 0), (0, 0), (0, cin_p - ci)))
    wf = wt.reshape(cout_p, 9 * cin_p).astype(jnp.bfloat16)
    bf = jnp.pad(b, (0, cout_p - co)).reshape(cout_p, 1).astype(jnp.float32)
    return wf, bf


# ----------------------------------------------------------------------- fused kernel
def _convae_kernel(x_ref,
                   w1, w2, w3, w4, w5, w6,
                   b1, b2, b3, b4, b5, b6,
                   p1, p2, up, msk,
                   o_ref, *, wps):
    """Whole autoencoder forward for one batch element, entirely in VMEM."""

    def conv(x, w_ref, b_ref, wp_img, act):
        # x: (Cin_p, Mp) f32, zero on the halo of the padded spatial grid.
        mp = x.shape[1]
        taps = []
        for dy in range(3):
            for dx in range(3):
                s = (dy - 1) * wp_img + (dx - 1)          # flat source offset of this tap
                taps.append(x if s == 0 else pltpu.roll(x, shift=(-s) % mp, axis=1))
        kmat = jnp.concatenate(taps, axis=0).astype(jnp.bfloat16)        # (9*Cin_p, Mp)
        y = jnp.dot(w_ref[...], kmat, preferred_element_type=jnp.float32)
        y = y + b_ref[...]
        if act == "relu":
            return jnp.maximum(y, 0.0)
        return 1.0 / (1.0 + jnp.exp(-y))                  # sigmoid (EUP exp + divide)

    def pool(x, p_ref):
        xb = x.astype(jnp.bfloat16)
        r = jnp.dot(xb, p_ref[0], preferred_element_type=jnp.float32)
        for k in range(1, 4):
            r = jnp.maximum(r, jnp.dot(xb, p_ref[k], preferred_element_type=jnp.float32))
        return r

    x = x_ref[...]                                        # (Cin_p0, Mp0) f32
    h = conv(x, w1, b1, wps[0], "relu")                   # conv1 + relu
    h = pool(h, p1)                                       # pool1
    h = conv(h, w2, b2, wps[1], "relu")                   # conv2 + relu
    h = pool(h, p2)                                       # pool2
    h = conv(h, w3, b3, wps[2], "relu")                   # conv3 + relu
    h = jnp.dot(h.astype(jnp.bfloat16), up[...],
                preferred_element_type=jnp.float32)       # upsample1 (x2, nearest)
    m = msk[...]                                          # re-zero halo before chained convs
    h = conv(h, w4, b4, wps[3], "relu") * m               # conv4 + relu   (upsample2 = identity)
    h = conv(h, w5, b5, wps[4], "relu") * m               # conv5 + relu
    h = conv(h, w6, b6, wps[5], "sigmoid")                # conv6 + sigmoid
    o_ref[...] = h.astype(o_ref.dtype)


def _full_spec(a):
    nd = a.ndim
    return pl.BlockSpec(a.shape, lambda b, _n=nd: (0,) * _n)   # resident, shared block


# ------------------------------------------------------------------------ factory/API
def make_convae2d(params, c_in, h, w):
    """Precompute layouts once and return a jitted forward(x) using one fused kernel."""
    chans = [c_in, 32, 16, 8, 16, 32, c_in]
    cin_p = [_ru_c(c) for c in chans[:-1]]
    cout_p = [_ru_c(c) for c in chans[1:]]
    fused = [_fuse_conv_weights(wb[0], wb[1], cin_p[l], cout_p[l])
             for l, wb in enumerate(params)]
    ws = [f[0] for f in fused]
    bs = [f[1] for f in fused]

    p1, (h1, w1) = _pool_matrices(h, w)        # 16x16 -> 9x9
    p2, (h2, w2) = _pool_matrices(h1, w1)      # 9x9  -> 5x5
    upm, (h3, w3) = _upsample_matrix(h2, w2, 2)  # 5x5 -> 10x10
    msk = _interior_mask(h3, w3)

    wps = (w + 2, w1 + 2, w2 + 2, w3 + 2, w3 + 2, w3 + 2)   # padded row widths per conv
    _, _, mp0 = _padded_dims(h, w)
    hp3, wp3, mp3 = _padded_dims(h3, w3)
    cin_p0, cout_pl = cin_p[0], cout_p[-1]

    kernel = functools.partial(_convae_kernel, wps=wps)

    def forward(x):
        n = x.shape[0]
        # NCHW -> padded-flat (N, Cin_p, Mp) layout, zeros on the halo/tail (one-time glue).
        hp, wp = h + 2, w + 2
        xp = jnp.pad(x, ((0, 0), (0, cin_p0 - c_in), (1, 1), (1, 1)))
        xf = jnp.pad(xp.reshape(n, cin_p0, hp * wp),
                     ((0, 0), (0, 0), (0, mp0 - hp * wp))).astype(jnp.float32)

        out = pl.pallas_call(
            kernel,
            out_shape=jax.ShapeDtypeStruct((n, cout_pl, mp3), jnp.float32),
            grid=(n,),
            in_specs=[pl.BlockSpec((None, cin_p0, mp0), lambda b: (b, 0, 0))]
                     + [_full_spec(a) for a in (*ws, *bs, p1, p2, upm, msk)],
            out_specs=pl.BlockSpec((None, cout_pl, mp3), lambda b: (b, 0, 0)),
            compiler_params=pltpu.CompilerParams(
                dimension_semantics=("parallel",)),     # batch across TCs on v7x
        )(xf, *ws, *bs, p1, p2, upm, msk)

        # Extract real channels + interior pixels (one-time glue).
        out = out[:, :c_in, : hp3 * wp3].reshape(n, c_in, hp3, wp3)
        return out[:, :, 1:1 + h3, 1:1 + w3]

    return jax.jit(forward)


# ----------------------------------------------------------------------------- params
def init_params(key, c_in):
    dims = [(c_in, 32), (32, 16), (16, 8), (8, 16), (16, 32), (32, c_in)]
    params = []
    for ci, co in dims:
        kw, kb, key = jax.random.split(key, 3)
        scale = 1.0 / jnp.sqrt(9.0 * ci)   # PyTorch-style fan_in scaling, deterministic
        w = jax.random.uniform(kw, (co, ci, 3, 3), jnp.float32, -scale, scale)
        b = jax.random.uniform(kb, (co,), jnp.float32, -scale, scale)
        params.append((w, b))
    return params


# ----------------------------------------------------------------- pure-JAX reference
def _ref_forward(x_nchw, params):
    def conv(x, w, b):
        y = jax.lax.conv_general_dilated(
            x, w, window_strides=(1, 1), padding=((1, 1), (1, 1)),
            dimension_numbers=("NCHW", "OIHW", "NCHW"),
            precision=jax.lax.Precision.HIGHEST,
        )
        return y + b[None, :, None, None]

    def pool(x):
        return jax.lax.reduce_window(
            x, -jnp.inf, jax.lax.max,
            window_dimensions=(1, 1, 2, 2), window_strides=(1, 1, 2, 2),
            padding=((0, 0), (0, 0), (1, 1), (1, 1)),
        )

    def up(x, s):
        return x if s == 1 else jnp.repeat(jnp.repeat(x, s, axis=2), s, axis=3)

    (w1, b1), (w2, b2), (w3, b3), (w4, b4), (w5, b5), (w6, b6) = params
    x = jax.nn.relu(conv(x_nchw, w1, b1))
    x = pool(x)
    x = jax.nn.relu(conv(x, w2, b2))
    x = pool(x)
    x = jax.nn.relu(conv(x, w3, b3))
    x = up(x, 2)
    x = jax.nn.relu(conv(x, w4, b4))
    x = up(x, 1)
    x = jax.nn.relu(conv(x, w5, b5))
    x = jax.nn.sigmoid(conv(x, w6, b6))
    return x


if __name__ == "__main__":
    key = jax.random.PRNGKey(0)
    kx, kp = jax.random.split(key)

    N, C, H, W = 2, 1, 16, 16      # input_shape=(1, 16, 16), batch=2 (NCHW like PyTorch)
    x = jax.random.normal(kx, (N, C, H, W), jnp.float32)
    params = init_params(kp, C)

    forward = make_convae2d(params, C, H, W)
    out = jax.block_until_ready(forward(x))

    # Expected spatial size: 16 -pool-> 9 -pool-> 5 -up2-> 10
    assert out.shape == (N, C, 10, 10), out.shape
    assert bool(jnp.all(jnp.isfinite(out)))

    # Conv / pool / upsample matmuls run on the native bf16 MXU path with f32 accumulation;
    # the reference is strict-f32 HIGHEST, so allow a few bf16-rounding ulps of slack.
    ref = _ref_forward(x, params)
    max_err = float(jnp.max(jnp.abs(out - ref)))
    assert max_err < 2e-2, f"mismatch vs reference: {max_err}"

    print("KERNEL_OK")
</pallas_src>

<mosaic_0001>
module attributes {stable_mosaic.version = 11 : i64} {
  func.func @_convae_kernel(%arg0: i32, %arg1: memref<1x8x384xf32, #tpu.memory_space<vmem>>, %arg2: memref<32x72xbf16, #tpu.memory_space<vmem>>, %arg3: memref<16x288xbf16, #tpu.memory_space<vmem>>, %arg4: memref<8x144xbf16, #tpu.memory_space<vmem>>, %arg5: memref<16x72xbf16, #tpu.memory_space<vmem>>, %arg6: memref<32x144xbf16, #tpu.memory_space<vmem>>, %arg7: memref<8x288xbf16, #tpu.memory_space<vmem>>, %arg8: memref<32x1xf32, #tpu.memory_space<vmem>>, %arg9: memref<16x1xf32, #tpu.memory_space<vmem>>, %arg10: memref<8x1xf32, #tpu.memory_space<vmem>>, %arg11: memref<16x1xf32, #tpu.memory_space<vmem>>, %arg12: memref<32x1xf32, #tpu.memory_space<vmem>>, %arg13: memref<8x1xf32, #tpu.memory_space<vmem>>, %arg14: memref<4x384x128xbf16, #tpu.memory_space<vmem>>, %arg15: memref<4x128x128xbf16, #tpu.memory_space<vmem>>, %arg16: memref<128x256xbf16, #tpu.memory_space<vmem>>, %arg17: memref<1x256xf32, #tpu.memory_space<vmem>>, %arg18: memref<1x8x256xf32, #tpu.memory_space<vmem>>) attributes {dimension_semantics = [#tpu.dimension_semantics<parallel>], iteration_bounds = array<i64: 2>, scalar_prefetch = 0 : i64, scratch_operands = 0 : i64, tpu.core_type = #tpu.core_type<tc>, window_params = [{transform_indices = @transform_0, window_bounds = array<i64: 1, 8, 384>}, {pipeline_mode = #tpu.pipeline_mode<synchronous>, transform_indices = @transform_1, window_bounds = array<i64: 32, 72>}, {pipeline_mode = #tpu.pipeline_mode<synchronous>, transform_indices = @transform_2, window_bounds = array<i64: 16, 288>}, {pipeline_mode = #tpu.pipeline_mode<synchronous>, transform_indices = @transform_3, window_bounds = array<i64: 8, 144>}, {pipeline_mode = #tpu.pipeline_mode<synchronous>, transform_indices = @transform_4, window_bounds = array<i64: 16, 72>}, {pipeline_mode = #tpu.pipeline_mode<synchronous>, transform_indices = @transform_5, window_bounds = array<i64: 32, 144>}, {pipeline_mode = #tpu.pipeline_mode<synchronous>, transform_indices = @transform_6, window_bounds = array<i64: 8, 288>}, {pipeline_mode = #tpu.pipeline_mode<synchronous>, transform_indices = @transform_7, window_bounds = array<i64: 32, 1>}, {pipeline_mode = #tpu.pipeline_mode<synchronous>, transform_indices = @transform_8, window_bounds = array<i64: 16, 1>}, {pipeline_mode = #tpu.pipeline_mode<synchronous>, transform_indices = @transform_9, window_bounds = array<i64: 8, 1>}, {pipeline_mode = #tpu.pipeline_mode<synchronous>, transform_indices = @transform_10, window_bounds = array<i64: 16, 1>}, {pipeline_mode = #tpu.pipeline_mode<synchronous>, transform_indices = @transform_11, window_bounds = array<i64: 32, 1>}, {pipeline_mode = #tpu.pipeline_mode<synchronous>, transform_indices = @transform_12, window_bounds = array<i64: 8, 1>}, {pipeline_mode = #tpu.pipeline_mode<synchronous>, transform_indices = @transform_13, window_bounds = array<i64: 4, 384, 128>}, {pipeline_mode = #tpu.pipeline_mode<synchronous>, transform_indices = @transform_14, window_bounds = array<i64: 4, 128, 128>}, {pipeline_mode = #tpu.pipeline_mode<synchronous>, transform_indices = @transform_15, window_bounds = array<i64: 128, 256>}, {pipeline_mode = #tpu.pipeline_mode<synchronous>, transform_indices = @transform_16, window_bounds = array<i64: 1, 256>}, {transform_indices = @transform_17, window_bounds = array<i64: 1, 8, 256>}]} {
    %c0 = arith.constant 0 : index
    %c0_0 = arith.constant 0 : index
    %c0_1 = arith.constant 0 : index
    %0 = vector.load %arg1[%c0, %c0_0, %c0_1] : memref<1x8x384xf32, #tpu.memory_space<vmem>>, vector<1x8x384xf32>
    %1 = vector.shape_cast %0 : vector<1x8x384xf32> to vector<8x384xf32>
    %c19_i32 = arith.constant 19 : i32
    %2 = tpu.dynamic_rotate %1 by %c19_i32 dim 1 : vector<8x384xf32>, i32 -> vector<8x384xf32>
    %c18_i32 = arith.constant 18 : i32
    %3 = tpu.dynamic_rotate %1 by %c18_i32 dim 1 : vector<8x384xf32>, i32 -> vector<8x384xf32>
    %c17_i32 = arith.constant 17 : i32
    %4 = tpu.dynamic_rotate %1 by %c17_i32 dim 1 : vector<8x384xf32>, i32 -> vector<8x384xf32>
    %c1_i32 = arith.constant 1 : i32
    %5 = tpu.dynamic_rotate %1 by %c1_i32 dim 1 : vector<8x384xf32>, i32 -> vector<8x384xf32>
    %c383_i32 = arith.constant 383 : i32
    %6 = tpu.dynamic_rotate %1 by %c383_i32 dim 1 : vector<8x384xf32>, i32 -> vector<8x384xf32>
    %c367_i32 = arith.constant 367 : i32
    %7 = tpu.dynamic_rotate %1 by %c367_i32 dim 1 : vector<8x384xf32>, i32 -> vector<8x384xf32>
    %c366_i32 = arith.constant 366 : i32
    %8 = tpu.dynamic_rotate %1 by %c366_i32 dim 1 : vector<8x384xf32>, i32 -> vector<8x384xf32>
    %c365_i32 = arith.constant 365 : i32
    %9 = tpu.dynamic_rotate %1 by %c365_i32 dim 1 : vector<8x384xf32>, i32 -> vector<8x384xf32>
    %10 = tpu.concatenate %2, %3, %4, %5, %1, %6, %7, %8, %9 in 0 : vector<8x384xf32>, vector<8x384xf32>, vector<8x384xf32>, vector<8x384xf32>, vector<8x384xf32>, vector<8x384xf32>, vector<8x384xf32>, vector<8x384xf32>, vector<8x384xf32> -> vector<72x384xf32>
    %11 = arith.truncf %10 : vector<72x384xf32> to vector<72x384xbf16>
    %c0_2 = arith.constant 0 : index
    %c0_3 = arith.constant 0 : index
    %12 = vector.load %arg2[%c0_2, %c0_3] : memref<32x72xbf16, #tpu.memory_space<vmem>>, vector<32x72xbf16>
    %cst = arith.constant dense<0.000000e+00> : vector<32x384xf32>
    %13 = tpu.matmul %12, %11, %cst {dimension_numbers = #tpu.dot_dimension_numbers<[1], [0], [0], [1], [0, 0, 1, 1], [], []>} : vector<32x72xbf16>, vector<72x384xbf16>, vector<32x384xf32> -> vector<32x384xf32>
    %c0_4 = arith.constant 0 : index
    %c0_5 = arith.constant 0 : index
    %14 = vector.load %arg8[%c0_4, %c0_5] : memref<32x1xf32, #tpu.memory_space<vmem>>, vector<32x1xf32>
    %15 = vector.broadcast %14 : vector<32x1xf32> to vector<32x384xf32>
    %16 = arith.addf %13, %15 : vector<32x384xf32>
    %cst_6 = arith.constant 0.000000e+00 : f32
    %17 = vector.broadcast %cst_6 : f32 to vector<32x384xf32>
    %18 = arith.maximumf %16, %17 : vector<32x384xf32>
    %19 = arith.truncf %18 : vector<32x384xf32> to vector<32x384xbf16>
    %c0_7 = arith.constant 0 : index
    %c0_8 = arith.constant 0 : index
    %c0_9 = arith.constant 0 : index
    %20 = vector.load %arg14[%c0_7, %c0_8, %c0_9] : memref<4x384x128xbf16, #tpu.memory_space<vmem>>, vector<1x384x128xbf16>
    %21 = vector.shape_cast %20 : vector<1x384x128xbf16> to vector<384x128xbf16>
    %cst_10 = arith.constant dense<0.000000e+00> : vector<32x128xf32>
    %22 = tpu.matmul %19, %21, %cst_10 {dimension_numbers = #tpu.dot_dimension_numbers<[1], [0], [0], [1], [0, 0, 1, 1], [], []>} : vector<32x384xbf16>, vector<384x128xbf16>, vector<32x128xf32> -> vector<32x128xf32>
    %c1 = arith.constant 1 : index
    %c0_11 = arith.constant 0 : index
    %c0_12 = arith.constant 0 : index
    %23 = vector.load %arg14[%c1, %c0_11, %c0_12] : memref<4x384x128xbf16, #tpu.memory_space<vmem>>, vector<1x384x128xbf16>
    %24 = vector.shape_cast %23 : vector<1x384x128xbf16> to vector<384x128xbf16>
    %cst_13 = arith.constant dense<0.000000e+00> : vector<32x128xf32>
    %25 = tpu.matmul %19, %24, %cst_13 {dimension_numbers = #tpu.dot_dimension_numbers<[1], [0], [0], [1], [0, 0, 1, 1], [], []>} : vector<32x384xbf16>, vector<384x128xbf16>, vector<32x128xf32> -> vector<32x128xf32>
    %26 = arith.maximumf %22, %25 : vector<32x128xf32>
    %c2 = arith.constant 2 : index
    %c0_14 = arith.constant 0 : index
    %c0_15 = arith.constant 0 : index
    %27 = vector.load %arg14[%c2, %c0_14, %c0_15] : memref<4x384x128xbf16, #tpu.memory_space<vmem>>, vector<1x384x128xbf16>
    %28 = vector.shape_cast %27 : vector<1x384x128xbf16> to vector<384x128xbf16>
    %cst_16 = arith.constant dense<0.000000e+00> : vector<32x128xf32>
    %29 = tpu.matmul %19, %28, %cst_16 {dimension_numbers = #tpu.dot_dimension_numbers<[1], [0], [0], [1], [0, 0, 1, 1], [], []>} : vector<32x384xbf16>, vector<384x128xbf16>, vector<32x128xf32> -> vector<32x128xf32>
    %30 = arith.maximumf %26, %29 : vector<32x128xf32>
    %c3 = arith.constant 3 : index
    %c0_17 = arith.constant 0 : index
    %c0_18 = arith.constant 0 : index
    %31 = vector.load %arg14[%c3, %c0_17, %c0_18] : memref<4x384x128xbf16, #tpu.memory_space<vmem>>, vector<1x384x128xbf16>
    %32 = vector.shape_cast %31 : vector<1x384x128xbf16> to vector<384x128xbf16>
    %cst_19 = arith.constant dense<0.000000e+00> : vector<32x128xf32>
    %33 = tpu.matmul %19, %32, %cst_19 {dimension_numbers = #tpu.dot_dimension_numbers<[1], [0], [0], [1], [0, 0, 1, 1], [], []>} : vector<32x384xbf16>, vector<384x128xbf16>, vector<32x128xf32> -> vector<32x128xf32>
    %34 = arith.maximumf %30, %33 : vector<32x128xf32>
    %c12_i32 = arith.constant 12 : i32
    %35 = tpu.dynamic_rotate %34 by %c12_i32 dim 1 : vector<32x128xf32>, i32 -> vector<32x128xf32>
    %c11_i32 = arith.constant 11 : i32
    %36 = tpu.dynamic_rotate %34 by %c11_i32 dim 1 : vector<32x128xf32>, i32 -> vector<32x128xf32>
    %c10_i32 = arith.constant 10 : i32
    %37 = tpu.dynamic_rotate %34 by %c10_i32 dim 1 : vector<32x128xf32>, i32 -> vector<32x128xf32>
    %c1_i32_20 = arith.constant 1 : i32
    %38 = tpu.dynamic_rotate %34 by %c1_i32_20 dim 1 : vector<32x128xf32>, i32 -> vector<32x128xf32>
    %c127_i32 = arith.constant 127 : i32
    %39 = tpu.dynamic_rotate %34 by %c127_i32 dim 1 : vector<32x128xf32>, i32 -> vector<32x128xf32>
    %c118_i32 = arith.constant 118 : i32
    %40 = tpu.dynamic_rotate %34 by %c118_i32 dim 1 : vector<32x128xf32>, i32 -> vector<32x128xf32>
    %c117_i32 = arith.constant 117 : i32
    %41 = tpu.dynamic_rotate %34 by %c117_i32 dim 1 : vector<32x128xf32>, i32 -> vector<32x128xf32>
    %c116_i32 = arith.constant 116 : i32
    %42 = tpu.dynamic_rotate %34 by %c116_i32 dim 1 : vector<32x128xf32>, i32 -> vector<32x128xf32>
    %43 = tpu.concatenate %35, %36, %37, %38, %34, %39, %40, %41, %42 in 0 : vector<32x128xf32>, vector<32x128xf32>, vector<32x128xf32>, vector<32x128xf32>, vector<32x128xf32>, vector<32x128xf32>, vector<32x128xf32>, vector<32x128xf32>, vector<32x128xf32> -> vector<288x128xf32>
    %44 = arith.truncf %43 : vector<288x128xf32> to vector<288x128xbf16>
    %c0_21 = arith.constant 0 : index
    %c0_22 = arith.constant 0 : index
    %45 = vector.load %arg3[%c0_21, %c0_22] : memref<16x288xbf16, #tpu.memory_space<vmem>>, vector<16x288xbf16>
    %cst_23 = arith.constant dense<0.000000e+00> : vector<16x128xf32>
    %46 = tpu.matmul %45, %44, %cst_23 {dimension_numbers = #tpu.dot_dimension_numbers<[1], [0], [0], [1], [0, 0, 1, 1], [], []>} : vector<16x288xbf16>, vector<288x128xbf16>, vector<16x128xf32> -> vector<16x128xf32>
    %c0_24 = arith.constant 0 : index
    %c0_25 = arith.constant 0 : index
    %47 = vector.load %arg9[%c0_24, %c0_25] : memref<16x1xf32, #tpu.memory_space<vmem>>, vector<16x1xf32>
    %48 = vector.broadcast %47 : vector<16x1xf32> to vector<16x128xf32>
    %49 = arith.addf %46, %48 : vector<16x128xf32>
    %cst_26 = arith.constant 0.000000e+00 : f32
    %50 = vector.broadcast %cst_26 : f32 to vector<16x128xf32>
    %51 = arith.maximumf %49, %50 : vector<16x128xf32>
    %52 = arith.truncf %51 : vector<16x128xf32> to vector<16x128xbf16>
    %c0_27 = arith.constant 0 : index
    %c0_28 = arith.constant 0 : index
    %c0_29 = arith.constant 0 : index
    %53 = vector.load %arg15[%c0_27, %c0_28, %c0_29] : memref<4x128x128xbf16, #tpu.memory_space<vmem>>, vector<1x128x128xbf16>
    %54 = vector.shape_cast %53 : vector<1x128x128xbf16> to vector<128x128xbf16>
    %cst_30 = arith.constant dense<0.000000e+00> : vector<16x128xf32>
    %55 = tpu.matmul %52, %54, %cst_30 {dimension_numbers = #tpu.dot_dimension_numbers<[1], [0], [0], [1], [0, 0, 1, 1], [], []>} : vector<16x128xbf16>, vector<128x128xbf16>, vector<16x128xf32> -> vector<16x128xf32>
    %c1_31 = arith.constant 1 : index
    %c0_32 = arith.constant 0 : index
    %c0_33 = arith.constant 0 : index
    %56 = vector.load %arg15[%c1_31, %c0_32, %c0_33] : memref<4x128x128xbf16, #tpu.memory_space<vmem>>, vector<1x128x128xbf16>
    %57 = vector.shape_cast %56 : vector<1x128x128xbf16> to vector<128x128xbf16>
    %cst_34 = arith.constant dense<0.000000e+00> : vector<16x128xf32>
    %58 = tpu.matmul %52, %57, %cst_34 {dimension_numbers = #tpu.dot_dimension_numbers<[1], [0], [0], [1], [0, 0, 1, 1], [], []>} : vector<16x128xbf16>, vector<128x128xbf16>, vector<16x128xf32> -> vector<16x128xf32>
    %59 = arith.maximumf %55, %58 : vector<16x128xf32>
    %c2_35 = arith.constant 2 : index
    %c0_36 = arith.constant 0 : index
    %c0_37 = arith.constant 0 : index
    %60 = vector.load %arg15[%c2_35, %c0_36, %c0_37] : memref<4x128x128xbf16, #tpu.memory_space<vmem>>, vector<1x128x128xbf16>
    %61 = vector.shape_cast %60 : vector<1x128x128xbf16> to vector<128x128xbf16>
    %cst_38 = arith.constant dense<0.000000e+00> : vector<16x128xf32>
    %62 = tpu.matmul %52, %61, %cst_38 {dimension_numbers = #tpu.dot_dimension_numbers<[1], [0], [0], [1], [0, 0, 1, 1], [], []>} : vector<16x128xbf16>, vector<128x128xbf16>, vector<16x128xf32> -> vector<16x128xf32>
    %63 = arith.maximumf %59, %62 : vector<16x128xf32>
    %c3_39 = arith.constant 3 : index
    %c0_40 = arith.constant 0 : index
    %c0_41 = arith.constant 0 : index
    %64 = vector.load %arg15[%c3_39, %c0_40, %c0_41] : memref<4x128x128xbf16, #tpu.memory_space<vmem>>, vector<1x128x128xbf16>
    %65 = vector.shape_cast %64 : vector<1x128x128xbf16> to vector<128x128xbf16>
    %cst_42 = arith.constant dense<0.000000e+00> : vector<16x128xf32>
    %66 = tpu.matmul %52, %65, %cst_42 {dimension_numbers = #tpu.dot_dimension_numbers<[1], [0], [0], [1], [0, 0, 1, 1], [], []>} : vector<16x128xbf16>, vector<128x128xbf16>, vector<16x128xf32> -> vector<16x128xf32>
    %67 = arith.maximumf %63, %66 : vector<16x128xf32>
    %c8_i32 = arith.constant 8 : i32
    %68 = tpu.dynamic_rotate %67 by %c8_i32 dim 1 : vector<16x128xf32>, i32 -> vector<16x128xf32>
    %c7_i32 = arith.constant 7 : i32
    %69 = tpu.dynamic_rotate %67 by %c7_i32 dim 1 : vector<16x128xf32>, i32 -> vector<16x128xf32>
    %c6_i32 = arith.constant 6 : i32
    %70 = tpu.dynamic_rotate %67 by %c6_i32 dim 1 : vector<16x128xf32>, i32 -> vector<16x128xf32>
    %c1_i32_43 = arith.constant 1 : i32
    %71 = tpu.dynamic_rotate %67 by %c1_i32_43 dim 1 : vector<16x128xf32>, i32 -> vector<16x128xf32>
    %c127_i32_44 = arith.constant 127 : i32
    %72 = tpu.dynamic_rotate %67 by %c127_i32_44 dim 1 : vector<16x128xf32>, i32 -> vector<16x128xf32>
    %c122_i32 = arith.constant 122 : i32
    %73 = tpu.dynamic_rotate %67 by %c122_i32 dim 1 : vector<16x128xf32>, i32 -> vector<16x128xf32>
    %c121_i32 = arith.constant 121 : i32
    %74 = tpu.dynamic_rotate %67 by %c121_i32 dim 1 : vector<16x128xf32>, i32 -> vector<16x128xf32>
    %c120_i32 = arith.constant 120 : i32
    %75 = tpu.dynamic_rotate %67 by %c120_i32 dim 1 : vector<16x128xf32>, i32 -> vector<16x128xf32>
    %76 = tpu.concatenate %68, %69, %70, %71, %67, %72, %73, %74, %75 in 0 : vector<16x128xf32>, vector<16x128xf32>, vector<16x128xf32>, vector<16x128xf32>, vector<16x128xf32>, vector<16x128xf32>, vector<16x128xf32>, vector<16x128xf32>, vector<16x128xf32> -> vector<144x128xf32>
    %77 = arith.truncf %76 : vector<144x128xf32> to vector<144x128xbf16>
    %c0_45 = arith.constant 0 : index
    %c0_46 = arith.constant 0 : index
    %78 = vector.load %arg4[%c0_45, %c0_46] : memref<8x144xbf16, #tpu.memory_space<vmem>>, vector<8x144xbf16>
    %cst_47 = arith.constant dense<0.000000e+00> : vector<8x128xf32>
    %79 = tpu.matmul %78, %77, %cst_47 {dimension_numbers = #tpu.dot_dimension_numbers<[1], [0], [0], [1], [0, 0, 1, 1], [], []>} : vector<8x144xbf16>, vector<144x128xbf16>, vector<8x128xf32> -> vector<8x128xf32>
    %c0_48 = arith.constant 0 : index
    %c0_49 = arith.constant 0 : index
    %80 = vector.load %arg10[%c0_48, %c0_49] : memref<8x1xf32, #tpu.memory_space<vmem>>, vector<8x1xf32>
    %81 = vector.broadcast %80 : vector<8x1xf32> to vector<8x128xf32>
    %82 = arith.addf %79, %81 : vector<8x128xf32>
    %cst_50 = arith.constant 0.000000e+00 : f32
    %83 = vector.broadcast %cst_50 : f32 to vector<8x128xf32>
    %84 = arith.maximumf %82, %83 : vector<8x128xf32>
    %85 = arith.truncf %84 : vector<8x128xf32> to vector<8x128xbf16>
    %c0_51 = arith.constant 0 : index
    %c0_52 = arith.constant 0 : index
    %86 = vector.load %arg16[%c0_51, %c0_52] : memref<128x256xbf16, #tpu.memory_space<vmem>>, vector<128x256xbf16>
    %cst_53 = arith.constant dense<0.000000e+00> : vector<8x256xf32>
    %87 = tpu.matmul %85, %86, %cst_53 {dimension_numbers = #tpu.dot_dimension_numbers<[1], [0], [0], [1], [0, 0, 1, 1], [], []>} : vector<8x128xbf16>, vector<128x256xbf16>, vector<8x256xf32> -> vector<8x256xf32>
    %c0_54 = arith.constant 0 : index
    %c0_55 = arith.constant 0 : index
    %88 = vector.load %arg17[%c0_54, %c0_55] : memref<1x256xf32, #tpu.memory_space<vmem>>, vector<1x256xf32>
    %c13_i32 = arith.constant 13 : i32
    %89 = tpu.dynamic_rotate %87 by %c13_i32 dim 1 : vector<8x256xf32>, i32 -> vector<8x256xf32>
    %c12_i32_56 = arith.constant 12 : i32
    %90 = tpu.dynamic_rotate %87 by %c12_i32_56 dim 1 : vector<8x256xf32>, i32 -> vector<8x256xf32>
    %c11_i32_57 = arith.constant 11 : i32
    %91 = tpu.dynamic_rotate %87 by %c11_i32_57 dim 1 : vector<8x256xf32>, i32 -> vector<8x256xf32>
    %c1_i32_58 = arith.constant 1 : i32
    %92 = tpu.dynamic_rotate %87 by %c1_i32_58 dim 1 : vector<8x256xf32>, i32 -> vector<8x256xf32>
    %c255_i32 = arith.constant 255 : i32
    %93 = tpu.dynamic_rotate %87 by %c255_i32 dim 1 : vector<8x256xf32>, i32 -> vector<8x256xf32>
    %c245_i32 = arith.constant 245 : i32
    %94 = tpu.dynamic_rotate %87 by %c245_i32 dim 1 : vector<8x256xf32>, i32 -> vector<8x256xf32>
    %c244_i32 = arith.constant 244 : i32
    %95 = tpu.dynamic_rotate %87 by %c244_i32 dim 1 : vector<8x256xf32>, i32 -> vector<8x256xf32>
    %c243_i32 = arith.constant 243 : i32
    %96 = tpu.dynamic_rotate %87 by %c243_i32 dim 1 : vector<8x256xf32>, i32 -> vector<8x256xf32>
    %97 = tpu.concatenate %89, %90, %91, %92, %87, %93, %94, %95, %96 in 0 : vector<8x256xf32>, vector<8x256xf32>, vector<8x256xf32>, vector<8x256xf32>, vector<8x256xf32>, vector<8x256xf32>, vector<8x256xf32>, vector<8x256xf32>, vector<8x256xf32> -> vector<72x256xf32>
    %98 = arith.truncf %97 : vector<72x256xf32> to vector<72x256xbf16>
    %c0_59 = arith.constant 0 : index
    %c0_60 = arith.constant 0 : index
    %99 = vector.load %arg5[%c0_59, %c0_60] : memref<16x72xbf16, #tpu.memory_space<vmem>>, vector<16x72xbf16>
    %cst_61 = arith.constant dense<0.000000e+00> : vector<16x256xf32>
    %100 = tpu.matmul %99, %98, %cst_61 {dimension_numbers = #tpu.dot_dimension_numbers<[1], [0], [0], [1], [0, 0, 1, 1], [], []>} : vector<16x72xbf16>, vector<72x256xbf16>, vector<16x256xf32> -> vector<16x256xf32>
    %c0_62 = arith.constant 0 : index
    %c0_63 = arith.constant 0 : index
    %101 = vector.load %arg11[%c0_62, %c0_63] : memref<16x1xf32, #tpu.memory_space<vmem>>, vector<16x1xf32>
    %102 = vector.broadcast %101 : vector<16x1xf32> to vector<16x256xf32>
    %103 = arith.addf %100, %102 : vector<16x256xf32>
    %cst_64 = arith.constant 0.000000e+00 : f32
    %104 = vector.broadcast %cst_64 : f32 to vector<16x256xf32>
    %105 = arith.maximumf %103, %104 : vector<16x256xf32>
    %106 = vector.broadcast %88 : vector<1x256xf32> to vector<16x256xf32>
    %107 = arith.mulf %105, %106 : vector<16x256xf32>
    %c13_i32_65 = arith.constant 13 : i32
    %108 = tpu.dynamic_rotate %107 by %c13_i32_65 dim 1 : vector<16x256xf32>, i32 -> vector<16x256xf32>
    %c12_i32_66 = arith.constant 12 : i32
    %109 = tpu.dynamic_rotate %107 by %c12_i32_66 dim 1 : vector<16x256xf32>, i32 -> vector<16x256xf32>
    %c11_i32_67 = arith.constant 11 : i32
    %110 = tpu.dynamic_rotate %107 by %c11_i32_67 dim 1 : vector<16x256xf32>, i32 -> vector<16x256xf32>
    %c1_i32_68 = arith.constant 1 : i32
    %111 = tpu.dynamic_rotate %107 by %c1_i32_68 dim 1 : vector<16x256xf32>, i32 -> vector<16x256xf32>
    %c255_i32_69 = arith.constant 255 : i32
    %112 = tpu.dynamic_rotate %107 by %c255_i32_69 dim 1 : vector<16x256xf32>, i32 -> vector<16x256xf32>
    %c245_i32_70 = arith.constant 245 : i32
    %113 = tpu.dynamic_rotate %107 by %c245_i32_70 dim 1 : vector<16x256xf32>, i32 -> vector<16x256xf32>
    %c244_i32_71 = arith.constant 244 : i32
    %114 = tpu.dynamic_rotate %107 by %c244_i32_71 dim 1 : vector<16x256xf32>, i32 -> vector<16x256xf32>
    %c243_i32_72 = arith.constant 243 : i32
    %115 = tpu.dynamic_rotate %107 by %c243_i32_72 dim 1 : vector<16x256xf32>, i32 -> vector<16x256xf32>
    %116 = tpu.concatenate %108, %109, %110, %111, %107, %112, %113, %114, %115 in 0 : vector<16x256xf32>, vector<16x256xf32>, vector<16x256xf32>, vector<16x256xf32>, vector<16x256xf32>, vector<16x256xf32>, vector<16x256xf32>, vector<16x256xf32>, vector<16x256xf32> -> vector<144x256xf32>
    %117 = arith.truncf %116 : vector<144x256xf32> to vector<144x256xbf16>
    %c0_73 = arith.constant 0 : index
    %c0_74 = arith.constant 0 : index
    %118 = vector.load %arg6[%c0_73, %c0_74] : memref<32x144xbf16, #tpu.memory_space<vmem>>, vector<32x144xbf16>
    %cst_75 = arith.constant dense<0.000000e+00> : vector<32x256xf32>
    %119 = tpu.matmul %118, %117, %cst_75 {dimension_numbers = #tpu.dot_dimension_numbers<[1], [0], [0], [1], [0, 0, 1, 1], [], []>} : vector<32x144xbf16>, vector<144x256xbf16>, vector<32x256xf32> -> vector<32x256xf32>
    %c0_76 = arith.constant 0 : index
    %c0_77 = arith.constant 0 : index
    %120 = vector.load %arg12[%c0_76, %c0_77] : memref<32x1xf32, #tpu.memory_space<vmem>>, vector<32x1xf32>
    %121 = vector.broadcast %120 : vector<32x1xf32> to vector<32x256xf32>
    %122 = arith.addf %119, %121 : vector<32x256xf32>
    %cst_78 = arith.constant 0.000000e+00 : f32
    %123 = vector.broadcast %cst_78 : f32 to vector<32x256xf32>
    %124 = arith.maximumf %122, %123 : vector<32x256xf32>
    %125 = vector.broadcast %88 : vector<1x256xf32> to vector<32x256xf32>
    %126 = arith.mulf %124, %125 : vector<32x256xf32>
    %c13_i32_79 = arith.constant 13 : i32
    %127 = tpu.dynamic_rotate %126 by %c13_i32_79 dim 1 : vector<32x256xf32>, i32 -> vector<32x256xf32>
    %c12_i32_80 = arith.constant 12 : i32
    %128 = tpu.dynamic_rotate %126 by %c12_i32_80 dim 1 : vector<32x256xf32>, i32 -> vector<32x256xf32>
    %c11_i32_81 = arith.constant 11 : i32
    %129 = tpu.dynamic_rotate %126 by %c11_i32_81 dim 1 : vector<32x256xf32>, i32 -> vector<32x256xf32>
    %c1_i32_82 = arith.constant 1 : i32
    %130 = tpu.dynamic_rotate %126 by %c1_i32_82 dim 1 : vector<32x256xf32>, i32 -> vector<32x256xf32>
    %c255_i32_83 = arith.constant 255 : i32
    %131 = tpu.dynamic_rotate %126 by %c255_i32_83 dim 1 : vector<32x256xf32>, i32 -> vector<32x256xf32>
    %c245_i32_84 = arith.constant 245 : i32
    %132 = tpu.dynamic_rotate %126 by %c245_i32_84 dim 1 : vector<32x256xf32>, i32 -> vector<32x256xf32>
    %c244_i32_85 = arith.constant 244 : i32
    %133 = tpu.dynamic_rotate %126 by %c244_i32_85 dim 1 : vector<32x256xf32>, i32 -> vector<32x256xf32>
    %c243_i32_86 = arith.constant 243 : i32
    %134 = tpu.dynamic_rotate %126 by %c243_i32_86 dim 1 : vector<32x256xf32>, i32 -> vector<32x256xf32>
    %135 = tpu.concatenate %127, %128, %129, %130, %126, %131, %132, %133, %134 in 0 : vector<32x256xf32>, vector<32x256xf32>, vector<32x256xf32>, vector<32x256xf32>, vector<32x256xf32>, vector<32x256xf32>, vector<32x256xf32>, vector<32x256xf32>, vector<32x256xf32> -> vector<288x256xf32>
    %136 = arith.truncf %135 : vector<288x256xf32> to vector<288x256xbf16>
    %c0_87 = arith.constant 0 : index
    %c0_88 = arith.constant 0 : index
    %137 = vector.load %arg7[%c0_87, %c0_88] : memref<8x288xbf16, #tpu.memory_space<vmem>>, vector<8x288xbf16>
    %cst_89 = arith.constant dense<0.000000e+00> : vector<8x256xf32>
    %138 = tpu.matmul %137, %136, %cst_89 {dimension_numbers = #tpu.dot_dimension_numbers<[1], [0], [0], [1], [0, 0, 1, 1], [], []>} : vector<8x288xbf16>, vector<288x256xbf16>, vector<8x256xf32> -> vector<8x256xf32>
    %c0_90 = arith.constant 0 : index
    %c0_91 = arith.constant 0 : index
    %139 = vector.load %arg13[%c0_90, %c0_91] : memref<8x1xf32, #tpu.memory_space<vmem>>, vector<8x1xf32>
    %140 = vector.broadcast %139 : vector<8x1xf32> to vector<8x256xf32>
    %141 = arith.addf %138, %140 : vector<8x256xf32>
    %cst_92 = arith.constant 0.000000e+00 : f32
    %142 = vector.broadcast %cst_92 : f32 to vector<8x256xf32>
    %143 = arith.subf %142, %141 : vector<8x256xf32>
    %144 = math.exp %143 : vector<8x256xf32>
    %cst_93 = arith.constant 1.000000e+00 : f32
    %145 = vector.broadcast %cst_93 : f32 to vector<8x256xf32>
    %146 = arith.addf %145, %144 : vector<8x256xf32>
    %cst_94 = arith.constant 1.000000e+00 : f32
    %147 = vector.broadcast %cst_94 : f32 to vector<8x256xf32>
    %148 = arith.divf %147, %146 : vector<8x256xf32>
    %c0_95 = arith.constant 0 : index
    %c0_96 = arith.constant 0 : index
    %c0_97 = arith.constant 0 : index
    %149 = vector.load %arg18[%c0_95, %c0_96, %c0_97] : memref<1x8x256xf32, #tpu.memory_space<vmem>>, vector<1x8x256xf32>
    %150 = vector.shape_cast %149 : vector<1x8x256xf32> to vector<8x256xf32>
    %151 = vector.shape_cast %148 : vector<8x256xf32> to vector<1x8x256xf32>
    tpu.vector_store %arg18[%c0_95, %c0_96, %c0_97], %151 {strides = array<i32>} : memref<1x8x256xf32, #tpu.memory_space<vmem>>, vector<1x8x256xf32>,
    return
  }
  func.func @transform_0(%arg0: i32) -> (i32, i32, i32) {
    %c0_i32 = arith.constant 0 : i32
    %c0_i32_0 = arith.constant 0 : i32
    %c0_i32_1 = arith.constant 0 : i32
    return %arg0, %c0_i32, %c0_i32_0 : i32, i32, i32
  }
  func.func @transform_1(%arg0: i32) -> (i32, i32) {
    %c0_i32 = arith.constant 0 : i32
    %c0_i32_0 = arith.constant 0 : i32
    %c0_i32_1 = arith.constant 0 : i32
    return %c0_i32, %c0_i32_0 : i32, i32
  }
  func.func @transform_2(%arg0: i32) -> (i32, i32) {
    %c0_i32 = arith.constant 0 : i32
    %c0_i32_0 = arith.constant 0 : i32
    %c0_i32_1 = arith.constant 0 : i32
    return %c0_i32, %c0_i32_0 : i32, i32
  }
  func.func @transform_3(%arg0: i32) -> (i32, i32) {
    %c0_i32 = arith.constant 0 : i32
    %c0_i32_0 = arith.constant 0 : i32
    %c0_i32_1 = arith.constant 0 : i32
    return %c0_i32, %c0_i32_0 : i32, i32
  }
  func.func @transform_4(%arg0: i32) -> (i32, i32) {
    %c0_i32 = arith.constant 0 : i32
    %c0_i32_0 = arith.constant 0 : i32
    %c0_i32_1 = arith.constant 0 : i32
    return %c0_i32, %c0_i32_0 : i32, i32
  }
  func.func @transform_5(%arg0: i32) -> (i32, i32) {
    %c0_i32 = arith.constant 0 : i32
    %c0_i32_0 = arith.constant 0 : i32
    %c0_i32_1 = arith.constant 0 : i32
    return %c0_i32, %c0_i32_0 : i32, i32
  }
  func.func @transform_6(%arg0: i32) -> (i32, i32) {
    %c0_i32 = arith.constant 0 : i32
    %c0_i32_0 = arith.constant 0 : i32
    %c0_i32_1 = arith.constant 0 : i32
    return %c0_i32, %c0_i32_0 : i32, i32
  }
  func.func @transform_7(%arg0: i32) -> (i32, i32) {
    %c0_i32 = arith.constant 0 : i32
    %c0_i32_0 = arith.constant 0 : i32
    %c0_i32_1 = arith.constant 0 : i32
    return %c0_i32, %c0_i32_0 : i32, i32
  }
  func.func @transform_8(%arg0: i32) -> (i32, i32) {
    %c0_i32 = arith.constant 0 : i32
    %c0_i32_0 = arith.constant 0 : i32
    %c0_i32_1 = arith.constant 0 : i32
    return %c0_i32, %c0_i32_0 : i32, i32
  }
  func.func @transform_9(%arg0: i32) -> (i32, i32) {
    %c0_i32 = arith.constant 0 : i32
    %c0_i32_0 = arith.constant 0 : i32
    %c0_i32_1 = arith.constant 0 : i32
    return %c0_i32, %c0_i32_0 : i32, i32
  }
  func.func @transform_10(%arg0: i32) -> (i32, i32) {
    %c0_i32 = arith.constant 0 : i32
    %c0_i32_0 = arith.constant 0 : i32
    %c0_i32_1 = arith.constant 0 : i32
    return %c0_i32, %c0_i32_0 : i32, i32
  }
  func.func @transform_11(%arg0: i32) -> (i32, i32) {
    %c0_i32 = arith.constant 0 : i32
    %c0_i32_0 = arith.constant 0 : i32
    %c0_i32_1 = arith.constant 0 : i32
    return %c0_i32, %c0_i32_0 : i32, i32
  }
  func.func @transform_12(%arg0: i32) -> (i32, i32) {
    %c0_i32 = arith.constant 0 : i32
    %c0_i32_0 = arith.constant 0 : i32
    %c0_i32_1 = arith.constant 0 : i32
    return %c0_i32, %c0_i32_0 : i32, i32
  }
  func.func @transform_13(%arg0: i32) -> (i32, i32, i32) {
    %c0_i32 = arith.constant 0 : i32
    %c0_i32_0 = arith.constant 0 : i32
    %c0_i32_1 = arith.constant 0 : i32
    %c0_i32_2 = arith.constant 0 : i32
    return %c0_i32, %c0_i32_0, %c0_i32_1 : i32, i32, i32
  }
  func.func @transform_14(%arg0: i32) -> (i32, i32, i32) {
    %c0_i32 = arith.constant 0 : i32
    %c0_i32_0 = arith.constant 0 : i32
    %c0_i32_1 = arith.constant 0 : i32
    %c0_i32_2 = arith.constant 0 : i32
    return %c0_i32, %c0_i32_0, %c0_i32_1 : i32, i32, i32
  }
  func.func @transform_15(%arg0: i32) -> (i32, i32) {
    %c0_i32 = arith.constant 0 : i32
    %c0_i32_0 = arith.constant 0 : i32
    %c0_i32_1 = arith.constant 0 : i32
    return %c0_i32, %c0_i32_0 : i32, i32
  }
  func.func @transform_16(%arg0: i32) -> (i32, i32) {
    %c0_i32 = arith.constant 0 : i32
    %c0_i32_0 = arith.constant 0 : i32
    %c0_i32_1 = arith.constant 0 : i32
    return %c0_i32, %c0_i32_0 : i32, i32
  }
  func.func @transform_17(%arg0: i32) -> (i32, i32, i32) {
    %c0_i32 = arith.constant 0 : i32
    %c0_i32_0 = arith.constant 0 : i32
    %c0_i32_1 = arith.constant 0 : i32
    return %arg0, %c0_i32, %c0_i32_0 : i32, i32, i32
  }
}

</mosaic_0001>

<llo_original>
// kernel: forward.1
$region0: #{forward.1}
  #allocation0 [shape = 'u32[]', space=smem, size = 0x4, offset = 0x4, fixed_abs, tag = 'smem constant byte address 0x4 - core index']
  #allocation1 [shape = 'u32[144,128]{1,0:T(1,128)}', space=vmem, size = 0x12000, scoped, tag = 'internal scratch']
  %s0 = inlined_call_operand.vmem [shape: f32[2,8,384], index: 0, kind: input, shape index: {}]
  %s1 = inlined_call_operand.hbm [shape: bf16[32,72], index: 1, kind: input, shape index: {}]
  %s2 = inlined_call_operand.hbm [shape: bf16[16,288], index: 2, kind: input, shape index: {}]
  %s3 = inlined_call_operand.hbm [shape: bf16[8,144], index: 3, kind: input, shape index: {}]
  %s4 = inlined_call_operand.hbm [shape: bf16[16,72], index: 4, kind: input, shape index: {}]
  %s5 = inlined_call_operand.hbm [shape: bf16[32,144], index: 5, kind: input, shape index: {}]
  %s6 = inlined_call_operand.hbm [shape: bf16[8,288], index: 6, kind: input, shape index: {}]
  %s7 = inlined_call_operand.vmem [shape: f32[32,1], index: 7, kind: input, shape index: {}]
  %s8 = inlined_call_operand.hbm [shape: f32[16,1], index: 8, kind: input, shape index: {}]
  %s9 = inlined_call_operand.hbm [shape: f32[8,1], index: 9, kind: input, shape index: {}]
  %s10 = inlined_call_operand.hbm [shape: f32[16,1], index: 10, kind: input, shape index: {}]
  %s11 = inlined_call_operand.vmem [shape: f32[32,1], index: 11, kind: input, shape index: {}]
  %s12 = inlined_call_operand.vmem [shape: f32[8,1], index: 12, kind: input, shape index: {}]
  %s13 = inlined_call_operand.vmem [shape: bf16[4,384,128], index: 13, kind: input, shape index: {}]
  %s14 = inlined_call_operand.hbm [shape: bf16[4,128,128], index: 14, kind: input, shape index: {}]
  %s15 = inlined_call_operand.vmem [shape: bf16[128,256], index: 15, kind: input, shape index: {}]
  %s16 = inlined_call_operand.hbm [shape: f32[1,256], index: 16, kind: input, shape index: {}]
  %s17 = inlined_call_operand.vmem [shape: f32[2,8,256], index: 17, kind: output, shape index: {}]
  %s18 = sld [smem:[#allocation0]]
  $region145: #{forward.1} parent=0
    _
  %s20 = ssub.s32 1, %s18
  %s21 = scalar_select 0, %s20, %s18
  $region1: #{forward.1} parent=0
    #allocation2 [shape = 'u8[8192]{0}', space=vmem, size = 0x2000, scoped, tag = 'input window, operand 1, single buffered']
    #allocation3 [shape = 's32[2]{0}', space=sflag, size = 0x8, scoped, tag = 'scoped memory for forward.1']
    #allocation4 [shape = 'u8[12288]{0}', space=vmem, size = 0x3000, scoped, tag = 'input window, operand 2, single buffered']
    #allocation5 [shape = 's32[1]{0}', space=sflag, size = 0x4, scoped, tag = 'scoped memory for forward.1']
    #allocation6 [shape = 'u8[4096]{0}', space=vmem, size = 0x1000, scoped, tag = 'input window, operand 3, single buffered']
    #allocation7 [shape = 'u8[4096]{0}', space=vmem, size = 0x1000, scoped, tag = 'input window, operand 4, single buffered']
    #allocation8 [shape = 's32[1]{0}', space=sflag, size = 0x4, scoped, tag = 'scoped memory for forward.1']
    #allocation9 [shape = 'u8[16384]{0}', space=vmem, size = 0x4000, scoped, tag = 'input window, operand 5, single buffered']
    #allocation10 [shape = 'u8[6144]{0}', space=vmem, size = 0x1800, scoped, tag = 'input window, operand 6, single buffered']
    #allocation11 [shape = 's32[1]{0}', space=sflag, size = 0x4, scoped, tag = 'scoped memory for forward.1']
    #allocation12 [shape = 'u8[8192]{0}', space=vmem, size = 0x2000, scoped, tag = 'input window, operand 8, single buffered']
    #allocation13 [shape = 'u8[4096]{0}', space=vmem, size = 0x1000, scoped, tag = 'input window, operand 9, single buffered']
    #allocation14 [shape = 's32[1]{0}', space=sflag, size = 0x4, scoped, tag = 'scoped memory for forward.1']
    #allocation15 [shape = 'u8[8192]{0}', space=vmem, size = 0x2000, scoped, tag = 'input window, operand 10, single buffered']
    #allocation16 [shape = 'u8[131072]{0}', space=vmem, size = 0x20000, scoped, tag = 'input window, operand 14, single buffered']
    #allocation17 [shape = 's32[1]{0}', space=sflag, size = 0x4, scoped, tag = 'scoped memory for forward.1']
    #allocation18 [shape = 'u8[1024]{0}', space=vmem, size = 0x400, scoped, tag = 'input window, operand 16, single buffered']
    %22 = vsyncpa [#allocation3], 0
    %23 = vsyncpa [#allocation5], 0
    %24 = vsyncpa [#allocation8], 0
    %25 = vsyncpa [#allocation11], 0
    %26 = vsyncpa [#allocation14], 0
    %27 = vsyncpa [#allocation17], 0
    loop: start=0, step=1, limit=4
    $region2: #{forward.1} parent=1 // loop_pre_header
      _
    $region3: #{forward.1} parent=1 // loop_header
      %s29 = sphi 0, %s33
      %p30 = scmp.ge.s32.totalorder %s29, 4
      %s39 = sphi 0, %s41
      %s42 = sphi 0, %s39
      %s43 = sphi 0, %s42
      %s59 = sphi 0, %s43
      %s63 = sphi 0, %s63
      %s65 = sphi 0, %s63
      %s66 = sphi 0, %s65
      %s80 = sphi 0, %s66
      %s84 = sphi 0, %s84
      %s86 = sphi 0, %s84
      %s87 = sphi 0, %s86
      %s101 = sphi 0, %s87
      %s105 = sphi 0, %s105
      %s107 = sphi 0, %s105
      %s108 = sphi 0, %s107
      %s122 = sphi 0, %s108
      %s126 = sphi 0, %s126
      %s128 = sphi 0, %s126
      %s129 = sphi 0, %s128
      %s143 = sphi 0, %s129
      %s147 = sphi 0, %s147
      %s149 = sphi 0, %s147
      %s150 = sphi 0, %s149
      %s164 = sphi 0, %s150
      %s168 = sphi 0, %s168
      %s170 = sphi 0, %s168
      %s171 = sphi 0, %s170
      %s185 = sphi 0, %s171
      %s189 = sphi 0, %s189
      %s191 = sphi 0, %s189
      %s192 = sphi 0, %s191
      %s206 = sphi 0, %s192
      %s210 = sphi 0, %s210
      %s212 = sphi 0, %s210
      %s213 = sphi 0, %s212
      %s227 = sphi 0, %s213
      %s231 = sphi 0, %s231
      %s233 = sphi 0, %s231
      %s234 = sphi 0, %s233
      %s248 = sphi 0, %s234
      %s252 = sphi 0, %s252
      %s254 = sphi 0, %s252
      %s255 = sphi 0, %s254
      %s269 = sphi 0, %s255
      %s273 = sphi 0, %s273
      %s275 = sphi 0, %s273
      %s276 = sphi 0, %s275
      %s290 = sphi 0, %s276
      %s294 = sphi 0, %s294
      %s296 = sphi 0, %s294
      %s297 = sphi 0, %s296
      %s311 = sphi 0, %s297
      %s315 = sphi 0, %s315
      %s317 = sphi 0, %s315
      %s318 = sphi 0, %s317
      %s332 = sphi 0, %s318
      %s336 = sphi 0, %s336
      %s338 = sphi 0, %s336
      %s339 = sphi 0, %s338
      %s353 = sphi 0, %s339
      %s357 = sphi 0, %s357
      %s359 = sphi 0, %s357
      %s360 = sphi 0, %s359
      %s374 = sphi 0, %s360
      %s378 = sphi 0, %s378
      %s380 = sphi 0, %s378
      %s381 = sphi 0, %s380
      %s395 = sphi 0, %s381
      %s401 = sphi 0, %s403
      %s404 = sphi 0, %s401
      %s405 = sphi 0, %s404
      %s421 = sphi 0, %s405
    $region4: #{forward.1} parent=1 // loop_header_branch
      %32 = sbr.rel (%p30) target = $region8
    $region5: #{forward.1} parent=1 // loop_body
      %s34 = ssub.s32 %s29, 1
      %s35 = ssub.s32 %s29, 2
      %s36 = sadd.s32 %s29, 1
      %s37 = ssub.s32 %s29, %s36
      %p38 = scmp.eq.s32.totalorder %s37, 0
      %s40 = sadd.s32 %s39, 1
      %s41 = scalar_select %p38, %s39, %s40
      %p44 = pneg %p38
      %p45 = scmp.eq.s32.totalorder %s29, 1
      %p46 = por %p44, %p45
      %p47 = scmp.ne.s32.totalorder %s39, %s42
      %p48 = scmp.eq.s32.totalorder %s29, 0
      %p49 = por %p47, %p48
      %p50 = scmp.ne.s32.totalorder %s39, %s42
      %p51 = scmp.eq.s32.totalorder %s34, 1
      %p52 = por %p50, %p51
      %p53 = scmp.ne.s32.totalorder %s42, %s43
      %p54 = scmp.eq.s32.totalorder %s34, 0
      %p55 = por %p53, %p54
      %p56 = scmp.ne.s32.totalorder %s42, %s43
      %p57 = scmp.eq.s32.totalorder %s35, 1
      %p58 = por %p56, %p57
      %p60 = scmp.ne.s32.totalorder %s43, %s59
      %p61 = scmp.eq.s32.totalorder %s35, 0
      %p62 = por %p60, %p61
      %s64 = sadd.s32 %s63, 1
      %p67 = scmp.eq.s32.totalorder %s29, 1
      %p68 = scmp.ne.s32.totalorder %s63, %s65
      %p69 = scmp.eq.s32.totalorder %s29, 0
      %p70 = por %p68, %p69
      %p71 = scmp.ne.s32.totalorder %s63, %s65
      %p72 = scmp.eq.s32.totalorder %s34, 1
      %p73 = por %p71, %p72
      %p74 = scmp.ne.s32.totalorder %s65, %s66
      %p75 = scmp.eq.s32.totalorder %s34, 0
      %p76 = por %p74, %p75
      %p77 = scmp.ne.s32.totalorder %s65, %s66
      %p78 = scmp.eq.s32.totalorder %s35, 1
      %p79 = por %p77, %p78
      %p81 = scmp.ne.s32.totalorder %s66, %s80
      %p82 = scmp.eq.s32.totalorder %s35, 0
      %p83 = por %p81, %p82
      %s85 = sadd.s32 %s84, 1
      %p88 = scmp.eq.s32.totalorder %s29, 1
      %p89 = scmp.ne.s32.totalorder %s84, %s86
      %p90 = scmp.eq.s32.totalorder %s29, 0
      %p91 = por %p89, %p90
      %p92 = scmp.ne.s32.totalorder %s84, %s86
      %p93 = scmp.eq.s32.totalorder %s34, 1
      %p94 = por %p92, %p93
      %p95 = scmp.ne.s32.totalorder %s86, %s87
      %p96 = scmp.eq.s32.totalorder %s34, 0
      %p97 = por %p95, %p96
      %p98 = scmp.ne.s32.totalorder %s86, %s87
      %p99 = scmp.eq.s32.totalorder %s35, 1
      %p100 = por %p98, %p99
      %p102 = scmp.ne.s32.totalorder %s87, %s101
      %p103 = scmp.eq.s32.totalorder %s35, 0
      %p104 = por %p102, %p103
      %s106 = sadd.s32 %s105, 1
      %p109 = scmp.eq.s32.totalorder %s29, 1
      %p110 = scmp.ne.s32.totalorder %s105, %s107
      %p111 = scmp.eq.s32.totalorder %s29, 0
      %p112 = por %p110, %p111
      %p113 = scmp.ne.s32.totalorder %s105, %s107
      %p114 = scmp.eq.s32.totalorder %s34, 1
      %p115 = por %p113, %p114
      %p116 = scmp.ne.s32.totalorder %s107, %s108
      %p117 = scmp.eq.s32.totalorder %s34, 0
      %p118 = por %p116, %p117
      %p119 = scmp.ne.s32.totalorder %s107, %s108
      %p120 = scmp.eq.s32.totalorder %s35, 1
      %p121 = por %p119, %p120
      %p123 = scmp.ne.s32.totalorder %s108, %s122
      %p124 = scmp.eq.s32.totalorder %s35, 0
      %p125 = por %p123, %p124
      %s127 = sadd.s32 %s126, 1
      %p130 = scmp.eq.s32.totalorder %s29, 1
      %p131 = scmp.ne.s32.totalorder %s126, %s128
      %p132 = scmp.eq.s32.totalorder %s29, 0
      %p133 = por %p131, %p132
      %p134 = scmp.ne.s32.totalorder %s126, %s128
      %p135 = scmp.eq.s32.totalorder %s34, 1
      %p136 = por %p134, %p135
      %p137 = scmp.ne.s32.totalorder %s128, %s129
      %p138 = scmp.eq.s32.totalorder %s34, 0
      %p139 = por %p137, %p138
      %p140 = scmp.ne.s32.totalorder %s128, %s129
      %p141 = scmp.eq.s32.totalorder %s35, 1
      %p142 = por %p140, %p141
      %p144 = scmp.ne.s32.totalorder %s129, %s143
      %p145 = scmp.eq.s32.totalorder %s35, 0
      %p146 = por %p144, %p145
      %s148 = sadd.s32 %s147, 1
      %p151 = scmp.eq.s32.totalorder %s29, 1
      %p152 = scmp.ne.s32.totalorder %s147, %s149
      %p153 = scmp.eq.s32.totalorder %s29, 0
      %p154 = por %p152, %p153
      %p155 = scmp.ne.s32.totalorder %s147, %s149
      %p156 = scmp.eq.s32.totalorder %s34, 1
      %p157 = por %p155, %p156
      %p158 = scmp.ne.s32.totalorder %s149, %s150
      %p159 = scmp.eq.s32.totalorder %s34, 0
      %p160 = por %p158, %p159
      %p161 = scmp.ne.s32.totalorder %s149, %s150
      %p162 = scmp.eq.s32.totalorder %s35, 1
      %p163 = por %p161, %p162
      %p165 = scmp.ne.s32.totalorder %s150, %s164
      %p166 = scmp.eq.s32.totalorder %s35, 0
      %p167 = por %p165, %p166
      %s169 = sadd.s32 %s168, 1
      %p172 = scmp.eq.s32.totalorder %s29, 1
      %p173 = scmp.ne.s32.totalorder %s168, %s170
      %p174 = scmp.eq.s32.totalorder %s29, 0
      %p175 = por %p173, %p174
      %p176 = scmp.ne.s32.totalorder %s168, %s170
      %p177 = scmp.eq.s32.totalorder %s34, 1
      %p178 = por %p176, %p177
      %p179 = scmp.ne.s32.totalorder %s170, %s171
      %p180 = scmp.eq.s32.totalorder %s34, 0
      %p181 = por %p179, %p180
      %p182 = scmp.ne.s32.totalorder %s170, %s171
      %p183 = scmp.eq.s32.totalorder %s35, 1
      %p184 = por %p182, %p183
      %p186 = scmp.ne.s32.totalorder %s171, %s185
      %p187 = scmp.eq.s32.totalorder %s35, 0
      %p188 = por %p186, %p187
      %s190 = sadd.s32 %s189, 1
      %p193 = scmp.eq.s32.totalorder %s29, 1
      %p194 = scmp.ne.s32.totalorder %s189, %s191
      %p195 = scmp.eq.s32.totalorder %s29, 0
      %p196 = por %p194, %p195
      %p197 = scmp.ne.s32.totalorder %s189, %s191
      %p198 = scmp.eq.s32.totalorder %s34, 1
      %p199 = por %p197, %p198
      %p200 = scmp.ne.s32.totalorder %s191, %s192
      %p201 = scmp.eq.s32.totalorder %s34, 0
      %p202 = por %p200, %p201
      %p203 = scmp.ne.s32.totalorder %s191, %s192
      %p204 = scmp.eq.s32.totalorder %s35, 1
      %p205 = por %p203, %p204
      %p207 = scmp.ne.s32.totalorder %s192, %s206
      %p208 = scmp.eq.s32.totalorder %s35, 0
      %p209 = por %p207, %p208
      %s211 = sadd.s32 %s210, 1
      %p214 = scmp.eq.s32.totalorder %s29, 1
      %p215 = scmp.ne.s32.totalorder %s210, %s212
      %p216 = scmp.eq.s32.totalorder %s29, 0
      %p217 = por %p215, %p216
      %p218 = scmp.ne.s32.totalorder %s210, %s212
      %p219 = scmp.eq.s32.totalorder %s34, 1
      %p220 = por %p218, %p219
      %p221 = scmp.ne.s32.totalorder %s212, %s213
      %p222 = scmp.eq.s32.totalorder %s34, 0
      %p223 = por %p221, %p222
      %p224 = scmp.ne.s32.totalorder %s212, %s213
      %p225 = scmp.eq.s32.totalorder %s35, 1
      %p226 = por %p224, %p225
      %p228 = scmp.ne.s32.totalorder %s213, %s227
      %p229 = scmp.eq.s32.totalorder %s35, 0
      %p230 = por %p228, %p229
      %s232 = sadd.s32 %s231, 1
      %p235 = scmp.eq.s32.totalorder %s29, 1
      %p236 = scmp.ne.s32.totalorder %s231, %s233
      %p237 = scmp.eq.s32.totalorder %s29, 0
      %p238 = por %p236, %p237
      %p239 = scmp.ne.s32.totalorder %s231, %s233
      %p240 = scmp.eq.s32.totalorder %s34, 1
      %p241 = por %p239, %p240
      %p242 = scmp.ne.s32.totalorder %s233, %s234
      %p243 = scmp.eq.s32.totalorder %s34, 0
      %p244 = por %p242, %p243
      %p245 = scmp.ne.s32.totalorder %s233, %s234
      %p246 = scmp.eq.s32.totalorder %s35, 1
      %p247 = por %p245, %p246
      %p249 = scmp.ne.s32.totalorder %s234, %s248
      %p250 = scmp.eq.s32.totalorder %s35, 0
      %p251 = por %p249, %p250
      %s253 = sadd.s32 %s252, 1
      %p256 = scmp.eq.s32.totalorder %s29, 1
      %p257 = scmp.ne.s32.totalorder %s252, %s254
      %p258 = scmp.eq.s32.totalorder %s29, 0
      %p259 = por %p257, %p258
      %p260 = scmp.ne.s32.totalorder %s252, %s254
      %p261 = scmp.eq.s32.totalorder %s34, 1
      %p262 = por %p260, %p261
      %p263 = scmp.ne.s32.totalorder %s254, %s255
      %p264 = scmp.eq.s32.totalorder %s34, 0
      %p265 = por %p263, %p264
      %p266 = scmp.ne.s32.totalorder %s254, %s255
      %p267 = scmp.eq.s32.totalorder %s35, 1
      %p268 = por %p266, %p267
      %p270 = scmp.ne.s32.totalorder %s255, %s269
      %p271 = scmp.eq.s32.totalorder %s35, 0
      %p272 = por %p270, %p271
      %s274 = sadd.s32 %s273, 1
      %p277 = scmp.eq.s32.totalorder %s29, 1
      %p278 = scmp.ne.s32.totalorder %s273, %s275
      %p279 = scmp.eq.s32.totalorder %s29, 0
      %p280 = por %p278, %p279
      %p281 = scmp.ne.s32.totalorder %s273, %s275
      %p282 = scmp.eq.s32.totalorder %s34, 1
      %p283 = por %p281, %p282
      %p284 = scmp.ne.s32.totalorder %s275, %s276
      %p285 = scmp.eq.s32.totalorder %s34, 0
      %p286 = por %p284, %p285
      %p287 = scmp.ne.s32.totalorder %s275, %s276
      %p288 = scmp.eq.s32.totalorder %s35, 1
      %p289 = por %p287, %p288
      %p291 = scmp.ne.s32.totalorder %s276, %s290
      %p292 = scmp.eq.s32.totalorder %s35, 0
      %p293 = por %p291, %p292
      %s295 = sadd.s32 %s294, 1
      %p298 = scmp.eq.s32.totalorder %s29, 1
      %p299 = scmp.ne.s32.totalorder %s294, %s296
      %p300 = scmp.eq.s32.totalorder %s29, 0
      %p301 = por %p299, %p300
      %p302 = scmp.ne.s32.totalorder %s294, %s296
      %p303 = scmp.eq.s32.totalorder %s34, 1
      %p304 = por %p302, %p303
      %p305 = scmp.ne.s32.totalorder %s296, %s297
      %p306 = scmp.eq.s32.totalorder %s34, 0
      %p307 = por %p305, %p306
      %p308 = scmp.ne.s32.totalorder %s296, %s297
      %p309 = scmp.eq.s32.totalorder %s35, 1
      %p310 = por %p308, %p309
      %p312 = scmp.ne.s32.totalorder %s297, %s311
      %p313 = scmp.eq.s32.totalorder %s35, 0
      %p314 = por %p312, %p313
      %s316 = sadd.s32 %s315, 1
      %p319 = scmp.eq.s32.totalorder %s29, 1
      %p320 = scmp.ne.s32.totalorder %s315, %s317
      %p321 = scmp.eq.s32.totalorder %s29, 0
      %p322 = por %p320, %p321
      %p323 = scmp.ne.s32.totalorder %s315, %s317
      %p324 = scmp.eq.s32.totalorder %s34, 1
      %p325 = por %p323, %p324
      %p326 = scmp.ne.s32.totalorder %s317, %s318
      %p327 = scmp.eq.s32.totalorder %s34, 0
      %p328 = por %p326, %p327
      %p329 = scmp.ne.s32.totalorder %s317, %s318
      %p330 = scmp.eq.s32.totalorder %s35, 1
      %p331 = por %p329, %p330
      %p333 = scmp.ne.s32.totalorder %s318, %s332
      %p334 = scmp.eq.s32.totalorder %s35, 0
      %p335 = por %p333, %p334
      %s337 = sadd.s32 %s336, 1
      %p340 = scmp.eq.s32.totalorder %s29, 1
      %p341 = scmp.ne.s32.totalorder %s336, %s338
      %p342 = scmp.eq.s32.totalorder %s29, 0
      %p343 = por %p341, %p342
      %p344 = scmp.ne.s32.totalorder %s336, %s338
      %p345 = scmp.eq.s32.totalorder %s34, 1
      %p346 = por %p344, %p345
      %p347 = scmp.ne.s32.totalorder %s338, %s339
      %p348 = scmp.eq.s32.totalorder %s34, 0
      %p349 = por %p347, %p348
      %p350 = scmp.ne.s32.totalorder %s338, %s339
      %p351 = scmp.eq.s32.totalorder %s35, 1
      %p352 = por %p350, %p351
      %p354 = scmp.ne.s32.totalorder %s339, %s353
      %p355 = scmp.eq.s32.totalorder %s35, 0
      %p356 = por %p354, %p355
      %s358 = sadd.s32 %s357, 1
      %p361 = scmp.eq.s32.totalorder %s29, 1
      %p362 = scmp.ne.s32.totalorder %s357, %s359
      %p363 = scmp.eq.s32.totalorder %s29, 0
      %p364 = por %p362, %p363
      %p365 = scmp.ne.s32.totalorder %s357, %s359
      %p366 = scmp.eq.s32.totalorder %s34, 1
      %p367 = por %p365, %p366
      %p368 = scmp.ne.s32.totalorder %s359, %s360
      %p369 = scmp.eq.s32.totalorder %s34, 0
      %p370 = por %p368, %p369
      %p371 = scmp.ne.s32.totalorder %s359, %s360
      %p372 = scmp.eq.s32.totalorder %s35, 1
      %p373 = por %p371, %p372
      %p375 = scmp.ne.s32.totalorder %s360, %s374
      %p376 = scmp.eq.s32.totalorder %s35, 0
      %p377 = por %p375, %p376
      %s379 = sadd.s32 %s378, 1
      %p382 = scmp.eq.s32.totalorder %s29, 1
      %p383 = scmp.ne.s32.totalorder %s378, %s380
      %p384 = scmp.eq.s32.totalorder %s29, 0
      %p385 = por %p383, %p384
      %p386 = scmp.ne.s32.totalorder %s378, %s380
      %p387 = scmp.eq.s32.totalorder %s34, 1
      %p388 = por %p386, %p387
      %p389 = scmp.ne.s32.totalorder %s380, %s381
      %p390 = scmp.eq.s32.totalorder %s34, 0
      %p391 = por %p389, %p390
      %p392 = scmp.ne.s32.totalorder %s380, %s381
      %p393 = scmp.eq.s32.totalorder %s35, 1
      %p394 = por %p392, %p393
      %p396 = scmp.ne.s32.totalorder %s381, %s395
      %p397 = scmp.eq.s32.totalorder %s35, 0
      %p398 = por %p396, %p397
      %s399 = ssub.s32 %s29, %s36
      %p400 = scmp.eq.s32.totalorder %s399, 0
      %s402 = sadd.s32 %s401, 1
      %s403 = scalar_select %p400, %s401, %s402
      %p406 = pneg %p400
      %p407 = scmp.eq.s32.totalorder %s29, 1
      %p408 = por %p406, %p407
      %p409 = scmp.ne.s32.totalorder %s401, %s404
      %p410 = scmp.eq.s32.totalorder %s29, 0
      %p411 = por %p409, %p410
      %p412 = scmp.ne.s32.totalorder %s401, %s404
      %p413 = scmp.eq.s32.totalorder %s34, 1
      %p414 = por %p412, %p413
      %p415 = scmp.ne.s32.totalorder %s404, %s405
      %p416 = scmp.eq.s32.totalorder %s34, 0
      %p417 = por %p415, %p416
      %p418 = scmp.ne.s32.totalorder %s404, %s405
      %p419 = scmp.eq.s32.totalorder %s35, 1
      %p420 = por %p418, %p419
      %p422 = scmp.ne.s32.totalorder %s405, %s421
      %p423 = scmp.eq.s32.totalorder %s35, 0
      %p424 = por %p422, %p423
      %p425 = scmp.le.s32.totalorder 1, %s29
      %p426 = scmp.lt.s32.totalorder %s29, 3
      %p427 = pnand %p425, %p426
      %p428 = pneg %p427
      // Predicated region
      $region9: #{forward.1} parent=5 // pred_check
        _
      $region10: #{forward.1} parent=5 // pred_check_branch
        %430 = sbr.rel (%p427) target = $region12
      $region11: #{forward.1} parent=5 // pred_region
        %s431 = ssub.s32 %s29, 1
        // Predicated region
        $region13: #{forward.1} parent=11 // pred_check
          %p432 = pneg %p76
        $region14: #{forward.1} parent=11 // pred_check_branch
          %434 = sbr.rel (%p432) target = $region16
        $region15: #{forward.1} parent=11 // pred_region
          %s436 = ssub.s32 256, 256
          %437 = vsyncadd [#allocation3], %s436
          %s438 = sshll.u32 [#allocation2], 4
          %s439 = int_to_ptr.vmem [resolvable:$true] %s438
          %444 = dma.hbm_to_vmem [thread:$0]  %s1, 256, %s439, [#allocation3], 64, 64, 4
        $region16: #{forward.1} parent=11 // pred_fallthru
          _
        // Predicated region
        $region17: #{forward.1} parent=11 // pred_check
          %p445 = pneg %p97
        $region18: #{forward.1} parent=11 // pred_check_branch
          %447 = sbr.rel (%p445) target = $region20
        $region19: #{forward.1} parent=11 // pred_region
          %s449 = ssub.s32 384, 384
          %450 = vsyncadd [#allocation5], %s449
          %s451 = sshll.u32 [#allocation4], 4
          %s452 = int_to_ptr.vmem [resolvable:$true] %s451
          %457 = dma.hbm_to_vmem [thread:$0]  %s2, 384, %s452, [#allocation5], 192, 192, 12
        $region20: #{forward.1} parent=11 // pred_fallthru
          _
        // Predicated region
        $region21: #{forward.1} parent=11 // pred_check
          %p458 = pneg %p118
        $region22: #{forward.1} parent=11 // pred_check_branch
          %460 = sbr.rel (%p458) target = $region24
        $region23: #{forward.1} parent=11 // pred_region
          %s462 = ssub.s32 128, 128
          %463 = vsyncadd [#allocation5], %s462
          %s465 = sshll.u32 [#allocation6], 4
          %s466 = int_to_ptr.vmem [resolvable:$true] %s465
          %468 = dma.hbm_to_vmem [thread:$0]  %s3, 128, %s466, [#allocation5]
        $region24: #{forward.1} parent=11 // pred_fallthru
          _
        // Predicated region
        $region25: #{forward.1} parent=11 // pred_check
          %p469 = pneg %p139
        $region26: #{forward.1} parent=11 // pred_check_branch
          %471 = sbr.rel (%p469) target = $region28
        $region27: #{forward.1} parent=11 // pred_region
          %s473 = ssub.s32 128, 128
          %474 = vsyncadd [#allocation8], %s473
          %s475 = sshll.u32 [#allocation7], 4
          %s476 = int_to_ptr.vmem [resolvable:$true] %s475
          %481 = dma.hbm_to_vmem [thread:$0]  %s4, 128, %s476, [#allocation8], 64, 64, 4
        $region28: #{forward.1} parent=11 // pred_fallthru
          _
        // Predicated region
        $region29: #{forward.1} parent=11 // pred_check
          %p482 = pneg %p160
        $region30: #{forward.1} parent=11 // pred_check_branch
          %484 = sbr.rel (%p482) target = $region32
        $region31: #{forward.1} parent=11 // pred_region
          %s486 = ssub.s32 512, 512
          %487 = vsyncadd [#allocation8], %s486
          %s488 = sshll.u32 [#allocation9], 4
          %s489 = int_to_ptr.vmem [resolvable:$true] %s488
          %494 = dma.hbm_to_vmem [thread:$0]  %s5, 512, %s489, [#allocation8], 128, 128, 8
        $region32: #{forward.1} parent=11 // pred_fallthru
          _
        // Predicated region
        $region33: #{forward.1} parent=11 // pred_check
          %p495 = pneg %p181
        $region34: #{forward.1} parent=11 // pred_check_branch
          %497 = sbr.rel (%p495) target = $region36
        $region35: #{forward.1} parent=11 // pred_region
          %s499 = ssub.s32 192, 192
          %500 = vsyncadd [#allocation11], %s499
          %s502 = sshll.u32 [#allocation10], 4
          %s503 = int_to_ptr.vmem [resolvable:$true] %s502
          %505 = dma.hbm_to_vmem [thread:$0]  %s6, 192, %s503, [#allocation11]
        $region36: #{forward.1} parent=11 // pred_fallthru
          _
        // Predicated region
        $region37: #{forward.1} parent=11 // pred_check
          %p506 = pneg %p202
        $region38: #{forward.1} parent=11 // pred_check_branch
          %508 = sbr.rel (%p506) target = $region40
        $region39: #{forward.1} parent=11 // pred_region
          _
        $region40: #{forward.1} parent=11 // pred_fallthru
          _
        // Predicated region
        $region41: #{forward.1} parent=11 // pred_check
          %p509 = pneg %p223
        $region42: #{forward.1} parent=11 // pred_check_branch
          %511 = sbr.rel (%p509) target = $region44
        $region43: #{forward.1} parent=11 // pred_region
          %s513 = ssub.s32 256, 256
          %514 = vsyncadd [#allocation11], %s513
          %s515 = sshll.u32 [#allocation12], 4
          %s516 = int_to_ptr.vmem [resolvable:$true] %s515
          %521 = dma.hbm_to_vmem [thread:$0]  %s8, 256, %s516, [#allocation11], 128, 128, 8
        $region44: #{forward.1} parent=11 // pred_fallthru
          _
        // Predicated region
        $region45: #{forward.1} parent=11 // pred_check
          %p522 = pneg %p244
        $region46: #{forward.1} parent=11 // pred_check_branch
          %524 = sbr.rel (%p522) target = $region48
        $region47: #{forward.1} parent=11 // pred_region
          %s526 = ssub.s32 128, 128
          %527 = vsyncadd [#allocation14], %s526
          %s529 = sshll.u32 [#allocation13], 4
          %s530 = int_to_ptr.vmem [resolvable:$true] %s529
          %532 = dma.hbm_to_vmem [thread:$0]  %s9, 128, %s530, [#allocation14]
        $region48: #{forward.1} parent=11 // pred_fallthru
          _
        // Predicated region
        $region49: #{forward.1} parent=11 // pred_check
          %p533 = pneg %p265
        $region50: #{forward.1} parent=11 // pred_check_branch
          %535 = sbr.rel (%p533) target = $region52
        $region51: #{forward.1} parent=11 // pred_region
          %s537 = ssub.s32 256, 256
          %538 = vsyncadd [#allocation14], %s537
          %s539 = sshll.u32 [#allocation15], 4
          %s540 = int_to_ptr.vmem [resolvable:$true] %s539
          %545 = dma.hbm_to_vmem [thread:$0]  %s10, 256, %s540, [#allocation14], 128, 128, 8
        $region52: #{forward.1} parent=11 // pred_fallthru
          _
        // Predicated region
        $region53: #{forward.1} parent=11 // pred_check
          %p546 = pneg %p286
        $region54: #{forward.1} parent=11 // pred_check_branch
          %548 = sbr.rel (%p546) target = $region56
        $region55: #{forward.1} parent=11 // pred_region
          _
        $region56: #{forward.1} parent=11 // pred_fallthru
          _
        // Predicated region
        $region57: #{forward.1} parent=11 // pred_check
          %p549 = pneg %p307
        $region58: #{forward.1} parent=11 // pred_check_branch
          %551 = sbr.rel (%p549) target = $region60
        $region59: #{forward.1} parent=11 // pred_region
          _
        $region60: #{forward.1} parent=11 // pred_fallthru
          _
        // Predicated region
        $region61: #{forward.1} parent=11 // pred_check
          %p552 = pneg %p328
        $region62: #{forward.1} parent=11 // pred_check_branch
          %554 = sbr.rel (%p552) target = $region64
        $region63: #{forward.1} parent=11 // pred_region
          _
        $region64: #{forward.1} parent=11 // pred_fallthru
          _
        // Predicated region
        $region65: #{forward.1} parent=11 // pred_check
          %p555 = pneg %p349
        $region66: #{forward.1} parent=11 // pred_check_branch
          %557 = sbr.rel (%p555) target = $region68
        $region67: #{forward.1} parent=11 // pred_region
          %s559 = ssub.s32 4096, 4096
          %560 = vsyncadd [#allocation17], %s559
          %s561 = sshll.u32 [#allocation16], 4
          %s562 = int_to_ptr.vmem [resolvable:$true] %s561
          %567 = dma.hbm_to_vmem [thread:$0]  %s14, 4096, %s562, [#allocation17], 64, 64, 4
        $region68: #{forward.1} parent=11 // pred_fallthru
          _
        // Predicated region
        $region69: #{forward.1} parent=11 // pred_check
          %p568 = pneg %p370
        $region70: #{forward.1} parent=11 // pred_check_branch
          %570 = sbr.rel (%p568) target = $region72
        $region71: #{forward.1} parent=11 // pred_region
          _
        $region72: #{forward.1} parent=11 // pred_fallthru
          _
        // Predicated region
        $region73: #{forward.1} parent=11 // pred_check
          %p571 = pneg %p391
        $region74: #{forward.1} parent=11 // pred_check_branch
          %573 = sbr.rel (%p571) target = $region76
        $region75: #{forward.1} parent=11 // pred_region
          %s575 = ssub.s32 32, 32
          %576 = vsyncadd [#allocation17], %s575
          %s578 = sshll.u32 [#allocation18], 4
          %s579 = int_to_ptr.vmem [resolvable:$true] %s578
          %581 = dma.hbm_to_vmem [thread:$0]  %s16, 32, %s579, [#allocation17]
        $region76: #{forward.1} parent=11 // pred_fallthru
          _
      $region12: #{forward.1} parent=5 // pred_fallthru
        _
      %p582 = scmp.lt.s32.totalorder %s29, 2
      // Predicated region
      $region77: #{forward.1} parent=5 // pred_check
        %p583 = pneg %p582
      $region78: #{forward.1} parent=5 // pred_check_branch
        %585 = sbr.rel (%p583) target = $region80
      $region79: #{forward.1} parent=5 // pred_region
        // Predicated region
        $region81: #{forward.1} parent=79 // pred_check
          %p586 = pneg %p49
        $region82: #{forward.1} parent=79 // pred_check_branch
          %588 = sbr.rel (%p586) target = $region84
        $region83: #{forward.1} parent=79 // pred_region
          %p589 = scmp.lt.s32.totalorder %s29, 1
          %s590 = scalar_select %p589, %s29, 1
          %s591 = smul.addr %s590, 3
          %s592 = smul.addr %s591, 8
          %s593 = scalar_lea.vmem %s0, %s592
        $region84: #{forward.1} parent=79 // pred_fallthru
          _
      $region80: #{forward.1} parent=5 // pred_fallthru
        _
      %p594 = scmp.le.s32.totalorder 1, %s29
      %p595 = scmp.lt.s32.totalorder %s29, 3
      %p596 = pnand %p594, %p595
      %p597 = pneg %p596
      // Predicated region
      $region85: #{forward.1} parent=5 // pred_check
        _
      $region86: #{forward.1} parent=5 // pred_check_branch
        %599 = sbr.rel (%p596) target = $region88
      $region87: #{forward.1} parent=5 // pred_region
        %s600 = ssub.s32 %s29, 1
        // Predicated region
        $region89: #{forward.1} parent=87 // pred_check
          %p601 = pneg %p76
        $region90: #{forward.1} parent=87 // pred_check_branch
          %603 = sbr.rel (%p601) target = $region92
        $region91: #{forward.1} parent=87 // pred_region
          %604 = dma.done [#allocation3], 256
        $region92: #{forward.1} parent=87 // pred_fallthru
          _
        // Predicated region
        $region93: #{forward.1} parent=87 // pred_check
          %p605 = pneg %p97
        $region94: #{forward.1} parent=87 // pred_check_branch
          %607 = sbr.rel (%p605) target = $region96
        $region95: #{forward.1} parent=87 // pred_region
          %608 = dma.done [#allocation5], 384
        $region96: #{forward.1} parent=87 // pred_fallthru
          _
        // Predicated region
        $region97: #{forward.1} parent=87 // pred_check
          %p609 = pneg %p118
        $region98: #{forward.1} parent=87 // pred_check_branch
          %611 = sbr.rel (%p609) target = $region100
        $region99: #{forward.1} parent=87 // pred_region
          %612 = dma.done [#allocation5], 128
        $region100: #{forward.1} parent=87 // pred_fallthru
          _
        // Predicated region
        $region101: #{forward.1} parent=87 // pred_check
          %p613 = pneg %p139
        $region102: #{forward.1} parent=87 // pred_check_branch
          %615 = sbr.rel (%p613) target = $region104
        $region103: #{forward.1} parent=87 // pred_region
          %616 = dma.done [#allocation8], 128
        $region104: #{forward.1} parent=87 // pred_fallthru
          _
        // Predicated region
        $region105: #{forward.1} parent=87 // pred_check
          %p617 = pneg %p160
        $region106: #{forward.1} parent=87 // pred_check_branch
          %619 = sbr.rel (%p617) target = $region108
        $region107: #{forward.1} parent=87 // pred_region
          %620 = dma.done [#allocation8], 512
        $region108: #{forward.1} parent=87 // pred_fallthru
          _
        // Predicated region
        $region109: #{forward.1} parent=87 // pred_check
          %p621 = pneg %p181
        $region110: #{forward.1} parent=87 // pred_check_branch
          %623 = sbr.rel (%p621) target = $region112
        $region111: #{forward.1} parent=87 // pred_region
          %624 = dma.done [#allocation11], 192
        $region112: #{forward.1} parent=87 // pred_fallthru
          _
        // Predicated region
        $region113: #{forward.1} parent=87 // pred_check
          %p625 = pneg %p223
        $region114: #{forward.1} parent=87 // pred_check_branch
          %627 = sbr.rel (%p625) target = $region116
        $region115: #{forward.1} parent=87 // pred_region
          %628 = dma.done [#allocation11], 256
        $region116: #{forward.1} parent=87 // pred_fallthru
          _
        // Predicated region
        $region117: #{forward.1} parent=87 // pred_check
          %p629 = pneg %p244
        $region118: #{forward.1} parent=87 // pred_check_branch
          %631 = sbr.rel (%p629) target = $region120
        $region119: #{forward.1} parent=87 // pred_region
          %632 = dma.done [#allocation14], 128
        $region120: #{forward.1} parent=87 // pred_fallthru
          _
        // Predicated region
        $region121: #{forward.1} parent=87 // pred_check
          %p633 = pneg %p265
        $region122: #{forward.1} parent=87 // pred_check_branch
          %635 = sbr.rel (%p633) target = $region124
        $region123: #{forward.1} parent=87 // pred_region
          %636 = dma.done [#allocation14], 256
        $region124: #{forward.1} parent=87 // pred_fallthru
          _
        // Predicated region
        $region125: #{forward.1} parent=87 // pred_check
          %p637 = pneg %p349
        $region126: #{forward.1} parent=87 // pred_check_branch
          %639 = sbr.rel (%p637) target = $region128
        $region127: #{forward.1} parent=87 // pred_region
          %640 = dma.done [#allocation17], 4096
        $region128: #{forward.1} parent=87 // pred_fallthru
          _
        // Predicated region
        $region129: #{forward.1} parent=87 // pred_check
          %p641 = pneg %p391
        $region130: #{forward.1} parent=87 // pred_check_branch
          %643 = sbr.rel (%p641) target = $region132
        $region131: #{forward.1} parent=87 // pred_region
          %644 = dma.done [#allocation17], 32
        $region132: #{forward.1} parent=87 // pred_fallthru
          _
        %p645 = scmp.lt.s32.totalorder %s34, 1
        %s646 = scalar_select %p645, %s34, 1
        %s647 = smul.addr %s646, 3
        %s648 = smul.addr %s647, 8
        %s649 = scalar_lea.vmem %s0, %s648
        %p650 = pneg %p55
        %p651 = pneg %p52
        %p652 = pneg %p76
        %p653 = pneg %p73
        %p654 = pneg %p97
        %p655 = pneg %p94
        %p656 = pneg %p118
        %p657 = pneg %p115
        %p658 = pneg %p139
        %p659 = pneg %p136
        %p660 = pneg %p160
        %p661 = pneg %p157
        %p662 = pneg %p181
        %p663 = pneg %p178
        %p664 = pneg %p202
        %p665 = pneg %p199
        %p666 = pneg %p223
        %p667 = pneg %p220
        %p668 = pneg %p244
        %p669 = pneg %p241
        %p670 = pneg %p265
        %p671 = pneg %p262
        %p672 = pneg %p286
        %p673 = pneg %p283
        %p674 = pneg %p307
        %p675 = pneg %p304
        %p676 = pneg %p328
        %p677 = pneg %p325
        %p678 = pneg %p349
        %p679 = pneg %p346
        %p680 = pneg %p370
        %p681 = pneg %p367
        %p682 = pneg %p391
        %p683 = pneg %p388
        %p684 = pneg %p417
        %p685 = pneg %p414
        %p686 = scmp.lt.s32.totalorder %s34, 1
        %s687 = scalar_select %p686, %s34, 1
        %s688 = smul.addr %s687, 2
        %s689 = smul.addr %s688, 8
        %s690 = scalar_lea.vmem %s17, %s689
        %p691 = scmp.lt.s32.totalorder %s34, 1
        %s692 = scalar_select %p691, %s34, 1
        %s693 = smul.addr %s692, 3
        %s694 = smul.addr %s693, 8
        %s695 = scalar_lea.vmem %s0, %s694
        %p696 = scmp.lt.s32.totalorder %s34, 1
        %s697 = scalar_select %p696, %s34, 1
        %s698 = smul.addr %s697, 2
        %s699 = smul.addr %s698, 8
        %s700 = scalar_lea.vmem %s17, %s699
        %v702 = vld [vmem:[%s695] sm:$0xff]
        %v703 = vld [vmem:[%s695 + $0x8] sm:$0xff]
        %v704 = vld [vmem:[%s695 + $0x10] sm:$0xff]
        %705 = vrot.lane.b32.xlu0 %v702, 19
        %v706 = vpop.permute.xlu0 %705
        %707 = vrot.lane.b32.xlu0 %v703, 19
        %v708 = vpop.permute.xlu0 %707
        %709 = vrot.lane.b32.xlu0 %v704, 19
        %v710 = vpop.permute.xlu0 %709
        %v711 = vlaneseq
        %v712 = vand.u32 %v711, 127
        %vm713 = vcmp.lt.s32.totalorder %v712, 19
        %v714 = vsel %vm713, %v708, %v710
        %v715 = vsel %vm713, %v706, %v708
        %v716 = vsel %vm713, %v710, %v706
        %717 = vrot.lane.b32.xlu0 %v702, 18
        %v718 = vpop.permute.xlu0 %717
        %719 = vrot.lane.b32.xlu0 %v703, 18
        %v720 = vpop.permute.xlu0 %719
        %721 = vrot.lane.b32.xlu0 %v704, 18
        %v722 = vpop.permute.xlu0 %721
        %vm723 = vcmp.lt.s32.totalorder %v712, 18
        %v724 = vsel %vm723, %v720, %v722
        %v725 = vsel %vm723, %v718, %v720
        %v726 = vsel %vm723, %v722, %v718
        %727 = vrot.lane.b32.xlu0 %v702, 17
        %v728 = vpop.permute.xlu0 %727
        %729 = vrot.lane.b32.xlu0 %v703, 17
        %v730 = vpop.permute.xlu0 %729
        %731 = vrot.lane.b32.xlu0 %v704, 17
        %v732 = vpop.permute.xlu0 %731
        %vm733 = vcmp.lt.s32.totalorder %v712, 17
        %v734 = vsel %vm733, %v730, %v732
        %v735 = vsel %vm733, %v728, %v730
        %v736 = vsel %vm733, %v732, %v728
        %737 = vrot.lane.b32.xlu0 %v702, 1
        %v738 = vpop.permute.xlu0 %737
        %739 = vrot.lane.b32.xlu0 %v703, 1
        %v740 = vpop.permute.xlu0 %739
        %741 = vrot.lane.b32.xlu0 %v704, 1
        %v742 = vpop.permute.xlu0 %741
        %vm743 = vcmp.lt.s32.totalorder %v712, 1
        %v744 = vsel %vm743, %v740, %v742
        %v745 = vsel %vm743, %v738, %v740
        %v746 = vsel %vm743, %v742, %v738
        %747 = vrot.lane.b32.xlu0 %v702, 127
        %v748 = vpop.permute.xlu0 %747
        %749 = vrot.lane.b32.xlu0 %v703, 127
        %v750 = vpop.permute.xlu0 %749
        %751 = vrot.lane.b32.xlu0 %v704, 127
        %v752 = vpop.permute.xlu0 %751
        %vm753 = vcmp.lt.s32.totalorder %v712, 127
        %v754 = vsel %vm753, %v750, %v752
        %v755 = vsel %vm753, %v748, %v750
        %v756 = vsel %vm753, %v752, %v748
        %757 = vrot.lane.b32.xlu0 %v702, 111
        %v758 = vpop.permute.xlu0 %757
        %759 = vrot.lane.b32.xlu0 %v703, 111
        %v760 = vpop.permute.xlu0 %759
        %761 = vrot.lane.b32.xlu0 %v704, 111
        %v762 = vpop.permute.xlu0 %761
        %vm763 = vcmp.lt.s32.totalorder %v712, 111
        %v764 = vsel %vm763, %v760, %v762
        %v765 = vsel %vm763, %v758, %v760
        %v766 = vsel %vm763, %v762, %v758
        %767 = vrot.lane.b32.xlu0 %v702, 110
        %v768 = vpop.permute.xlu0 %767
        %769 = vrot.lane.b32.xlu0 %v703, 110
        %v770 = vpop.permute.xlu0 %769
        %771 = vrot.lane.b32.xlu0 %v704, 110
        %v772 = vpop.permute.xlu0 %771
        %vm773 = vcmp.lt.s32.totalorder %v712, 110
        %v774 = vsel %vm773, %v770, %v772
        %v775 = vsel %vm773, %v768, %v770
        %v776 = vsel %vm773, %v772, %v768
        %777 = vrot.lane.b32.xlu0 %v702, 109
        %v778 = vpop.permute.xlu0 %777
        %779 = vrot.lane.b32.xlu0 %v703, 109
        %v780 = vpop.permute.xlu0 %779
        %781 = vrot.lane.b32.xlu0 %v704, 109
        %v782 = vpop.permute.xlu0 %781
        %vm783 = vcmp.lt.s32.totalorder %v712, 109
        %v784 = vsel %vm783, %v780, %v782
        %v785 = vsel %vm783, %v778, %v780
        %v786 = vsel %vm783, %v782, %v778
        %v787 = vpack.c.bf16 %v726, %v716
        %v788 = vpack.c.bf16 %v725, %v715
        %v789 = vpack.c.bf16 %v724, %v714
        %v790 = vpack.c.bf16 %v746, %v736
        %v791 = vpack.c.bf16 %v745, %v735
        %v792 = vpack.c.bf16 %v744, %v734
        %v793 = vpack.c.bf16 %v755, %v702
        %v794 = vpack.c.bf16 %v754, %v703
        %v795 = vpack.c.bf16 %v756, %v704
        %v796 = vpack.c.bf16 %v775, %v765
        %v797 = vpack.c.bf16 %v774, %v764
        %v798 = vpack.c.bf16 %v776, %v766
        %v799 = vpack.c.bf16 %v785, %v785
        %v800 = vpack.c.bf16 %v784, %v784
        %v801 = vpack.c.bf16 %v786, %v786
        %v802 = vld [vmem:[#allocation2] sm:$0xf]
        %v803 = vld [vmem:[#allocation2 + $0x4] sm:$0xf]
        %v804 = vld [vmem:[#allocation2 + $0x8] sm:$0xf]
        %v805 = vld [vmem:[#allocation2 + $0xc] sm:$0xf]
        %v806 = vld [vmem:[%s7] sm:$0xff]
        %v807 = vld [vmem:[%s7 + $0x8] sm:$0xff]
        %v808 = vld [vmem:[%s7 + $0x10] sm:$0xff]
        %v809 = vld [vmem:[%s7 + $0x18] sm:$0xff]
        %811 = vset.pattern.permute.xlu0 0
        %812 = vperm.xlu0 %811, %v806
        %v813 = vpop.permute.xlu0 %812
        %816 = vset.pattern.permute.xlu0 0
        %817 = vperm.xlu0 %816, %v807
        %v818 = vpop.permute.xlu0 %817
        %821 = vset.pattern.permute.xlu0 0
        %822 = vperm.xlu0 %821, %v808
        %v823 = vpop.permute.xlu0 %822
        %826 = vset.pattern.permute.xlu0 0
        %827 = vperm.xlu0 %826, %v809
        %v828 = vpop.permute.xlu0 %827
        %v834 = vunpack.c.l.b16 %v802
        %v835 = vunpack.c.l.b16 %v803
        %v836 = vunpack.c.l.b16 %v804
        %v837 = vunpack.c.l.b16 %v805
        %v838 = vpack.c.b16 %v835, %v834
        %v839 = vpack.c.b16 %v837, %v836
        %vm840 = vcmask 588800
        %v842 = vsel %vm840, %v838, 0
        %v845 = vsel %vm840, %v839, 0
        %vm847 = vcmask 1043456
        %v849 = vsel %vm847, %v799, 0
        %v852 = vsel %vm847, %v800, 0
        %v855 = vsel %vm847, %v801, 0
        %857 = vmatprep.subr.bf16.mxu0 0
        %858 = vmatpush1.bf16.msra.mxu0 0
        %859 = vmatprep.subr.bf16.mxu0 0
        %860 = vmatpush1.bf16.msra.mxu0 0
        %861 = vmatprep.subr.bf16.mxu0 0
        %862 = vmatpush1.bf16.msra.mxu0 0
        %863 = vmatprep.subr.bf16.mxu0 %v852
        %864 = vmatpush1.bf16.msra.mxu0 %v849
        %865 = vmatprep.subr.bf16.mxu0 %v797
        %866 = vmatpush1.bf16.msra.mxu0 %v796
        %867 = vmatprep.subr.bf16.mxu0 %v794
        %868 = vmatpush1.bf16.msra.mxu0 %v793
        %869 = vmatprep.subr.bf16.mxu0 %v791
        %870 = vmatpush1.bf16.msra.mxu0 %v790
        %871 = vmatprep.subr.bf16.mxu0 %v788
        %872 = vmatpush1.bf16.msra.mxu0 %v787
        %873 = vmatprep.subr.bf16.mxu0 0
        %874 = vmatpush2.bf16.msra.mxu0 0
        %875 = vmatprep.subr.bf16.mxu0 0
        %876 = vmatpush2.bf16.msra.mxu0 0
        %877 = vmatprep.subr.bf16.mxu0 0
        %878 = vmatpush2.bf16.msra.mxu0 0
        %879 = vmatprep.subr.bf16.mxu0 0
        %880 = vmatpush2.bf16.msra.mxu0 0
        %881 = vmatprep.subr.bf16.mxu0 0
        %882 = vmatpush2.bf16.msra.mxu0 0
        %883 = vmatprep.subr.bf16.mxu0 0
        %884 = vmatpush2.bf16.msra.mxu0 0
        %885 = vmatprep.subr.bf16.mxu0 0
        %886 = vmatpush2.bf16.msra.mxu0 0
        %887 = vmatprep.subr.bf16.mxu0 0
        %888 = vmatpush2.bf16.msra.mxu0 0
        %889 = vmatprep.mubr.bf16.mxu0 0
        %890 = vmatmul.mubr.bf16.gmra.mxu0 %v842
        %v891 = vpop.f32.mrf.mxu0
        %v892 = vadd.f32 %v813, %v891
        %v893 = vpop.f32.mrf.mxu0
        %v894 = vadd.f32 %v813, %v893
        %v895 = vpop.f32.mrf.mxu0
        %v896 = vadd.f32 %v818, %v895
        %v897 = vpop.f32.mrf.mxu0
        %v898 = vadd.f32 %v818, %v897
        %899 = vmatprep.mubr.bf16.mxu0 0
        %900 = vmatmul.mubr.bf16.gmra.mxu0 %v845
        %v901 = vpop.f32.mrf.mxu0
        %v902 = vadd.f32 %v823, %v901
        %v903 = vpop.f32.mrf.mxu0
        %v904 = vadd.f32 %v823, %v903
        %v905 = vpop.f32.mrf.mxu0
        %v906 = vadd.f32 %v828, %v905
        %v907 = vpop.f32.mrf.mxu0
        %v908 = vadd.f32 %v828, %v907
        %909 = vdwg.mxu0
        %910 = vmatprep.subr.bf16.mxu0 0
        %911 = vmatpush1.bf16.msra.mxu0 0
        %912 = vmatprep.subr.bf16.mxu0 0
        %913 = vmatpush1.bf16.msra.mxu0 0
        %914 = vmatprep.subr.bf16.mxu0 0
        %915 = vmatpush1.bf16.msra.mxu0 0
        %916 = vmatprep.subr.bf16.mxu0 0
        %917 = vmatpush1.bf16.msra.mxu0 %v855
        %918 = vmatprep.subr.bf16.mxu0 0
        %919 = vmatpush1.bf16.msra.mxu0 %v798
        %920 = vmatprep.subr.bf16.mxu0 0
        %921 = vmatpush1.bf16.msra.mxu0 %v795
        %922 = vmatprep.subr.bf16.mxu0 0
        %923 = vmatpush1.bf16.msra.mxu0 %v792
        %924 = vmatprep.subr.bf16.mxu0 0
        %925 = vmatpush1.bf16.msra.mxu0 %v789
        %926 = vmatprep.subr.bf16.mxu0 0
        %927 = vmatpush2.bf16.msra.mxu0 0
        %928 = vmatprep.subr.bf16.mxu0 0
        %929 = vmatpush2.bf16.msra.mxu0 0
        %930 = vmatprep.subr.bf16.mxu0 0
        %931 = vmatpush2.bf16.msra.mxu0 0
        %932 = vmatprep.subr.bf16.mxu0 0
        %933 = vmatpush2.bf16.msra.mxu0 0
        %934 = vmatprep.subr.bf16.mxu0 0
        %935 = vmatpush2.bf16.msra.mxu0 0
        %936 = vmatprep.subr.bf16.mxu0 0
        %937 = vmatpush2.bf16.msra.mxu0 0
        %938 = vmatprep.subr.bf16.mxu0 0
        %939 = vmatpush2.bf16.msra.mxu0 0
        %940 = vmatprep.subr.bf16.mxu0 0
        %941 = vmatpush2.bf16.msra.mxu0 0
        %942 = vmatprep.mubr.bf16.mxu0 0
        %943 = vmatmul.mubr.bf16.gmra.mxu0 %v842
        %v944 = vpop.f32.mrf.mxu0
        %v945 = vadd.f32 %v813, %v944
        %v946 = vpop.f32.mrf.mxu0
        %v947 = vpop.f32.mrf.mxu0
        %v948 = vadd.f32 %v818, %v947
        %v949 = vpop.f32.mrf.mxu0
        %950 = vmatprep.mubr.bf16.mxu0 0
        %951 = vmatmul.mubr.bf16.gmra.mxu0 %v845
        %v952 = vpop.f32.mrf.mxu0
        %v953 = vadd.f32 %v823, %v952
        %v954 = vpop.f32.mrf.mxu0
        %v955 = vpop.f32.mrf.mxu0
        %v956 = vadd.f32 %v828, %v955
        %v957 = vpop.f32.mrf.mxu0
        %958 = vdwg.mxu0
        %v959 = vmax.f32 %v892, 0.0
        %v960 = vmax.f32 %v894, 0.0
        %v961 = vmax.f32 %v945, 0.0
        %v962 = vmax.f32 %v896, 0.0
        %v963 = vmax.f32 %v898, 0.0
        %v964 = vmax.f32 %v948, 0.0
        %v965 = vmax.f32 %v902, 0.0
        %v966 = vmax.f32 %v904, 0.0
        %v967 = vmax.f32 %v953, 0.0
        %v968 = vmax.f32 %v906, 0.0
        %v969 = vmax.f32 %v908, 0.0
        %v970 = vmax.f32 %v956, 0.0
        %v971 = vpack.c.bf16 %v962, %v959
        %v972 = vpack.c.bf16 %v963, %v960
        %v973 = vpack.c.bf16 %v964, %v961
        %v974 = vpack.c.bf16 %v968, %v965
        %v975 = vpack.c.bf16 %v969, %v966
        %v976 = vpack.c.bf16 %v970, %v967
        %v977 = vld [vmem:[%s13] sm:$0xf]
        %v978 = vld [vmem:[%s13 + $0x4] sm:$0xf]
        %v979 = vld [vmem:[%s13 + $0x8] sm:$0xf]
        %v980 = vld [vmem:[%s13 + $0xc] sm:$0xf]
        %v981 = vld [vmem:[%s13 + $0x10] sm:$0xf]
        %v982 = vld [vmem:[%s13 + $0x14] sm:$0xf]
        %v983 = vld [vmem:[%s13 + $0x18] sm:$0xf]
        %v984 = vld [vmem:[%s13 + $0x1c] sm:$0xf]
        %v985 = vld [vmem:[%s13 + $0x20] sm:$0xf]
        %v986 = vld [vmem:[%s13 + $0x24] sm:$0xf]
        %v987 = vld [vmem:[%s13 + $0x28] sm:$0xf]
        %v988 = vld [vmem:[%s13 + $0x2c] sm:$0xf]
        %v989 = vld [vmem:[%s13 + $0x30] sm:$0xf]
        %v990 = vld [vmem:[%s13 + $0x34] sm:$0xf]
        %v991 = vld [vmem:[%s13 + $0x38] sm:$0xf]
        %v992 = vld [vmem:[%s13 + $0x3c] sm:$0xf]
        %v993 = vld [vmem:[%s13 + $0x40] sm:$0xf]
        %v994 = vld [vmem:[%s13 + $0x44] sm:$0xf]
        %v995 = vld [vmem:[%s13 + $0x48] sm:$0xf]
        %v996 = vld [vmem:[%s13 + $0x4c] sm:$0xf]
        %v997 = vld [vmem:[%s13 + $0x50] sm:$0xf]
        %v998 = vld [vmem:[%s13 + $0x54] sm:$0xf]
        %v999 = vld [vmem:[%s13 + $0x58] sm:$0xf]
        %v1000 = vld [vmem:[%s13 + $0x5c] sm:$0xf]
        %v1001 = vld [vmem:[%s13 + $0x60] sm:$0xf]
        %v1002 = vld [vmem:[%s13 + $0x64] sm:$0xf]
        %v1003 = vld [vmem:[%s13 + $0x68] sm:$0xf]
        %v1004 = vld [vmem:[%s13 + $0x6c] sm:$0xf]
        %v1005 = vld [vmem:[%s13 + $0x70] sm:$0xf]
        %v1006 = vld [vmem:[%s13 + $0x74] sm:$0xf]
        %v1007 = vld [vmem:[%s13 + $0x78] sm:$0xf]
        %v1008 = vld [vmem:[%s13 + $0x7c] sm:$0xf]
        %v1009 = vld [vmem:[%s13 + $0x80] sm:$0xf]
        %v1010 = vld [vmem:[%s13 + $0x84] sm:$0xf]
        %v1011 = vld [vmem:[%s13 + $0x88] sm:$0xf]
        %v1012 = vld [vmem:[%s13 + $0x8c] sm:$0xf]
        %v1013 = vld [vmem:[%s13 + $0x90] sm:$0xf]
        %v1014 = vld [vmem:[%s13 + $0x94] sm:$0xf]
        %v1015 = vld [vmem:[%s13 + $0x98] sm:$0xf]
        %v1016 = vld [vmem:[%s13 + $0x9c] sm:$0xf]
        %v1017 = vld [vmem:[%s13 + $0xa0] sm:$0xf]
        %v1018 = vld [vmem:[%s13 + $0xa4] sm:$0xf]
        %v1019 = vld [vmem:[%s13 + $0xa8] sm:$0xf]
        %v1020 = vld [vmem:[%s13 + $0xac] sm:$0xf]
        %v1021 = vld [vmem:[%s13 + $0xb0] sm:$0xf]
        %v1022 = vld [vmem:[%s13 + $0xb4] sm:$0xf]
        %v1023 = vld [vmem:[%s13 + $0xb8] sm:$0xf]
        %v1024 = vld [vmem:[%s13 + $0xbc] sm:$0xf]
        %v1073 = vunpack.c.l.b16 %v977
        %v1074 = vunpack.c.l.b16 %v978
        %v1075 = vunpack.c.l.b16 %v979
        %v1076 = vunpack.c.l.b16 %v980
        %v1077 = vunpack.c.l.b16 %v981
        %v1078 = vunpack.c.l.b16 %v982
        %v1079 = vunpack.c.l.b16 %v983
        %v1080 = vunpack.c.l.b16 %v984
        %v1081 = vunpack.c.l.b16 %v985
        %v1082 = vunpack.c.l.b16 %v986
        %v1083 = vunpack.c.l.b16 %v987
        %v1084 = vunpack.c.l.b16 %v988
        %v1085 = vunpack.c.l.b16 %v989
        %v1086 = vunpack.c.l.b16 %v990
        %v1087 = vunpack.c.l.b16 %v991
        %v1088 = vunpack.c.l.b16 %v992
        %v1089 = vunpack.c.l.b16 %v993
        %v1090 = vunpack.c.l.b16 %v994
        %v1091 = vunpack.c.l.b16 %v995
        %v1092 = vunpack.c.l.b16 %v996
        %v1093 = vunpack.c.l.b16 %v997
        %v1094 = vunpack.c.l.b16 %v998
        %v1095 = vunpack.c.l.b16 %v999
        %v1096 = vunpack.c.l.b16 %v1000
        %v1097 = vunpack.c.l.b16 %v1001
        %v1098 = vunpack.c.l.b16 %v1002
        %v1099 = vunpack.c.l.b16 %v1003
        %v1100 = vunpack.c.l.b16 %v1004
        %v1101 = vunpack.c.l.b16 %v1005
        %v1102 = vunpack.c.l.b16 %v1006
        %v1103 = vunpack.c.l.b16 %v1007
        %v1104 = vunpack.c.l.b16 %v1008
        %v1105 = vunpack.c.l.b16 %v1009
        %v1106 = vunpack.c.l.b16 %v1010
        %v1107 = vunpack.c.l.b16 %v1011
        %v1108 = vunpack.c.l.b16 %v1012
        %v1109 = vunpack.c.l.b16 %v1013
        %v1110 = vunpack.c.l.b16 %v1014
        %v1111 = vunpack.c.l.b16 %v1015
        %v1112 = vunpack.c.l.b16 %v1016
        %v1113 = vunpack.c.l.b16 %v1017
        %v1114 = vunpack.c.l.b16 %v1018
        %v1115 = vunpack.c.l.b16 %v1019
        %v1116 = vunpack.c.l.b16 %v1020
        %v1117 = vunpack.c.l.b16 %v1021
        %v1118 = vunpack.c.l.b16 %v1022
        %v1119 = vunpack.c.l.b16 %v1023
        %v1120 = vunpack.c.l.b16 %v1024
        %v1121 = vpack.c.b16 %v1074, %v1073
        %v1122 = vpack.c.b16 %v1076, %v1075
        %v1123 = vpack.c.b16 %v1078, %v1077
        %v1124 = vpack.c.b16 %v1080, %v1079
        %v1125 = vpack.c.b16 %v1082, %v1081
        %v1126 = vpack.c.b16 %v1084, %v1083
        %v1127 = vpack.c.b16 %v1086, %v1085
        %v1128 = vpack.c.b16 %v1088, %v1087
        %v1129 = vpack.c.b16 %v1090, %v1089
        %v1130 = vpack.c.b16 %v1092, %v1091
        %v1131 = vpack.c.b16 %v1094, %v1093
        %v1132 = vpack.c.b16 %v1096, %v1095
        %v1133 = vpack.c.b16 %v1098, %v1097
        %v1134 = vpack.c.b16 %v1100, %v1099
        %v1135 = vpack.c.b16 %v1102, %v1101
        %v1136 = vpack.c.b16 %v1104, %v1103
        %v1137 = vpack.c.b16 %v1106, %v1105
        %v1138 = vpack.c.b16 %v1108, %v1107
        %v1139 = vpack.c.b16 %v1110, %v1109
        %v1140 = vpack.c.b16 %v1112, %v1111
        %v1141 = vpack.c.b16 %v1114, %v1113
        %v1142 = vpack.c.b16 %v1116, %v1115
        %v1143 = vpack.c.b16 %v1118, %v1117
        %v1144 = vpack.c.b16 %v1120, %v1119
        %1169 = vmatprep.subr.bf16.mxu0 0
        %1170 = vmatpush1.bf16.msra.mxu0 %v1128
        %1171 = vmatprep.subr.bf16.mxu0 0
        %1172 = vmatpush1.bf16.msra.mxu0 %v1127
        %1173 = vmatprep.subr.bf16.mxu0 0
        %1174 = vmatpush1.bf16.msra.mxu0 %v1126
        %1175 = vmatprep.subr.bf16.mxu0 0
        %1176 = vmatpush1.bf16.msra.mxu0 %v1125
        %1177 = vmatprep.subr.bf16.mxu0 0
        %1178 = vmatpush1.bf16.msra.mxu0 %v1124
        %1179 = vmatprep.subr.bf16.mxu0 0
        %1180 = vmatpush1.bf16.msra.mxu0 %v1123
        %1181 = vmatprep.subr.bf16.mxu0 0
        %1182 = vmatpush1.bf16.msra.mxu0 %v1122
        %1183 = vmatprep.subr.bf16.mxu0 0
        %1184 = vmatpush1.bf16.msra.mxu0 %v1121
        %1185 = vmatprep.subr.bf16.mxu0 0
        %1186 = vmatpush2.bf16.msra.mxu0 %v1136
        %1187 = vmatprep.subr.bf16.mxu0 0
        %1188 = vmatpush2.bf16.msra.mxu0 %v1135
        %1189 = vmatprep.subr.bf16.mxu0 0
        %1190 = vmatpush2.bf16.msra.mxu0 %v1134
        %1191 = vmatprep.subr.bf16.mxu0 0
        %1192 = vmatpush2.bf16.msra.mxu0 %v1133
        %1193 = vmatprep.subr.bf16.mxu0 0
        %1194 = vmatpush2.bf16.msra.mxu0 %v1132
        %1195 = vmatprep.subr.bf16.mxu0 0
        %1196 = vmatpush2.bf16.msra.mxu0 %v1131
        %1197 = vmatprep.subr.bf16.mxu0 0
        %1198 = vmatpush2.bf16.msra.mxu0 %v1130
        %1199 = vmatprep.subr.bf16.mxu0 0
        %1200 = vmatpush2.bf16.msra.mxu0 %v1129
        %1201 = vmatprep.mubr.bf16.mxu0 %v972
        %1202 = vmatmul.mubr.bf16.gmra.mxu0 %v971
        %v1203 = vpop.f32.mrf.mxu0
        %v1204 = vadd.f32 0.0, %v1203
        %v1205 = vpop.f32.mrf.mxu0
        %v1206 = vpop.f32.mrf.mxu0
        %v1207 = vadd.f32 0.0, %v1206
        %v1208 = vpop.f32.mrf.mxu0
        %1209 = vmatprep.mubr.bf16.mxu0 %v975
        %1210 = vmatmul.mubr.bf16.gmra.mxu0 %v974
        %v1211 = vpop.f32.mrf.mxu0
        %v1212 = vadd.f32 0.0, %v1211
        %v1213 = vpop.f32.mrf.mxu0
        %v1214 = vpop.f32.mrf.mxu0
        %v1215 = vadd.f32 0.0, %v1214
        %v1216 = vpop.f32.mrf.mxu0
        %1217 = vdwg.mxu0
        %1218 = vmatprep.subr.bf16.mxu0 0
        %1219 = vmatpush1.bf16.msra.mxu0 %v1144
        %1220 = vmatprep.subr.bf16.mxu0 0
        %1221 = vmatpush1.bf16.msra.mxu0 %v1143
        %1222 = vmatprep.subr.bf16.mxu0 0
        %1223 = vmatpush1.bf16.msra.mxu0 %v1142
        %1224 = vmatprep.subr.bf16.mxu0 0
        %1225 = vmatpush1.bf16.msra.mxu0 %v1141
        %1226 = vmatprep.subr.bf16.mxu0 0
        %1227 = vmatpush1.bf16.msra.mxu0 %v1140
        %1228 = vmatprep.subr.bf16.mxu0 0
        %1229 = vmatpush1.bf16.msra.mxu0 %v1139
        %1230 = vmatprep.subr.bf16.mxu0 0
        %1231 = vmatpush1.bf16.msra.mxu0 %v1138
        %1232 = vmatprep.subr.bf16.mxu0 0
        %1233 = vmatpush1.bf16.msra.mxu0 %v1137
        %1234 = vmatprep.subr.bf16.mxu0 0
        %1235 = vmatpush2.bf16.msra.mxu0 0
        %1236 = vmatprep.subr.bf16.mxu0 0
        %1237 = vmatpush2.bf16.msra.mxu0 0
        %1238 = vmatprep.subr.bf16.mxu0 0
        %1239 = vmatpush2.bf16.msra.mxu0 0
        %1240 = vmatprep.subr.bf16.mxu0 0
        %1241 = vmatpush2.bf16.msra.mxu0 0
        %1242 = vmatprep.subr.bf16.mxu0 0
        %1243 = vmatpush2.bf16.msra.mxu0 0
        %1244 = vmatprep.subr.bf16.mxu0 0
        %1245 = vmatpush2.bf16.msra.mxu0 0
        %1246 = vmatprep.subr.bf16.mxu0 0
        %1247 = vmatpush2.bf16.msra.mxu0 0
        %1248 = vmatprep.subr.bf16.mxu0 0
        %1249 = vmatpush2.bf16.msra.mxu0 0
        %1250 = vmatprep.mubr.bf16.mxu0 0
        %1251 = vmatmul.mubr.bf16.gmra.mxu0 %v973
        %v1252 = vpop.f32.mrf.mxu0
        %v1253 = vadd.f32 %v1204, %v1252
        %v1254 = vpop.f32.mrf.mxu0
        %v1255 = vpop.f32.mrf.mxu0
        %v1256 = vadd.f32 %v1207, %v1255
        %v1257 = vpop.f32.mrf.mxu0
        %1258 = vmatprep.mubr.bf16.mxu0 0
        %1259 = vmatmul.mubr.bf16.gmra.mxu0 %v976
        %v1260 = vpop.f32.mrf.mxu0
        %v1261 = vadd.f32 %v1212, %v1260
        %v1262 = vpop.f32.mrf.mxu0
        %v1263 = vpop.f32.mrf.mxu0
        %v1264 = vadd.f32 %v1215, %v1263
        %v1265 = vpop.f32.mrf.mxu0
        %1266 = vdwg.mxu0
        %s1267 = scalar_lea.vmem %s13, 192
        %v1268 = vld [vmem:[%s1267] sm:$0xf]
        %v1269 = vld [vmem:[%s1267 + $0x4] sm:$0xf]
        %v1270 = vld [vmem:[%s1267 + $0x8] sm:$0xf]
        %v1271 = vld [vmem:[%s1267 + $0xc] sm:$0xf]
        %v1272 = vld [vmem:[%s1267 + $0x10] sm:$0xf]
        %v1273 = vld [vmem:[%s1267 + $0x14] sm:$0xf]
        %v1274 = vld [vmem:[%s1267 + $0x18] sm:$0xf]
        %v1275 = vld [vmem:[%s1267 + $0x1c] sm:$0xf]
        %v1276 = vld [vmem:[%s1267 + $0x20] sm:$0xf]
        %v1277 = vld [vmem:[%s1267 + $0x24] sm:$0xf]
        %v1278 = vld [vmem:[%s1267 + $0x28] sm:$0xf]
        %v1279 = vld [vmem:[%s1267 + $0x2c] sm:$0xf]
        %v1280 = vld [vmem:[%s1267 + $0x30] sm:$0xf]
        %v1281 = vld [vmem:[%s1267 + $0x34] sm:$0xf]
        %v1282 = vld [vmem:[%s1267 + $0x38] sm:$0xf]
        %v1283 = vld [vmem:[%s1267 + $0x3c] sm:$0xf]
        %v1284 = vld [vmem:[%s1267 + $0x40] sm:$0xf]
        %v1285 = vld [vmem:[%s1267 + $0x44] sm:$0xf]
        %v1286 = vld [vmem:[%s1267 + $0x48] sm:$0xf]
        %v1287 = vld [vmem:[%s1267 + $0x4c] sm:$0xf]
        %v1288 = vld [vmem:[%s1267 + $0x50] sm:$0xf]
        %v1289 = vld [vmem:[%s1267 + $0x54] sm:$0xf]
        %v1290 = vld [vmem:[%s1267 + $0x58] sm:$0xf]
        %v1291 = vld [vmem:[%s1267 + $0x5c] sm:$0xf]
        %v1292 = vld [vmem:[%s1267 + $0x60] sm:$0xf]
        %v1293 = vld [vmem:[%s1267 + $0x64] sm:$0xf]
        %v1294 = vld [vmem:[%s1267 + $0x68] sm:$0xf]
        %v1295 = vld [vmem:[%s1267 + $0x6c] sm:$0xf]
        %v1296 = vld [vmem:[%s1267 + $0x70] sm:$0xf]
        %v1297 = vld [vmem:[%s1267 + $0x74] sm:$0xf]
        %v1298 = vld [vmem:[%s1267 + $0x78] sm:$0xf]
        %v1299 = vld [vmem:[%s1267 + $0x7c] sm:$0xf]
        %v1300 = vld [vmem:[%s1267 + $0x80] sm:$0xf]
        %v1301 = vld [vmem:[%s1267 + $0x84] sm:$0xf]
        %v1302 = vld [vmem:[%s1267 + $0x88] sm:$0xf]
        %v1303 = vld [vmem:[%s1267 + $0x8c] sm:$0xf]
        %v1304 = vld [vmem:[%s1267 + $0x90] sm:$0xf]
        %v1305 = vld [vmem:[%s1267 + $0x94] sm:$0xf]
        %v1306 = vld [vmem:[%s1267 + $0x98] sm:$0xf]
        %v1307 = vld [vmem:[%s1267 + $0x9c] sm:$0xf]
        %v1308 = vld [vmem:[%s1267 + $0xa0] sm:$0xf]
        %v1309 = vld [vmem:[%s1267 + $0xa4] sm:$0xf]
        %v1310 = vld [vmem:[%s1267 + $0xa8] sm:$0xf]
        %v1311 = vld [vmem:[%s1267 + $0xac] sm:$0xf]
        %v1312 = vld [vmem:[%s1267 + $0xb0] sm:$0xf]
        %v1313 = vld [vmem:[%s1267 + $0xb4] sm:$0xf]
        %v1314 = vld [vmem:[%s1267 + $0xb8] sm:$0xf]
        %v1315 = vld [vmem:[%s1267 + $0xbc] sm:$0xf]
        %v1364 = vunpack.c.l.b16 %v1268
        %v1365 = vunpack.c.l.b16 %v1269
        %v1366 = vunpack.c.l.b16 %v1270
        %v1367 = vunpack.c.l.b16 %v1271
        %v1368 = vunpack.c.l.b16 %v1272
        %v1369 = vunpack.c.l.b16 %v1273
        %v1370 = vunpack.c.l.b16 %v1274
        %v1371 = vunpack.c.l.b16 %v1275
        %v1372 = vunpack.c.l.b16 %v1276
        %v1373 = vunpack.c.l.b16 %v1277
        %v1374 = vunpack.c.l.b16 %v1278
        %v1375 = vunpack.c.l.b16 %v1279
        %v1376 = vunpack.c.l.b16 %v1280
        %v1377 = vunpack.c.l.b16 %v1281
        %v1378 = vunpack.c.l.b16 %v1282
        %v1379 = vunpack.c.l.b16 %v1283
        %v1380 = vunpack.c.l.b16 %v1284
        %v1381 = vunpack.c.l.b16 %v1285
        %v1382 = vunpack.c.l.b16 %v1286
        %v1383 = vunpack.c.l.b16 %v1287
        %v1384 = vunpack.c.l.b16 %v1288
        %v1385 = vunpack.c.l.b16 %v1289
        %v1386 = vunpack.c.l.b16 %v1290
        %v1387 = vunpack.c.l.b16 %v1291
        %v1388 = vunpack.c.l.b16 %v1292
        %v1389 = vunpack.c.l.b16 %v1293
        %v1390 = vunpack.c.l.b16 %v1294
        %v1391 = vunpack.c.l.b16 %v1295
        %v1392 = vunpack.c.l.b16 %v1296
        %v1393 = vunpack.c.l.b16 %v1297
        %v1394 = vunpack.c.l.b16 %v1298
        %v1395 = vunpack.c.l.b16 %v1299
        %v1396 = vunpack.c.l.b16 %v1300
        %v1397 = vunpack.c.l.b16 %v1301
        %v1398 = vunpack.c.l.b16 %v1302
        %v1399 = vunpack.c.l.b16 %v1303
        %v1400 = vunpack.c.l.b16 %v1304
        %v1401 = vunpack.c.l.b16 %v1305
        %v1402 = vunpack.c.l.b16 %v1306
        %v1403 = vunpack.c.l.b16 %v1307
        %v1404 = vunpack.c.l.b16 %v1308
        %v1405 = vunpack.c.l.b16 %v1309
        %v1406 = vunpack.c.l.b16 %v1310
        %v1407 = vunpack.c.l.b16 %v1311
        %v1408 = vunpack.c.l.b16 %v1312
        %v1409 = vunpack.c.l.b16 %v1313
        %v1410 = vunpack.c.l.b16 %v1314
        %v1411 = vunpack.c.l.b16 %v1315
        %v1412 = vpack.c.b16 %v1365, %v1364
        %v1413 = vpack.c.b16 %v1367, %v1366
        %v1414 = vpack.c.b16 %v1369, %v1368
        %v1415 = vpack.c.b16 %v1371, %v1370
        %v1416 = vpack.c.b16 %v1373, %v1372
        %v1417 = vpack.c.b16 %v1375, %v1374
        %v1418 = vpack.c.b16 %v1377, %v1376
        %v1419 = vpack.c.b16 %v1379, %v1378
        %v1420 = vpack.c.b16 %v1381, %v1380
        %v1421 = vpack.c.b16 %v1383, %v1382
        %v1422 = vpack.c.b16 %v1385, %v1384
        %v1423 = vpack.c.b16 %v1387, %v1386
        %v1424 = vpack.c.b16 %v1389, %v1388
        %v1425 = vpack.c.b16 %v1391, %v1390
        %v1426 = vpack.c.b16 %v1393, %v1392
        %v1427 = vpack.c.b16 %v1395, %v1394
        %v1428 = vpack.c.b16 %v1397, %v1396
        %v1429 = vpack.c.b16 %v1399, %v1398
        %v1430 = vpack.c.b16 %v1401, %v1400
        %v1431 = vpack.c.b16 %v1403, %v1402
        %v1432 = vpack.c.b16 %v1405, %v1404
        %v1433 = vpack.c.b16 %v1407, %v1406
        %v1434 = vpack.c.b16 %v1409, %v1408
        %v1435 = vpack.c.b16 %v1411, %v1410
        %1460 = vmatprep.subr.bf16.mxu0 0
        %1461 = vmatpush1.bf16.msra.mxu0 %v1419
        %1462 = vmatprep.subr.bf16.mxu0 0
        %1463 = vmatpush1.bf16.msra.mxu0 %v1418
        %1464 = vmatprep.subr.bf16.mxu0 0
        %1465 = vmatpush1.bf16.msra.mxu0 %v1417
        %1466 = vmatprep.subr.bf16.mxu0 0
        %1467 = vmatpush1.bf16.msra.mxu0 %v1416
        %1468 = vmatprep.subr.bf16.mxu0 0
        %1469 = vmatpush1.bf16.msra.mxu0 %v1415
        %1470 = vmatprep.subr.bf16.mxu0 0
        %1471 = vmatpush1.bf16.msra.mxu0 %v1414
        %1472 = vmatprep.subr.bf16.mxu0 0
        %1473 = vmatpush1.bf16.msra.mxu0 %v1413
        %1474 = vmatprep.subr.bf16.mxu0 0
        %1475 = vmatpush1.bf16.msra.mxu0 %v1412
        %1476 = vmatprep.subr.bf16.mxu0 0
        %1477 = vmatpush2.bf16.msra.mxu0 %v1427
        %1478 = vmatprep.subr.bf16.mxu0 0
        %1479 = vmatpush2.bf16.msra.mxu0 %v1426
        %1480 = vmatprep.subr.bf16.mxu0 0
        %1481 = vmatpush2.bf16.msra.mxu0 %v1425
        %1482 = vmatprep.subr.bf16.mxu0 0
        %1483 = vmatpush2.bf16.msra.mxu0 %v1424
        %1484 = vmatprep.subr.bf16.mxu0 0
        %1485 = vmatpush2.bf16.msra.mxu0 %v1423
        %1486 = vmatprep.subr.bf16.mxu0 0
        %1487 = vmatpush2.bf16.msra.mxu0 %v1422
        %1488 = vmatprep.subr.bf16.mxu0 0
        %1489 = vmatpush2.bf16.msra.mxu0 %v1421
        %1490 = vmatprep.subr.bf16.mxu0 0
        %1491 = vmatpush2.bf16.msra.mxu0 %v1420
        %1492 = vmatprep.mubr.bf16.mxu0 %v972
        %1493 = vmatmul.mubr.bf16.gmra.mxu0 %v971
        %v1494 = vpop.f32.mrf.mxu0
        %v1495 = vadd.f32 0.0, %v1494
        %v1496 = vpop.f32.mrf.mxu0
        %v1497 = vpop.f32.mrf.mxu0
        %v1498 = vadd.f32 0.0, %v1497
        %v1499 = vpop.f32.mrf.mxu0
        %1500 = vmatprep.mubr.bf16.mxu0 %v975
        %1501 = vmatmul.mubr.bf16.gmra.mxu0 %v974
        %v1502 = vpop.f32.mrf.mxu0
        %v1503 = vadd.f32 0.0, %v1502
        %v1504 = vpop.f32.mrf.mxu0
        %v1505 = vpop.f32.mrf.mxu0
        %v1506 = vadd.f32 0.0, %v1505
        %v1507 = vpop.f32.mrf.mxu0
        %1508 = vdwg.mxu0
        %1509 = vmatprep.subr.bf16.mxu0 0
        %1510 = vmatpush1.bf16.msra.mxu0 %v1435
        %1511 = vmatprep.subr.bf16.mxu0 0
        %1512 = vmatpush1.bf16.msra.mxu0 %v1434
        %1513 = vmatprep.subr.bf16.mxu0 0
        %1514 = vmatpush1.bf16.msra.mxu0 %v1433
        %1515 = vmatprep.subr.bf16.mxu0 0
        %1516 = vmatpush1.bf16.msra.mxu0 %v1432
        %1517 = vmatprep.subr.bf16.mxu0 0
        %1518 = vmatpush1.bf16.msra.mxu0 %v1431
        %1519 = vmatprep.subr.bf16.mxu0 0
        %1520 = vmatpush1.bf16.msra.mxu0 %v1430
        %1521 = vmatprep.subr.bf16.mxu0 0
        %1522 = vmatpush1.bf16.msra.mxu0 %v1429
        %1523 = vmatprep.subr.bf16.mxu0 0
        %1524 = vmatpush1.bf16.msra.mxu0 %v1428
        %1525 = vmatprep.subr.bf16.mxu0 0
        %1526 = vmatpush2.bf16.msra.mxu0 0
        %1527 = vmatprep.subr.bf16.mxu0 0
        %1528 = vmatpush2.bf16.msra.mxu0 0
        %1529 = vmatprep.subr.bf16.mxu0 0
        %1530 = vmatpush2.bf16.msra.mxu0 0
        %1531 = vmatprep.subr.bf16.mxu0 0
        %1532 = vmatpush2.bf16.msra.mxu0 0
        %1533 = vmatprep.subr.bf16.mxu0 0
        %1534 = vmatpush2.bf16.msra.mxu0 0
        %1535 = vmatprep.subr.bf16.mxu0 0
        %1536 = vmatpush2.bf16.msra.mxu0 0
        %1537 = vmatprep.subr.bf16.mxu0 0
        %1538 = vmatpush2.bf16.msra.mxu0 0
        %1539 = vmatprep.subr.bf16.mxu0 0
        %1540 = vmatpush2.bf16.msra.mxu0 0
        %1541 = vmatprep.mubr.bf16.mxu0 0
        %1542 = vmatmul.mubr.bf16.gmra.mxu0 %v973
        %v1543 = vpop.f32.mrf.mxu0
        %v1544 = vadd.f32 %v1495, %v1543
        %v1545 = vpop.f32.mrf.mxu0
        %v1546 = vpop.f32.mrf.mxu0
        %v1547 = vadd.f32 %v1498, %v1546
        %v1548 = vpop.f32.mrf.mxu0
        %1549 = vmatprep.mubr.bf16.mxu0 0
        %1550 = vmatmul.mubr.bf16.gmra.mxu0 %v976
        %v1551 = vpop.f32.mrf.mxu0
        %v1552 = vadd.f32 %v1503, %v1551
        %v1553 = vpop.f32.mrf.mxu0
        %v1554 = vpop.f32.mrf.mxu0
        %v1555 = vadd.f32 %v1506, %v1554
        %v1556 = vpop.f32.mrf.mxu0
        %1557 = vdwg.mxu0
        %v1558 = vmax.f32 %v1253, %v1544
        %v1559 = vmax.f32 %v1256, %v1547
        %v1560 = vmax.f32 %v1261, %v1552
        %v1561 = vmax.f32 %v1264, %v1555
        %s1562 = scalar_lea.vmem %s13, 384
        %v1563 = vld [vmem:[%s1562] sm:$0xf]
        %v1564 = vld [vmem:[%s1562 + $0x4] sm:$0xf]
        %v1565 = vld [vmem:[%s1562 + $0x8] sm:$0xf]
        %v1566 = vld [vmem:[%s1562 + $0xc] sm:$0xf]
        %v1567 = vld [vmem:[%s1562 + $0x10] sm:$0xf]
        %v1568 = vld [vmem:[%s1562 + $0x14] sm:$0xf]
        %v1569 = vld [vmem:[%s1562 + $0x18] sm:$0xf]
        %v1570 = vld [vmem:[%s1562 + $0x1c] sm:$0xf]
        %v1571 = vld [vmem:[%s1562 + $0x20] sm:$0xf]
        %v1572 = vld [vmem:[%s1562 + $0x24] sm:$0xf]
        %v1573 = vld [vmem:[%s1562 + $0x28] sm:$0xf]
        %v1574 = vld [vmem:[%s1562 + $0x2c] sm:$0xf]
        %v1575 = vld [vmem:[%s1562 + $0x30] sm:$0xf]
        %v1576 = vld [vmem:[%s1562 + $0x34] sm:$0xf]
        %v1577 = vld [vmem:[%s1562 + $0x38] sm:$0xf]
        %v1578 = vld [vmem:[%s1562 + $0x3c] sm:$0xf]
        %v1579 = vld [vmem:[%s1562 + $0x40] sm:$0xf]
        %v1580 = vld [vmem:[%s1562 + $0x44] sm:$0xf]
        %v1581 = vld [vmem:[%s1562 + $0x48] sm:$0xf]
        %v1582 = vld [vmem:[%s1562 + $0x4c] sm:$0xf]
        %v1583 = vld [vmem:[%s1562 + $0x50] sm:$0xf]
        %v1584 = vld [vmem:[%s1562 + $0x54] sm:$0xf]
        %v1585 = vld [vmem:[%s1562 + $0x58] sm:$0xf]
        %v1586 = vld [vmem:[%s1562 + $0x5c] sm:$0xf]
        %v1587 = vld [vmem:[%s1562 + $0x60] sm:$0xf]
        %v1588 = vld [vmem:[%s1562 + $0x64] sm:$0xf]
        %v1589 = vld [vmem:[%s1562 + $0x68] sm:$0xf]
        %v1590 = vld [vmem:[%s1562 + $0x6c] sm:$0xf]
        %v1591 = vld [vmem:[%s1562 + $0x70] sm:$0xf]
        %v1592 = vld [vmem:[%s1562 + $0x74] sm:$0xf]
        %v1593 = vld [vmem:[%s1562 + $0x78] sm:$0xf]
        %v1594 = vld [vmem:[%s1562 + $0x7c] sm:$0xf]
        %v1595 = vld [vmem:[%s1562 + $0x80] sm:$0xf]
        %v1596 = vld [vmem:[%s1562 + $0x84] sm:$0xf]
        %v1597 = vld [vmem:[%s1562 + $0x88] sm:$0xf]
        %v1598 = vld [vmem:[%s1562 + $0x8c] sm:$0xf]
        %v1599 = vld [vmem:[%s1562 + $0x90] sm:$0xf]
        %v1600 = vld [vmem:[%s1562 + $0x94] sm:$0xf]
        %v1601 = vld [vmem:[%s1562 + $0x98] sm:$0xf]
        %v1602 = vld [vmem:[%s1562 + $0x9c] sm:$0xf]
        %v1603 = vld [vmem:[%s1562 + $0xa0] sm:$0xf]
        %v1604 = vld [vmem:[%s1562 + $0xa4] sm:$0xf]
        %v1605 = vld [vmem:[%s1562 + $0xa8] sm:$0xf]
        %v1606 = vld [vmem:[%s1562 + $0xac] sm:$0xf]
        %v1607 = vld [vmem:[%s1562 + $0xb0] sm:$0xf]
        %v1608 = vld [vmem:[%s1562 + $0xb4] sm:$0xf]
        %v1609 = vld [vmem:[%s1562 + $0xb8] sm:$0xf]
        %v1610 = vld [vmem:[%s1562 + $0xbc] sm:$0xf]
        %v1659 = vunpack.c.l.b16 %v1563
        %v1660 = vunpack.c.l.b16 %v1564
        %v1661 = vunpack.c.l.b16 %v1565
        %v1662 = vunpack.c.l.b16 %v1566
        %v1663 = vunpack.c.l.b16 %v1567
        %v1664 = vunpack.c.l.b16 %v1568
        %v1665 = vunpack.c.l.b16 %v1569
        %v1666 = vunpack.c.l.b16 %v1570
        %v1667 = vunpack.c.l.b16 %v1571
        %v1668 = vunpack.c.l.b16 %v1572
        %v1669 = vunpack.c.l.b16 %v1573
        %v1670 = vunpack.c.l.b16 %v1574
        %v1671 = vunpack.c.l.b16 %v1575
        %v1672 = vunpack.c.l.b16 %v1576
        %v1673 = vunpack.c.l.b16 %v1577
        %v1674 = vunpack.c.l.b16 %v1578
        %v1675 = vunpack.c.l.b16 %v1579
        %v1676 = vunpack.c.l.b16 %v1580
        %v1677 = vunpack.c.l.b16 %v1581
        %v1678 = vunpack.c.l.b16 %v1582
        %v1679 = vunpack.c.l.b16 %v1583
        %v1680 = vunpack.c.l.b16 %v1584
        %v1681 = vunpack.c.l.b16 %v1585
        %v1682 = vunpack.c.l.b16 %v1586
        %v1683 = vunpack.c.l.b16 %v1587
        %v1684 = vunpack.c.l.b16 %v1588
        %v1685 = vunpack.c.l.b16 %v1589
        %v1686 = vunpack.c.l.b16 %v1590
        %v1687 = vunpack.c.l.b16 %v1591
        %v1688 = vunpack.c.l.b16 %v1592
        %v1689 = vunpack.c.l.b16 %v1593
        %v1690 = vunpack.c.l.b16 %v1594
        %v1691 = vunpack.c.l.b16 %v1595
        %v1692 = vunpack.c.l.b16 %v1596
        %v1693 = vunpack.c.l.b16 %v1597
        %v1694 = vunpack.c.l.b16 %v1598
        %v1695 = vunpack.c.l.b16 %v1599
        %v1696 = vunpack.c.l.b16 %v1600
        %v1697 = vunpack.c.l.b16 %v1601
        %v1698 = vunpack.c.l.b16 %v1602
        %v1699 = vunpack.c.l.b16 %v1603
        %v1700 = vunpack.c.l.b16 %v1604
        %v1701 = vunpack.c.l.b16 %v1605
        %v1702 = vunpack.c.l.b16 %v1606
        %v1703 = vunpack.c.l.b16 %v1607
        %v1704 = vunpack.c.l.b16 %v1608
        %v1705 = vunpack.c.l.b16 %v1609
        %v1706 = vunpack.c.l.b16 %v1610
        %v1707 = vpack.c.b16 %v1660, %v1659
        %v1708 = vpack.c.b16 %v1662, %v1661
        %v1709 = vpack.c.b16 %v1664, %v1663
        %v1710 = vpack.c.b16 %v1666, %v1665
        %v1711 = vpack.c.b16 %v1668, %v1667
        %v1712 = vpack.c.b16 %v1670, %v1669
        %v1713 = vpack.c.b16 %v1672, %v1671
        %v1714 = vpack.c.b16 %v1674, %v1673
        %v1715 = vpack.c.b16 %v1676, %v1675
        %v1716 = vpack.c.b16 %v1678, %v1677
        %v1717 = vpack.c.b16 %v1680, %v1679
        %v1718 = vpack.c.b16 %v1682, %v1681
        %v1719 = vpack.c.b16 %v1684, %v1683
        %v1720 = vpack.c.b16 %v1686, %v1685
        %v1721 = vpack.c.b16 %v1688, %v1687
        %v1722 = vpack.c.b16 %v1690, %v1689
        %v1723 = vpack.c.b16 %v1692, %v1691
        %v1724 = vpack.c.b16 %v1694, %v1693
        %v1725 = vpack.c.b16 %v1696, %v1695
        %v1726 = vpack.c.b16 %v1698, %v1697
        %v1727 = vpack.c.b16 %v1700, %v1699
        %v1728 = vpack.c.b16 %v1702, %v1701
        %v1729 = vpack.c.b16 %v1704, %v1703
        %v1730 = vpack.c.b16 %v1706, %v1705
        %1755 = vmatprep.subr.bf16.mxu0 0
        %1756 = vmatpush1.bf16.msra.mxu0 %v1714
        %1757 = vmatprep.subr.bf16.mxu0 0
        %1758 = vmatpush1.bf16.msra.mxu0 %v1713
        %1759 = vmatprep.subr.bf16.mxu0 0
        %1760 = vmatpush1.bf16.msra.mxu0 %v1712
        %1761 = vmatprep.subr.bf16.mxu0 0
        %1762 = vmatpush1.bf16.msra.mxu0 %v1711
        %1763 = vmatprep.subr.bf16.mxu0 0
        %1764 = vmatpush1.bf16.msra.mxu0 %v1710
        %1765 = vmatprep.subr.bf16.mxu0 0
        %1766 = vmatpush1.bf16.msra.mxu0 %v1709
        %1767 = vmatprep.subr.bf16.mxu0 0
        %1768 = vmatpush1.bf16.msra.mxu0 %v1708
        %1769 = vmatprep.subr.bf16.mxu0 0
        %1770 = vmatpush1.bf16.msra.mxu0 %v1707
        %1771 = vmatprep.subr.bf16.mxu0 0
        %1772 = vmatpush2.bf16.msra.mxu0 %v1722
        %1773 = vmatprep.subr.bf16.mxu0 0
        %1774 = vmatpush2.bf16.msra.mxu0 %v1721
        %1775 = vmatprep.subr.bf16.mxu0 0
        %1776 = vmatpush2.bf16.msra.mxu0 %v1720
        %1777 = vmatprep.subr.bf16.mxu0 0
        %1778 = vmatpush2.bf16.msra.mxu0 %v1719
        %1779 = vmatprep.subr.bf16.mxu0 0
        %1780 = vmatpush2.bf16.msra.mxu0 %v1718
        %1781 = vmatprep.subr.bf16.mxu0 0
        %1782 = vmatpush2.bf16.msra.mxu0 %v1717
        %1783 = vmatprep.subr.bf16.mxu0 0
        %1784 = vmatpush2.bf16.msra.mxu0 %v1716
        %1785 = vmatprep.subr.bf16.mxu0 0
        %1786 = vmatpush2.bf16.msra.mxu0 %v1715
        %1787 = vmatprep.mubr.bf16.mxu0 %v972
        %1788 = vmatmul.mubr.bf16.gmra.mxu0 %v971
        %v1789 = vpop.f32.mrf.mxu0
        %v1790 = vadd.f32 0.0, %v1789
        %v1791 = vpop.f32.mrf.mxu0
        %v1792 = vpop.f32.mrf.mxu0
        %v1793 = vadd.f32 0.0, %v1792
        %v1794 = vpop.f32.mrf.mxu0
        %1795 = vmatprep.mubr.bf16.mxu0 %v975
        %1796 = vmatmul.mubr.bf16.gmra.mxu0 %v974
        %v1797 = vpop.f32.mrf.mxu0
        %v1798 = vadd.f32 0.0, %v1797
        %v1799 = vpop.f32.mrf.mxu0
        %v1800 = vpop.f32.mrf.mxu0
        %v1801 = vadd.f32 0.0, %v1800
        %v1802 = vpop.f32.mrf.mxu0
        %1803 = vdwg.mxu0
        %1804 = vmatprep.subr.bf16.mxu0 0
        %1805 = vmatpush1.bf16.msra.mxu0 %v1730
        %1806 = vmatprep.subr.bf16.mxu0 0
        %1807 = vmatpush1.bf16.msra.mxu0 %v1729
        %1808 = vmatprep.subr.bf16.mxu0 0
        %1809 = vmatpush1.bf16.msra.mxu0 %v1728
        %1810 = vmatprep.subr.bf16.mxu0 0
        %1811 = vmatpush1.bf16.msra.mxu0 %v1727
        %1812 = vmatprep.subr.bf16.mxu0 0
        %1813 = vmatpush1.bf16.msra.mxu0 %v1726
        %1814 = vmatprep.subr.bf16.mxu0 0
        %1815 = vmatpush1.bf16.msra.mxu0 %v1725
        %1816 = vmatprep.subr.bf16.mxu0 0
        %1817 = vmatpush1.bf16.msra.mxu0 %v1724
        %1818 = vmatprep.subr.bf16.mxu0 0
        %1819 = vmatpush1.bf16.msra.mxu0 %v1723
        %1820 = vmatprep.subr.bf16.mxu0 0
        %1821 = vmatpush2.bf16.msra.mxu0 0
        %1822 = vmatprep.subr.bf16.mxu0 0
        %1823 = vmatpush2.bf16.msra.mxu0 0
        %1824 = vmatprep.subr.bf16.mxu0 0
        %1825 = vmatpush2.bf16.msra.mxu0 0
        %1826 = vmatprep.subr.bf16.mxu0 0
        %1827 = vmatpush2.bf16.msra.mxu0 0
        %1828 = vmatprep.subr.bf16.mxu0 0
        %1829 = vmatpush2.bf16.msra.mxu0 0
        %1830 = vmatprep.subr.bf16.mxu0 0
        %1831 = vmatpush2.bf16.msra.mxu0 0
        %1832 = vmatprep.subr.bf16.mxu0 0
        %1833 = vmatpush2.bf16.msra.mxu0 0
        %1834 = vmatprep.subr.bf16.mxu0 0
        %1835 = vmatpush2.bf16.msra.mxu0 0
        %1836 = vmatprep.mubr.bf16.mxu0 0
        %1837 = vmatmul.mubr.bf16.gmra.mxu0 %v973
        %v1838 = vpop.f32.mrf.mxu0
        %v1839 = vadd.f32 %v1790, %v1838
        %v1840 = vpop.f32.mrf.mxu0
        %v1841 = vpop.f32.mrf.mxu0
        %v1842 = vadd.f32 %v1793, %v1841
        %v1843 = vpop.f32.mrf.mxu0
        %1844 = vmatprep.mubr.bf16.mxu0 0
        %1845 = vmatmul.mubr.bf16.gmra.mxu0 %v976
        %v1846 = vpop.f32.mrf.mxu0
        %v1847 = vadd.f32 %v1798, %v1846
        %v1848 = vpop.f32.mrf.mxu0
        %v1849 = vpop.f32.mrf.mxu0
        %v1850 = vadd.f32 %v1801, %v1849
        %v1851 = vpop.f32.mrf.mxu0
        %1852 = vdwg.mxu0
        %v1853 = vmax.f32 %v1558, %v1839
        %v1854 = vmax.f32 %v1559, %v1842
        %v1855 = vmax.f32 %v1560, %v1847
        %v1856 = vmax.f32 %v1561, %v1850
        %s1857 = scalar_lea.vmem %s13, 576
        %v1858 = vld [vmem:[%s1857] sm:$0xf]
        %v1859 = vld [vmem:[%s1857 + $0x4] sm:$0xf]
        %v1860 = vld [vmem:[%s1857 + $0x8] sm:$0xf]
        %v1861 = vld [vmem:[%s1857 + $0xc] sm:$0xf]
        %v1862 = vld [vmem:[%s1857 + $0x10] sm:$0xf]
        %v1863 = vld [vmem:[%s1857 + $0x14] sm:$0xf]
        %v1864 = vld [vmem:[%s1857 + $0x18] sm:$0xf]
        %v1865 = vld [vmem:[%s1857 + $0x1c] sm:$0xf]
        %v1866 = vld [vmem:[%s1857 + $0x20] sm:$0xf]
        %v1867 = vld [vmem:[%s1857 + $0x24] sm:$0xf]
        %v1868 = vld [vmem:[%s1857 + $0x28] sm:$0xf]
        %v1869 = vld [vmem:[%s1857 + $0x2c] sm:$0xf]
        %v1870 = vld [vmem:[%s1857 + $0x30] sm:$0xf]
        %v1871 = vld [vmem:[%s1857 + $0x34] sm:$0xf]
        %v1872 = vld [vmem:[%s1857 + $0x38] sm:$0xf]
        %v1873 = vld [vmem:[%s1857 + $0x3c] sm:$0xf]
        %v1874 = vld [vmem:[%s1857 + $0x40] sm:$0xf]
        %v1875 = vld [vmem:[%s1857 + $0x44] sm:$0xf]
        %v1876 = vld [vmem:[%s1857 + $0x48] sm:$0xf]
        %v1877 = vld [vmem:[%s1857 + $0x4c] sm:$0xf]
        %v1878 = vld [vmem:[%s1857 + $0x50] sm:$0xf]
        %v1879 = vld [vmem:[%s1857 + $0x54] sm:$0xf]
        %v1880 = vld [vmem:[%s1857 + $0x58] sm:$0xf]
        %v1881 = vld [vmem:[%s1857 + $0x5c] sm:$0xf]
        %v1882 = vld [vmem:[%s1857 + $0x60] sm:$0xf]
        %v1883 = vld [vmem:[%s1857 + $0x64] sm:$0xf]
        %v1884 = vld [vmem:[%s1857 + $0x68] sm:$0xf]
        %v1885 = vld [vmem:[%s1857 + $0x6c] sm:$0xf]
        %v1886 = vld [vmem:[%s1857 + $0x70] sm:$0xf]
        %v1887 = vld [vmem:[%s1857 + $0x74] sm:$0xf]
        %v1888 = vld [vmem:[%s1857 + $0x78] sm:$0xf]
        %v1889 = vld [vmem:[%s1857 + $0x7c] sm:$0xf]
        %v1890 = vld [vmem:[%s1857 + $0x80] sm:$0xf]
        %v1891 = vld [vmem:[%s1857 + $0x84] sm:$0xf]
        %v1892 = vld [vmem:[%s1857 + $0x88] sm:$0xf]
        %v1893 = vld [vmem:[%s1857 + $0x8c] sm:$0xf]
        %v1894 = vld [vmem:[%s1857 + $0x90] sm:$0xf]
        %v1895 = vld [vmem:[%s1857 + $0x94] sm:$0xf]
        %v1896 = vld [vmem:[%s1857 + $0x98] sm:$0xf]
        %v1897 = vld [vmem:[%s1857 + $0x9c] sm:$0xf]
        %v1898 = vld [vmem:[%s1857 + $0xa0] sm:$0xf]
        %v1899 = vld [vmem:[%s1857 + $0xa4] sm:$0xf]
        %v1900 = vld [vmem:[%s1857 + $0xa8] sm:$0xf]
        %v1901 = vld [vmem:[%s1857 + $0xac] sm:$0xf]
        %v1902 = vld [vmem:[%s1857 + $0xb0] sm:$0xf]
        %v1903 = vld [vmem:[%s1857 + $0xb4] sm:$0xf]
        %v1904 = vld [vmem:[%s1857 + $0xb8] sm:$0xf]
        %v1905 = vld [vmem:[%s1857 + $0xbc] sm:$0xf]
        %v1954 = vunpack.c.l.b16 %v1858
        %v1955 = vunpack.c.l.b16 %v1859
        %v1956 = vunpack.c.l.b16 %v1860
        %v1957 = vunpack.c.l.b16 %v1861
        %v1958 = vunpack.c.l.b16 %v1862
        %v1959 = vunpack.c.l.b16 %v1863
        %v1960 = vunpack.c.l.b16 %v1864
        %v1961 = vunpack.c.l.b16 %v1865
        %v1962 = vunpack.c.l.b16 %v1866
        %v1963 = vunpack.c.l.b16 %v1867
        %v1964 = vunpack.c.l.b16 %v1868
        %v1965 = vunpack.c.l.b16 %v1869
        %v1966 = vunpack.c.l.b16 %v1870
        %v1967 = vunpack.c.l.b16 %v1871
        %v1968 = vunpack.c.l.b16 %v1872
        %v1969 = vunpack.c.l.b16 %v1873
        %v1970 = vunpack.c.l.b16 %v1874
        %v1971 = vunpack.c.l.b16 %v1875
        %v1972 = vunpack.c.l.b16 %v1876
        %v1973 = vunpack.c.l.b16 %v1877
        %v1974 = vunpack.c.l.b16 %v1878
        %v1975 = vunpack.c.l.b16 %v1879
        %v1976 = vunpack.c.l.b16 %v1880
        %v1977 = vunpack.c.l.b16 %v1881
        %v1978 = vunpack.c.l.b16 %v1882
        %v1979 = vunpack.c.l.b16 %v1883
        %v1980 = vunpack.c.l.b16 %v1884
        %v1981 = vunpack.c.l.b16 %v1885
        %v1982 = vunpack.c.l.b16 %v1886
        %v1983 = vunpack.c.l.b16 %v1887
        %v1984 = vunpack.c.l.b16 %v1888
        %v1985 = vunpack.c.l.b16 %v1889
        %v1986 = vunpack.c.l.b16 %v1890
        %v1987 = vunpack.c.l.b16 %v1891
        %v1988 = vunpack.c.l.b16 %v1892
        %v1989 = vunpack.c.l.b16 %v1893
        %v1990 = vunpack.c.l.b16 %v1894
        %v1991 = vunpack.c.l.b16 %v1895
        %v1992 = vunpack.c.l.b16 %v1896
        %v1993 = vunpack.c.l.b16 %v1897
        %v1994 = vunpack.c.l.b16 %v1898
        %v1995 = vunpack.c.l.b16 %v1899
        %v1996 = vunpack.c.l.b16 %v1900
        %v1997 = vunpack.c.l.b16 %v1901
        %v1998 = vunpack.c.l.b16 %v1902
        %v1999 = vunpack.c.l.b16 %v1903
        %v2000 = vunpack.c.l.b16 %v1904
        %v2001 = vunpack.c.l.b16 %v1905
        %v2002 = vpack.c.b16 %v1955, %v1954
        %v2003 = vpack.c.b16 %v1957, %v1956
        %v2004 = vpack.c.b16 %v1959, %v1958
        %v2005 = vpack.c.b16 %v1961, %v1960
        %v2006 = vpack.c.b16 %v1963, %v1962
        %v2007 = vpack.c.b16 %v1965, %v1964
        %v2008 = vpack.c.b16 %v1967, %v1966
        %v2009 = vpack.c.b16 %v1969, %v1968
        %v2010 = vpack.c.b16 %v1971, %v1970
        %v2011 = vpack.c.b16 %v1973, %v1972
        %v2012 = vpack.c.b16 %v1975, %v1974
        %v2013 = vpack.c.b16 %v1977, %v1976
        %v2014 = vpack.c.b16 %v1979, %v1978
        %v2015 = vpack.c.b16 %v1981, %v1980
        %v2016 = vpack.c.b16 %v1983, %v1982
        %v2017 = vpack.c.b16 %v1985, %v1984
        %v2018 = vpack.c.b16 %v1987, %v1986
        %v2019 = vpack.c.b16 %v1989, %v1988
        %v2020 = vpack.c.b16 %v1991, %v1990
        %v2021 = vpack.c.b16 %v1993, %v1992
        %v2022 = vpack.c.b16 %v1995, %v1994
        %v2023 = vpack.c.b16 %v1997, %v1996
        %v2024 = vpack.c.b16 %v1999, %v1998
        %v2025 = vpack.c.b16 %v2001, %v2000
        %2050 = vmatprep.subr.bf16.mxu0 0
        %2051 = vmatpush1.bf16.msra.mxu0 %v2009
        %2052 = vmatprep.subr.bf16.mxu0 0
        %2053 = vmatpush1.bf16.msra.mxu0 %v2008
        %2054 = vmatprep.subr.bf16.mxu0 0
        %2055 = vmatpush1.bf16.msra.mxu0 %v2007
        %2056 = vmatprep.subr.bf16.mxu0 0
        %2057 = vmatpush1.bf16.msra.mxu0 %v2006
        %2058 = vmatprep.subr.bf16.mxu0 0
        %2059 = vmatpush1.bf16.msra.mxu0 %v2005
        %2060 = vmatprep.subr.bf16.mxu0 0
        %2061 = vmatpush1.bf16.msra.mxu0 %v2004
        %2062 = vmatprep.subr.bf16.mxu0 0
        %2063 = vmatpush1.bf16.msra.mxu0 %v2003
        %2064 = vmatprep.subr.bf16.mxu0 0
        %2065 = vmatpush1.bf16.msra.mxu0 %v2002
        %2066 = vmatprep.subr.bf16.mxu0 0
        %2067 = vmatpush2.bf16.msra.mxu0 %v2017
        %2068 = vmatprep.subr.bf16.mxu0 0
        %2069 = vmatpush2.bf16.msra.mxu0 %v2016
        %2070 = vmatprep.subr.bf16.mxu0 0
        %2071 = vmatpush2.bf16.msra.mxu0 %v2015
        %2072 = vmatprep.subr.bf16.mxu0 0
        %2073 = vmatpush2.bf16.msra.mxu0 %v2014
        %2074 = vmatprep.subr.bf16.mxu0 0
        %2075 = vmatpush2.bf16.msra.mxu0 %v2013
        %2076 = vmatprep.subr.bf16.mxu0 0
        %2077 = vmatpush2.bf16.msra.mxu0 %v2012
        %2078 = vmatprep.subr.bf16.mxu0 0
        %2079 = vmatpush2.bf16.msra.mxu0 %v2011
        %2080 = vmatprep.subr.bf16.mxu0 0
        %2081 = vmatpush2.bf16.msra.mxu0 %v2010
        %2082 = vmatprep.mubr.bf16.mxu0 %v972
        %2083 = vmatmul.mubr.bf16.gmra.mxu0 %v971
        %v2084 = vpop.f32.mrf.mxu0
        %v2085 = vadd.f32 0.0, %v2084
        %v2086 = vpop.f32.mrf.mxu0
        %v2087 = vpop.f32.mrf.mxu0
        %v2088 = vadd.f32 0.0, %v2087
        %v2089 = vpop.f32.mrf.mxu0
        %2090 = vmatprep.mubr.bf16.mxu0 %v975
        %2091 = vmatmul.mubr.bf16.gmra.mxu0 %v974
        %v2092 = vpop.f32.mrf.mxu0
        %v2093 = vadd.f32 0.0, %v2092
        %v2094 = vpop.f32.mrf.mxu0
        %v2095 = vpop.f32.mrf.mxu0
        %v2096 = vadd.f32 0.0, %v2095
        %v2097 = vpop.f32.mrf.mxu0
        %2098 = vdwg.mxu0
        %2099 = vmatprep.subr.bf16.mxu0 0
        %2100 = vmatpush1.bf16.msra.mxu0 %v2025
        %2101 = vmatprep.subr.bf16.mxu0 0
        %2102 = vmatpush1.bf16.msra.mxu0 %v2024
        %2103 = vmatprep.subr.bf16.mxu0 0
        %2104 = vmatpush1.bf16.msra.mxu0 %v2023
        %2105 = vmatprep.subr.bf16.mxu0 0
        %2106 = vmatpush1.bf16.msra.mxu0 %v2022
        %2107 = vmatprep.subr.bf16.mxu0 0
        %2108 = vmatpush1.bf16.msra.mxu0 %v2021
        %2109 = vmatprep.subr.bf16.mxu0 0
        %2110 = vmatpush1.bf16.msra.mxu0 %v2020
        %2111 = vmatprep.subr.bf16.mxu0 0
        %2112 = vmatpush1.bf16.msra.mxu0 %v2019
        %2113 = vmatprep.subr.bf16.mxu0 0
        %2114 = vmatpush1.bf16.msra.mxu0 %v2018
        %2115 = vmatprep.subr.bf16.mxu0 0
        %2116 = vmatpush2.bf16.msra.mxu0 0
        %2117 = vmatprep.subr.bf16.mxu0 0
        %2118 = vmatpush2.bf16.msra.mxu0 0
        %2119 = vmatprep.subr.bf16.mxu0 0
        %2120 = vmatpush2.bf16.msra.mxu0 0
        %2121 = vmatprep.subr.bf16.mxu0 0
        %2122 = vmatpush2.bf16.msra.mxu0 0
        %2123 = vmatprep.subr.bf16.mxu0 0
        %2124 = vmatpush2.bf16.msra.mxu0 0
        %2125 = vmatprep.subr.bf16.mxu0 0
        %2126 = vmatpush2.bf16.msra.mxu0 0
        %2127 = vmatprep.subr.bf16.mxu0 0
        %2128 = vmatpush2.bf16.msra.mxu0 0
        %2129 = vmatprep.subr.bf16.mxu0 0
        %2130 = vmatpush2.bf16.msra.mxu0 0
        %2131 = vmatprep.mubr.bf16.mxu0 0
        %2132 = vmatmul.mubr.bf16.gmra.mxu0 %v973
        %v2133 = vpop.f32.mrf.mxu0
        %v2134 = vadd.f32 %v2085, %v2133
        %v2135 = vpop.f32.mrf.mxu0
        %v2136 = vpop.f32.mrf.mxu0
        %v2137 = vadd.f32 %v2088, %v2136
        %v2138 = vpop.f32.mrf.mxu0
        %2139 = vmatprep.mubr.bf16.mxu0 0
        %2140 = vmatmul.mubr.bf16.gmra.mxu0 %v976
        %v2141 = vpop.f32.mrf.mxu0
        %v2142 = vadd.f32 %v2093, %v2141
        %v2143 = vpop.f32.mrf.mxu0
        %v2144 = vpop.f32.mrf.mxu0
        %v2145 = vadd.f32 %v2096, %v2144
        %v2146 = vpop.f32.mrf.mxu0
        %2147 = vdwg.mxu0
        %v2148 = vmax.f32 %v1853, %v2134
        %v2149 = vmax.f32 %v1854, %v2137
        %v2150 = vmax.f32 %v1855, %v2142
        %v2151 = vmax.f32 %v1856, %v2145
        %2152 = vrot.lane.b32.xlu0 %v2148, 12
        %v2153 = vpop.permute.xlu0 %2152
        %2154 = vrot.lane.b32.xlu0 %v2149, 12
        %v2155 = vpop.permute.xlu0 %2154
        %2156 = vrot.lane.b32.xlu0 %v2150, 12
        %v2157 = vpop.permute.xlu0 %2156
        %2158 = vrot.lane.b32.xlu0 %v2151, 12
        %v2159 = vpop.permute.xlu0 %2158
        %2160 = vrot.lane.b32.xlu0 %v2148, 11
        %v2161 = vpop.permute.xlu0 %2160
        %2162 = vrot.lane.b32.xlu0 %v2149, 11
        %v2163 = vpop.permute.xlu0 %2162
        %2164 = vrot.lane.b32.xlu0 %v2150, 11
        %v2165 = vpop.permute.xlu0 %2164
        %2166 = vrot.lane.b32.xlu0 %v2151, 11
        %v2167 = vpop.permute.xlu0 %2166
        %2168 = vrot.lane.b32.xlu0 %v2148, 10
        %v2169 = vpop.permute.xlu0 %2168
        %2170 = vrot.lane.b32.xlu0 %v2149, 10
        %v2171 = vpop.permute.xlu0 %2170
        %2172 = vrot.lane.b32.xlu0 %v2150, 10
        %v2173 = vpop.permute.xlu0 %2172
        %2174 = vrot.lane.b32.xlu0 %v2151, 10
        %v2175 = vpop.permute.xlu0 %2174
        %2176 = vrot.lane.b32.xlu0 %v2148, 1
        %v2177 = vpop.permute.xlu0 %2176
        %2178 = vrot.lane.b32.xlu0 %v2149, 1
        %v2179 = vpop.permute.xlu0 %2178
        %2180 = vrot.lane.b32.xlu0 %v2150, 1
        %v2181 = vpop.permute.xlu0 %2180
        %2182 = vrot.lane.b32.xlu0 %v2151, 1
        %v2183 = vpop.permute.xlu0 %2182
        %2184 = vrot.lane.b32.xlu0 %v2148, 127
        %v2185 = vpop.permute.xlu0 %2184
        %2186 = vrot.lane.b32.xlu0 %v2149, 127
        %v2187 = vpop.permute.xlu0 %2186
        %2188 = vrot.lane.b32.xlu0 %v2150, 127
        %v2189 = vpop.permute.xlu0 %2188
        %2190 = vrot.lane.b32.xlu0 %v2151, 127
        %v2191 = vpop.permute.xlu0 %2190
        %2192 = vrot.lane.b32.xlu0 %v2148, 118
        %v2193 = vpop.permute.xlu0 %2192
        %2194 = vrot.lane.b32.xlu0 %v2149, 118
        %v2195 = vpop.permute.xlu0 %2194
        %2196 = vrot.lane.b32.xlu0 %v2150, 118
        %v2197 = vpop.permute.xlu0 %2196
        %2198 = vrot.lane.b32.xlu0 %v2151, 118
        %v2199 = vpop.permute.xlu0 %2198
        %2200 = vrot.lane.b32.xlu0 %v2148, 117
        %v2201 = vpop.permute.xlu0 %2200
        %2202 = vrot.lane.b32.xlu0 %v2149, 117
        %v2203 = vpop.permute.xlu0 %2202
        %2204 = vrot.lane.b32.xlu0 %v2150, 117
        %v2205 = vpop.permute.xlu0 %2204
        %2206 = vrot.lane.b32.xlu0 %v2151, 117
        %v2207 = vpop.permute.xlu0 %2206
        %2208 = vrot.lane.b32.xlu0 %v2148, 116
        %v2209 = vpop.permute.xlu0 %2208
        %2210 = vrot.lane.b32.xlu0 %v2149, 116
        %v2211 = vpop.permute.xlu0 %2210
        %2212 = vrot.lane.b32.xlu0 %v2150, 116
        %v2213 = vpop.permute.xlu0 %2212
        %2214 = vrot.lane.b32.xlu0 %v2151, 116
        %v2215 = vpop.permute.xlu0 %2214
        %v2216 = vpack.c.bf16 %v2155, %v2153
        %v2217 = vpack.c.bf16 %v2159, %v2157
        %v2218 = vpack.c.bf16 %v2163, %v2161
        %v2219 = vpack.c.bf16 %v2167, %v2165
        %v2220 = vpack.c.bf16 %v2171, %v2169
        %v2221 = vpack.c.bf16 %v2175, %v2173
        %v2222 = vpack.c.bf16 %v2179, %v2177
        %v2223 = vpack.c.bf16 %v2183, %v2181
        %v2224 = vpack.c.bf16 %v2149, %v2148
        %v2225 = vpack.c.bf16 %v2151, %v2150
        %v2226 = vpack.c.bf16 %v2187, %v2185
        %v2227 = vpack.c.bf16 %v2191, %v2189
        %v2228 = vpack.c.bf16 %v2195, %v2193
        %v2229 = vpack.c.bf16 %v2199, %v2197
        %v2230 = vpack.c.bf16 %v2203, %v2201
        %v2231 = vpack.c.bf16 %v2207, %v2205
        %v2232 = vpack.c.bf16 %v2211, %v2209
        %v2233 = vpack.c.bf16 %v2215, %v2213
        %v2234 = vld [vmem:[#allocation4] sm:$0xff]
        %v2235 = vld [vmem:[#allocation4 + $0x8] sm:$0xf]
        %v2236 = vld [vmem:[#allocation4 + $0xc] sm:$0xff]
        %v2237 = vld [vmem:[#allocation4 + $0x14] sm:$0xf]
        %v2238 = vld [vmem:[#allocation12] sm:$0xff]
        %v2239 = vld [vmem:[#allocation12 + $0x8] sm:$0xff]
        %2241 = vset.pattern.permute.xlu0 0
        %2242 = vperm.xlu0 %2241, %v2238
        %v2243 = vpop.permute.xlu0 %2242
        %2246 = vset.pattern.permute.xlu0 0
        %2247 = vperm.xlu0 %2246, %v2239
        %v2248 = vpop.permute.xlu0 %2247
        %v2254 = vunpack.c.l.b16 %v2234
        %v2255 = vunpack.c.h.b16 %v2234
        %v2256 = vunpack.c.l.b16 %v2235
        %v2257 = vunpack.c.l.b16 %v2236
        %v2258 = vunpack.c.h.b16 %v2236
        %v2259 = vunpack.c.l.b16 %v2237
        %v2260 = vpack.c.b16 %v2257, %v2254
        %v2261 = vpack.c.b16 %v2258, %v2255
        %v2262 = vpack.c.b16 %v2259, %v2256
        %vm2265 = vcmask 261120
        %v2267 = vsel %vm2265, %v2262, 0
        %2269 = vmatprep.subr.bf16.mxu0 0
        %2270 = vmatpush1.bf16.msra.mxu0 %v2223
        %2271 = vmatprep.subr.bf16.mxu0 0
        %2272 = vmatpush1.bf16.msra.mxu0 %v2222
        %2273 = vmatprep.subr.bf16.mxu0 0
        %2274 = vmatpush1.bf16.msra.mxu0 %v2221
        %2275 = vmatprep.subr.bf16.mxu0 0
        %2276 = vmatpush1.bf16.msra.mxu0 %v2220
        %2277 = vmatprep.subr.bf16.mxu0 0
        %2278 = vmatpush1.bf16.msra.mxu0 %v2219
        %2279 = vmatprep.subr.bf16.mxu0 0
        %2280 = vmatpush1.bf16.msra.mxu0 %v2218
        %2281 = vmatprep.subr.bf16.mxu0 0
        %2282 = vmatpush1.bf16.msra.mxu0 %v2217
        %2283 = vmatprep.subr.bf16.mxu0 0
        %2284 = vmatpush1.bf16.msra.mxu0 %v2216
        %2285 = vmatprep.subr.bf16.mxu0 0
        %2286 = vmatpush2.bf16.msra.mxu0 %v2231
        %2287 = vmatprep.subr.bf16.mxu0 0
        %2288 = vmatpush2.bf16.msra.mxu0 %v2230
        %2289 = vmatprep.subr.bf16.mxu0 0
        %2290 = vmatpush2.bf16.msra.mxu0 %v2229
        %2291 = vmatprep.subr.bf16.mxu0 0
        %2292 = vmatpush2.bf16.msra.mxu0 %v2228
        %2293 = vmatprep.subr.bf16.mxu0 0
        %2294 = vmatpush2.bf16.msra.mxu0 %v2227
        %2295 = vmatprep.subr.bf16.mxu0 0
        %2296 = vmatpush2.bf16.msra.mxu0 %v2226
        %2297 = vmatprep.subr.bf16.mxu0 0
        %2298 = vmatpush2.bf16.msra.mxu0 %v2225
        %2299 = vmatprep.subr.bf16.mxu0 0
        %2300 = vmatpush2.bf16.msra.mxu0 %v2224
        %2301 = vmatprep.mubr.bf16.mxu0 %v2261
        %2302 = vmatmul.mubr.bf16.gmra.mxu0 %v2260
        %v2303 = vpop.f32.mrf.mxu0
        %v2304 = vadd.f32 %v2243, %v2303
        %v2305 = vpop.f32.mrf.mxu0
        %v2306 = vpop.f32.mrf.mxu0
        %v2307 = vadd.f32 %v2248, %v2306
        %v2308 = vpop.f32.mrf.mxu0
        %2309 = vdwg.mxu0
        %2310 = vmatprep.subr.bf16.mxu0 0
        %2311 = vmatpush1.bf16.msra.mxu0 0
        %2312 = vmatprep.subr.bf16.mxu0 0
        %2313 = vmatpush1.bf16.msra.mxu0 0
        %2314 = vmatprep.subr.bf16.mxu0 0
        %2315 = vmatpush1.bf16.msra.mxu0 0
        %2316 = vmatprep.subr.bf16.mxu0 0
        %2317 = vmatpush1.bf16.msra.mxu0 0
        %2318 = vmatprep.subr.bf16.mxu0 0
        %2319 = vmatpush1.bf16.msra.mxu0 0
        %2320 = vmatprep.subr.bf16.mxu0 0
        %2321 = vmatpush1.bf16.msra.mxu0 0
        %2322 = vmatprep.subr.bf16.mxu0 0
        %2323 = vmatpush1.bf16.msra.mxu0 %v2233
        %2324 = vmatprep.subr.bf16.mxu0 0
        %2325 = vmatpush1.bf16.msra.mxu0 %v2232
        %2326 = vmatprep.subr.bf16.mxu0 0
        %2327 = vmatpush2.bf16.msra.mxu0 0
        %2328 = vmatprep.subr.bf16.mxu0 0
        %2329 = vmatpush2.bf16.msra.mxu0 0
        %2330 = vmatprep.subr.bf16.mxu0 0
        %2331 = vmatpush2.bf16.msra.mxu0 0
        %2332 = vmatprep.subr.bf16.mxu0 0
        %2333 = vmatpush2.bf16.msra.mxu0 0
        %2334 = vmatprep.subr.bf16.mxu0 0
        %2335 = vmatpush2.bf16.msra.mxu0 0
        %2336 = vmatprep.subr.bf16.mxu0 0
        %2337 = vmatpush2.bf16.msra.mxu0 0
        %2338 = vmatprep.subr.bf16.mxu0 0
        %2339 = vmatpush2.bf16.msra.mxu0 0
        %2340 = vmatprep.subr.bf16.mxu0 0
        %2341 = vmatpush2.bf16.msra.mxu0 0
        %2342 = vmatprep.mubr.bf16.mxu0 0
        %2343 = vmatmul.mubr.bf16.gmra.mxu0 %v2267
        %v2344 = vpop.f32.mrf.mxu0
        %v2345 = vadd.f32 %v2304, %v2344
        %v2346 = vpop.f32.mrf.mxu0
        %v2347 = vpop.f32.mrf.mxu0
        %v2348 = vadd.f32 %v2307, %v2347
        %v2349 = vpop.f32.mrf.mxu0
        %2350 = vdwg.mxu0
        %v2351 = vmax.f32 %v2345, 0.0
        %v2352 = vmax.f32 %v2348, 0.0
        %v2353 = vpack.c.bf16 %v2352, %v2351
        %v2354 = vld [vmem:[#allocation16] sm:$0xf]
        %v2355 = vld [vmem:[#allocation16 + $0x4] sm:$0xf]
        %v2356 = vld [vmem:[#allocation16 + $0x8] sm:$0xf]
        %v2357 = vld [vmem:[#allocation16 + $0xc] sm:$0xf]
        %v2358 = vld [vmem:[#allocation16 + $0x10] sm:$0xf]
        %v2359 = vld [vmem:[#allocation16 + $0x14] sm:$0xf]
        %v2360 = vld [vmem:[#allocation16 + $0x18] sm:$0xf]
        %v2361 = vld [vmem:[#allocation16 + $0x1c] sm:$0xf]
        %v2362 = vld [vmem:[#allocation16 + $0x20] sm:$0xf]
        %v2363 = vld [vmem:[#allocation16 + $0x24] sm:$0xf]
        %v2364 = vld [vmem:[#allocation16 + $0x28] sm:$0xf]
        %v2365 = vld [vmem:[#allocation16 + $0x2c] sm:$0xf]
        %v2366 = vld [vmem:[#allocation16 + $0x30] sm:$0xf]
        %v2367 = vld [vmem:[#allocation16 + $0x34] sm:$0xf]
        %v2368 = vld [vmem:[#allocation16 + $0x38] sm:$0xf]
        %v2369 = vld [vmem:[#allocation16 + $0x3c] sm:$0xf]
        %v2386 = vunpack.c.l.b16 %v2354
        %v2387 = vunpack.c.l.b16 %v2355
        %v2388 = vunpack.c.l.b16 %v2356
        %v2389 = vunpack.c.l.b16 %v2357
        %v2390 = vunpack.c.l.b16 %v2358
        %v2391 = vunpack.c.l.b16 %v2359
        %v2392 = vunpack.c.l.b16 %v2360
        %v2393 = vunpack.c.l.b16 %v2361
        %v2394 = vunpack.c.l.b16 %v2362
        %v2395 = vunpack.c.l.b16 %v2363
        %v2396 = vunpack.c.l.b16 %v2364
        %v2397 = vunpack.c.l.b16 %v2365
        %v2398 = vunpack.c.l.b16 %v2366
        %v2399 = vunpack.c.l.b16 %v2367
        %v2400 = vunpack.c.l.b16 %v2368
        %v2401 = vunpack.c.l.b16 %v2369
        %v2402 = vpack.c.b16 %v2387, %v2386
        %v2403 = vpack.c.b16 %v2389, %v2388
        %v2404 = vpack.c.b16 %v2391, %v2390
        %v2405 = vpack.c.b16 %v2393, %v2392
        %v2406 = vpack.c.b16 %v2395, %v2394
        %v2407 = vpack.c.b16 %v2397, %v2396
        %v2408 = vpack.c.b16 %v2399, %v2398
        %v2409 = vpack.c.b16 %v2401, %v2400
        %2418 = vmatprep.subr.bf16.mxu0 0
        %2419 = vmatpush1.bf16.msra.mxu0 %v2409
        %2420 = vmatprep.subr.bf16.mxu0 0
        %2421 = vmatpush1.bf16.msra.mxu0 %v2408
        %2422 = vmatprep.subr.bf16.mxu0 0
        %2423 = vmatpush1.bf16.msra.mxu0 %v2407
        %2424 = vmatprep.subr.bf16.mxu0 0
        %2425 = vmatpush1.bf16.msra.mxu0 %v2406
        %2426 = vmatprep.subr.bf16.mxu0 0
        %2427 = vmatpush1.bf16.msra.mxu0 %v2405
        %2428 = vmatprep.subr.bf16.mxu0 0
        %2429 = vmatpush1.bf16.msra.mxu0 %v2404
        %2430 = vmatprep.subr.bf16.mxu0 0
        %2431 = vmatpush1.bf16.msra.mxu0 %v2403
        %2432 = vmatprep.subr.bf16.mxu0 0
        %2433 = vmatpush1.bf16.msra.mxu0 %v2402
        %2434 = vmatprep.subr.bf16.mxu0 0
        %2435 = vmatpush2.bf16.msra.mxu0 0
        %2436 = vmatprep.subr.bf16.mxu0 0
        %2437 = vmatpush2.bf16.msra.mxu0 0
        %2438 = vmatprep.subr.bf16.mxu0 0
        %2439 = vmatpush2.bf16.msra.mxu0 0
        %2440 = vmatprep.subr.bf16.mxu0 0
        %2441 = vmatpush2.bf16.msra.mxu0 0
        %2442 = vmatprep.subr.bf16.mxu0 0
        %2443 = vmatpush2.bf16.msra.mxu0 0
        %2444 = vmatprep.subr.bf16.mxu0 0
        %2445 = vmatpush2.bf16.msra.mxu0 0
        %2446 = vmatprep.subr.bf16.mxu0 0
        %2447 = vmatpush2.bf16.msra.mxu0 0
        %2448 = vmatprep.subr.bf16.mxu0 0
        %2449 = vmatpush2.bf16.msra.mxu0 0
        %2450 = vmatprep.mubr.bf16.mxu0 0
        %2451 = vmatmul.mubr.bf16.gmra.mxu0 %v2353
        %v2452 = vpop.f32.mrf.mxu0
        %v2453 = vadd.f32 0.0, %v2452
        %v2454 = vpop.f32.mrf.mxu0
        %v2455 = vpop.f32.mrf.mxu0
        %v2456 = vadd.f32 0.0, %v2455
        %v2457 = vpop.f32.mrf.mxu0
        %2458 = vdwg.mxu0
        %s2459 = scalar_lea.vmem [#allocation16], 64
        %v2460 = vld [vmem:[%s2459] sm:$0xf]
        %v2461 = vld [vmem:[%s2459 + $0x4] sm:$0xf]
        %v2462 = vld [vmem:[%s2459 + $0x8] sm:$0xf]
        %v2463 = vld [vmem:[%s2459 + $0xc] sm:$0xf]
        %v2464 = vld [vmem:[%s2459 + $0x10] sm:$0xf]
        %v2465 = vld [vmem:[%s2459 + $0x14] sm:$0xf]
        %v2466 = vld [vmem:[%s2459 + $0x18] sm:$0xf]
        %v2467 = vld [vmem:[%s2459 + $0x1c] sm:$0xf]
        %v2468 = vld [vmem:[%s2459 + $0x20] sm:$0xf]
        %v2469 = vld [vmem:[%s2459 + $0x24] sm:$0xf]
        %v2470 = vld [vmem:[%s2459 + $0x28] sm:$0xf]
        %v2471 = vld [vmem:[%s2459 + $0x2c] sm:$0xf]
        %v2472 = vld [vmem:[%s2459 + $0x30] sm:$0xf]
        %v2473 = vld [vmem:[%s2459 + $0x34] sm:$0xf]
        %v2474 = vld [vmem:[%s2459 + $0x38] sm:$0xf]
        %v2475 = vld [vmem:[%s2459 + $0x3c] sm:$0xf]
        %v2492 = vunpack.c.l.b16 %v2460
        %v2493 = vunpack.c.l.b16 %v2461
        %v2494 = vunpack.c.l.b16 %v2462
        %v2495 = vunpack.c.l.b16 %v2463
        %v2496 = vunpack.c.l.b16 %v2464
        %v2497 = vunpack.c.l.b16 %v2465
        %v2498 = vunpack.c.l.b16 %v2466
        %v2499 = vunpack.c.l.b16 %v2467
        %v2500 = vunpack.c.l.b16 %v2468
        %v2501 = vunpack.c.l.b16 %v2469
        %v2502 = vunpack.c.l.b16 %v2470
        %v2503 = vunpack.c.l.b16 %v2471
        %v2504 = vunpack.c.l.b16 %v2472
        %v2505 = vunpack.c.l.b16 %v2473
        %v2506 = vunpack.c.l.b16 %v2474
        %v2507 = vunpack.c.l.b16 %v2475
        %v2508 = vpack.c.b16 %v2493, %v2492
        %v2509 = vpack.c.b16 %v2495, %v2494
        %v2510 = vpack.c.b16 %v2497, %v2496
        %v2511 = vpack.c.b16 %v2499, %v2498
        %v2512 = vpack.c.b16 %v2501, %v2500
        %v2513 = vpack.c.b16 %v2503, %v2502
        %v2514 = vpack.c.b16 %v2505, %v2504
        %v2515 = vpack.c.b16 %v2507, %v2506
        %2524 = vmatprep.subr.bf16.mxu0 0
        %2525 = vmatpush1.bf16.msra.mxu0 %v2515
        %2526 = vmatprep.subr.bf16.mxu0 0
        %2527 = vmatpush1.bf16.msra.mxu0 %v2514
        %2528 = vmatprep.subr.bf16.mxu0 0
        %2529 = vmatpush1.bf16.msra.mxu0 %v2513
        %2530 = vmatprep.subr.bf16.mxu0 0
        %2531 = vmatpush1.bf16.msra.mxu0 %v2512
        %2532 = vmatprep.subr.bf16.mxu0 0
        %2533 = vmatpush1.bf16.msra.mxu0 %v2511
        %2534 = vmatprep.subr.bf16.mxu0 0
        %2535 = vmatpush1.bf16.msra.mxu0 %v2510
        %2536 = vmatprep.subr.bf16.mxu0 0
        %2537 = vmatpush1.bf16.msra.mxu0 %v2509
        %2538 = vmatprep.subr.bf16.mxu0 0
        %2539 = vmatpush1.bf16.msra.mxu0 %v2508
        %2540 = vmatprep.subr.bf16.mxu0 0
        %2541 = vmatpush2.bf16.msra.mxu0 0
        %2542 = vmatprep.subr.bf16.mxu0 0
        %2543 = vmatpush2.bf16.msra.mxu0 0
        %2544 = vmatprep.subr.bf16.mxu0 0
        %2545 = vmatpush2.bf16.msra.mxu0 0
        %2546 = vmatprep.subr.bf16.mxu0 0
        %2547 = vmatpush2.bf16.msra.mxu0 0
        %2548 = vmatprep.subr.bf16.mxu0 0
        %2549 = vmatpush2.bf16.msra.mxu0 0
        %2550 = vmatprep.subr.bf16.mxu0 0
        %2551 = vmatpush2.bf16.msra.mxu0 0
        %2552 = vmatprep.subr.bf16.mxu0 0
        %2553 = vmatpush2.bf16.msra.mxu0 0
        %2554 = vmatprep.subr.bf16.mxu0 0
        %2555 = vmatpush2.bf16.msra.mxu0 0
        %2556 = vmatprep.mubr.bf16.mxu0 0
        %2557 = vmatmul.mubr.bf16.gmra.mxu0 %v2353
        %v2558 = vpop.f32.mrf.mxu0
        %v2559 = vadd.f32 0.0, %v2558
        %v2560 = vpop.f32.mrf.mxu0
        %v2561 = vpop.f32.mrf.mxu0
        %v2562 = vadd.f32 0.0, %v2561
        %v2563 = vpop.f32.mrf.mxu0
        %2564 = vdwg.mxu0
        %v2565 = vmax.f32 %v2453, %v2559
        %v2566 = vmax.f32 %v2456, %v2562
        %s2567 = scalar_lea.vmem [#allocation16], 128
        %v2568 = vld [vmem:[%s2567] sm:$0xf]
        %v2569 = vld [vmem:[%s2567 + $0x4] sm:$0xf]
        %v2570 = vld [vmem:[%s2567 + $0x8] sm:$0xf]
        %v2571 = vld [vmem:[%s2567 + $0xc] sm:$0xf]
        %v2572 = vld [vmem:[%s2567 + $0x10] sm:$0xf]
        %v2573 = vld [vmem:[%s2567 + $0x14] sm:$0xf]
        %v2574 = vld [vmem:[%s2567 + $0x18] sm:$0xf]
        %v2575 = vld [vmem:[%s2567 + $0x1c] sm:$0xf]
        %v2576 = vld [vmem:[%s2567 + $0x20] sm:$0xf]
        %v2577 = vld [vmem:[%s2567 + $0x24] sm:$0xf]
        %v2578 = vld [vmem:[%s2567 + $0x28] sm:$0xf]
        %v2579 = vld [vmem:[%s2567 + $0x2c] sm:$0xf]
        %v2580 = vld [vmem:[%s2567 + $0x30] sm:$0xf]
        %v2581 = vld [vmem:[%s2567 + $0x34] sm:$0xf]
        %v2582 = vld [vmem:[%s2567 + $0x38] sm:$0xf]
        %v2583 = vld [vmem:[%s2567 + $0x3c] sm:$0xf]
        %v2600 = vunpack.c.l.b16 %v2568
        %v2601 = vunpack.c.l.b16 %v2569
        %v2602 = vunpack.c.l.b16 %v2570
        %v2603 = vunpack.c.l.b16 %v2571
        %v2604 = vunpack.c.l.b16 %v2572
        %v2605 = vunpack.c.l.b16 %v2573
        %v2606 = vunpack.c.l.b16 %v2574
        %v2607 = vunpack.c.l.b16 %v2575
        %v2608 = vunpack.c.l.b16 %v2576
        %v2609 = vunpack.c.l.b16 %v2577
        %v2610 = vunpack.c.l.b16 %v2578
        %v2611 = vunpack.c.l.b16 %v2579
        %v2612 = vunpack.c.l.b16 %v2580
        %v2613 = vunpack.c.l.b16 %v2581
        %v2614 = vunpack.c.l.b16 %v2582
        %v2615 = vunpack.c.l.b16 %v2583
        %v2616 = vpack.c.b16 %v2601, %v2600
        %v2617 = vpack.c.b16 %v2603, %v2602
        %v2618 = vpack.c.b16 %v2605, %v2604
        %v2619 = vpack.c.b16 %v2607, %v2606
        %v2620 = vpack.c.b16 %v2609, %v2608
        %v2621 = vpack.c.b16 %v2611, %v2610
        %v2622 = vpack.c.b16 %v2613, %v2612
        %v2623 = vpack.c.b16 %v2615, %v2614
        %2632 = vmatprep.subr.bf16.mxu0 0
        %2633 = vmatpush1.bf16.msra.mxu0 %v2623
        %2634 = vmatprep.subr.bf16.mxu0 0
        %2635 = vmatpush1.bf16.msra.mxu0 %v2622
        %2636 = vmatprep.subr.bf16.mxu0 0
        %2637 = vmatpush1.bf16.msra.mxu0 %v2621
        %2638 = vmatprep.subr.bf16.mxu0 0
        %2639 = vmatpush1.bf16.msra.mxu0 %v2620
        %2640 = vmatprep.subr.bf16.mxu0 0
        %2641 = vmatpush1.bf16.msra.mxu0 %v2619
        %2642 = vmatprep.subr.bf16.mxu0 0
        %2643 = vmatpush1.bf16.msra.mxu0 %v2618
        %2644 = vmatprep.subr.bf16.mxu0 0
        %2645 = vmatpush1.bf16.msra.mxu0 %v2617
        %2646 = vmatprep.subr.bf16.mxu0 0
        %2647 = vmatpush1.bf16.msra.mxu0 %v2616
        %2648 = vmatprep.subr.bf16.mxu0 0
        %2649 = vmatpush2.bf16.msra.mxu0 0
        %2650 = vmatprep.subr.bf16.mxu0 0
        %2651 = vmatpush2.bf16.msra.mxu0 0
        %2652 = vmatprep.subr.bf16.mxu0 0
        %2653 = vmatpush2.bf16.msra.mxu0 0
        %2654 = vmatprep.subr.bf16.mxu0 0
        %2655 = vmatpush2.bf16.msra.mxu0 0
        %2656 = vmatprep.subr.bf16.mxu0 0
        %2657 = vmatpush2.bf16.msra.mxu0 0
        %2658 = vmatprep.subr.bf16.mxu0 0
        %2659 = vmatpush2.bf16.msra.mxu0 0
        %2660 = vmatprep.subr.bf16.mxu0 0
        %2661 = vmatpush2.bf16.msra.mxu0 0
        %2662 = vmatprep.subr.bf16.mxu0 0
        %2663 = vmatpush2.bf16.msra.mxu0 0
        %2664 = vmatprep.mubr.bf16.mxu0 0
        %2665 = vmatmul.mubr.bf16.gmra.mxu0 %v2353
        %v2666 = vpop.f32.mrf.mxu0
        %v2667 = vadd.f32 0.0, %v2666
        %v2668 = vpop.f32.mrf.mxu0
        %v2669 = vpop.f32.mrf.mxu0
        %v2670 = vadd.f32 0.0, %v2669
        %v2671 = vpop.f32.mrf.mxu0
        %2672 = vdwg.mxu0
        %v2673 = vmax.f32 %v2565, %v2667
        %v2674 = vmax.f32 %v2566, %v2670
        %s2675 = scalar_lea.vmem [#allocation16], 192
        %v2676 = vld [vmem:[%s2675] sm:$0xf]
        %v2677 = vld [vmem:[%s2675 + $0x4] sm:$0xf]
        %v2678 = vld [vmem:[%s2675 + $0x8] sm:$0xf]
        %v2679 = vld [vmem:[%s2675 + $0xc] sm:$0xf]
        %v2680 = vld [vmem:[%s2675 + $0x10] sm:$0xf]
        %v2681 = vld [vmem:[%s2675 + $0x14] sm:$0xf]
        %v2682 = vld [vmem:[%s2675 + $0x18] sm:$0xf]
        %v2683 = vld [vmem:[%s2675 + $0x1c] sm:$0xf]
        %v2684 = vld [vmem:[%s2675 + $0x20] sm:$0xf]
        %v2685 = vld [vmem:[%s2675 + $0x24] sm:$0xf]
        %v2686 = vld [vmem:[%s2675 + $0x28] sm:$0xf]
        %v2687 = vld [vmem:[%s2675 + $0x2c] sm:$0xf]
        %v2688 = vld [vmem:[%s2675 + $0x30] sm:$0xf]
        %v2689 = vld [vmem:[%s2675 + $0x34] sm:$0xf]
        %v2690 = vld [vmem:[%s2675 + $0x38] sm:$0xf]
        %v2691 = vld [vmem:[%s2675 + $0x3c] sm:$0xf]
        %v2708 = vunpack.c.l.b16 %v2676
        %v2709 = vunpack.c.l.b16 %v2677
        %v2710 = vunpack.c.l.b16 %v2678
        %v2711 = vunpack.c.l.b16 %v2679
        %v2712 = vunpack.c.l.b16 %v2680
        %v2713 = vunpack.c.l.b16 %v2681
        %v2714 = vunpack.c.l.b16 %v2682
        %v2715 = vunpack.c.l.b16 %v2683
        %v2716 = vunpack.c.l.b16 %v2684
        %v2717 = vunpack.c.l.b16 %v2685
        %v2718 = vunpack.c.l.b16 %v2686
        %v2719 = vunpack.c.l.b16 %v2687
        %v2720 = vunpack.c.l.b16 %v2688
        %v2721 = vunpack.c.l.b16 %v2689
        %v2722 = vunpack.c.l.b16 %v2690
        %v2723 = vunpack.c.l.b16 %v2691
        %v2724 = vpack.c.b16 %v2709, %v2708
        %v2725 = vpack.c.b16 %v2711, %v2710
        %v2726 = vpack.c.b16 %v2713, %v2712
        %v2727 = vpack.c.b16 %v2715, %v2714
        %v2728 = vpack.c.b16 %v2717, %v2716
        %v2729 = vpack.c.b16 %v2719, %v2718
        %v2730 = vpack.c.b16 %v2721, %v2720
        %v2731 = vpack.c.b16 %v2723, %v2722
        %2740 = vmatprep.subr.bf16.mxu0 0
        %2741 = vmatpush1.bf16.msra.mxu0 %v2731
        %2742 = vmatprep.subr.bf16.mxu0 0
        %2743 = vmatpush1.bf16.msra.mxu0 %v2730
        %2744 = vmatprep.subr.bf16.mxu0 0
        %2745 = vmatpush1.bf16.msra.mxu0 %v2729
        %2746 = vmatprep.subr.bf16.mxu0 0
        %2747 = vmatpush1.bf16.msra.mxu0 %v2728
        %2748 = vmatprep.subr.bf16.mxu0 0
        %2749 = vmatpush1.bf16.msra.mxu0 %v2727
        %2750 = vmatprep.subr.bf16.mxu0 0
        %2751 = vmatpush1.bf16.msra.mxu0 %v2726
        %2752 = vmatprep.subr.bf16.mxu0 0
        %2753 = vmatpush1.bf16.msra.mxu0 %v2725
        %2754 = vmatprep.subr.bf16.mxu0 0
        %2755 = vmatpush1.bf16.msra.mxu0 %v2724
        %2756 = vmatprep.subr.bf16.mxu0 0
        %2757 = vmatpush2.bf16.msra.mxu0 0
        %2758 = vmatprep.subr.bf16.mxu0 0
        %2759 = vmatpush2.bf16.msra.mxu0 0
        %2760 = vmatprep.subr.bf16.mxu0 0
        %2761 = vmatpush2.bf16.msra.mxu0 0
        %2762 = vmatprep.subr.bf16.mxu0 0
        %2763 = vmatpush2.bf16.msra.mxu0 0
        %2764 = vmatprep.subr.bf16.mxu0 0
        %2765 = vmatpush2.bf16.msra.mxu0 0
        %2766 = vmatprep.subr.bf16.mxu0 0
        %2767 = vmatpush2.bf16.msra.mxu0 0
        %2768 = vmatprep.subr.bf16.mxu0 0
        %2769 = vmatpush2.bf16.msra.mxu0 0
        %2770 = vmatprep.subr.bf16.mxu0 0
        %2771 = vmatpush2.bf16.msra.mxu0 0
        %2772 = vmatprep.mubr.bf16.mxu0 0
        %2773 = vmatmul.mubr.bf16.gmra.mxu0 %v2353
        %v2774 = vpop.f32.mrf.mxu0
        %v2775 = vadd.f32 0.0, %v2774
        %v2776 = vpop.f32.mrf.mxu0
        %v2777 = vpop.f32.mrf.mxu0
        %v2778 = vadd.f32 0.0, %v2777
        %v2779 = vpop.f32.mrf.mxu0
        %2780 = vdwg.mxu0
        %v2781 = vmax.f32 %v2673, %v2775
        %v2782 = vmax.f32 %v2674, %v2778
        %2783 = vrot.lane.b32.xlu0 %v2781, 8
        %v2784 = vpop.permute.xlu0 %2783
        %2785 = vrot.lane.b32.xlu0 %v2782, 8
        %v2786 = vpop.permute.xlu0 %2785
        %2787 = vrot.lane.b32.xlu0 %v2781, 7
        %v2788 = vpop.permute.xlu0 %2787
        %2789 = vrot.lane.b32.xlu0 %v2782, 7
        %v2790 = vpop.permute.xlu0 %2789
        %2791 = vrot.lane.b32.xlu0 %v2781, 6
        %v2792 = vpop.permute.xlu0 %2791
        %2793 = vrot.lane.b32.xlu0 %v2782, 6
        %v2794 = vpop.permute.xlu0 %2793
        %2795 = vrot.lane.b32.xlu0 %v2781, 1
        %v2796 = vpop.permute.xlu0 %2795
        %2797 = vrot.lane.b32.xlu0 %v2782, 1
        %v2798 = vpop.permute.xlu0 %2797
        %2799 = vrot.lane.b32.xlu0 %v2781, 127
        %v2800 = vpop.permute.xlu0 %2799
        %2801 = vrot.lane.b32.xlu0 %v2782, 127
        %v2802 = vpop.permute.xlu0 %2801
        %2803 = vrot.lane.b32.xlu0 %v2781, 122
        %v2804 = vpop.permute.xlu0 %2803
        %2805 = vrot.lane.b32.xlu0 %v2782, 122
        %v2806 = vpop.permute.xlu0 %2805
        %2807 = vrot.lane.b32.xlu0 %v2781, 121
        %v2808 = vpop.permute.xlu0 %2807
        %2809 = vrot.lane.b32.xlu0 %v2782, 121
        %v2810 = vpop.permute.xlu0 %2809
        %2811 = vrot.lane.b32.xlu0 %v2781, 120
        %v2812 = vpop.permute.xlu0 %2811
        %2813 = vrot.lane.b32.xlu0 %v2782, 120
        %v2814 = vpop.permute.xlu0 %2813
        %v2815 = vpack.c.bf16 %v2786, %v2784
        %v2816 = vpack.c.bf16 %v2790, %v2788
        %v2817 = vpack.c.bf16 %v2794, %v2792
        %v2818 = vpack.c.bf16 %v2798, %v2796
        %v2819 = vpack.c.bf16 %v2782, %v2781
        %v2820 = vpack.c.bf16 %v2802, %v2800
        %v2821 = vpack.c.bf16 %v2806, %v2804
        %v2822 = vpack.c.bf16 %v2810, %v2808
        %v2823 = vpack.c.bf16 %v2814, %v2812
        %v2824 = vld [vmem:[#allocation6] sm:$0xff]
        %v2825 = vld [vmem:[#allocation13] sm:$0xff]
        %2827 = vset.pattern.permute.xlu0 0
        %2828 = vperm.xlu0 %2827, %v2825
        %v2829 = vpop.permute.xlu0 %2828
        %v2832 = vunpack.c.l.b16 %v2824
        %v2833 = vunpack.c.h.b16 %v2824
        %v2834 = vpack.c.b16 %v2832, %v2832
        %v2835 = vpack.c.b16 %v2833, %v2833
        %vm2837 = vcmask 130048
        %v2839 = vsel %vm2837, %v2835, 0
        %2841 = vmatprep.subr.bf16.mxu0 0
        %2842 = vmatpush1.bf16.msra.mxu0 %v2822
        %2843 = vmatprep.subr.bf16.mxu0 0
        %2844 = vmatpush1.bf16.msra.mxu0 %v2821
        %2845 = vmatprep.subr.bf16.mxu0 0
        %2846 = vmatpush1.bf16.msra.mxu0 %v2820
        %2847 = vmatprep.subr.bf16.mxu0 0
        %2848 = vmatpush1.bf16.msra.mxu0 %v2819
        %2849 = vmatprep.subr.bf16.mxu0 0
        %2850 = vmatpush1.bf16.msra.mxu0 %v2818
        %2851 = vmatprep.subr.bf16.mxu0 0
        %2852 = vmatpush1.bf16.msra.mxu0 %v2817
        %2853 = vmatprep.subr.bf16.mxu0 0
        %2854 = vmatpush1.bf16.msra.mxu0 %v2816
        %2855 = vmatprep.subr.bf16.mxu0 0
        %2856 = vmatpush1.bf16.msra.mxu0 %v2815
        %2857 = vmatprep.subr.bf16.mxu0 0
        %2858 = vmatpush2.bf16.msra.mxu0 0
        %2859 = vmatprep.subr.bf16.mxu0 0
        %2860 = vmatpush2.bf16.msra.mxu0 0
        %2861 = vmatprep.subr.bf16.mxu0 0
        %2862 = vmatpush2.bf16.msra.mxu0 0
        %2863 = vmatprep.subr.bf16.mxu0 0
        %2864 = vmatpush2.bf16.msra.mxu0 0
        %2865 = vmatprep.subr.bf16.mxu0 0
        %2866 = vmatpush2.bf16.msra.mxu0 0
        %2867 = vmatprep.subr.bf16.mxu0 0
        %2868 = vmatpush2.bf16.msra.mxu0 0
        %2869 = vmatprep.subr.bf16.mxu0 0
        %2870 = vmatpush2.bf16.msra.mxu0 0
        %2871 = vmatprep.subr.bf16.mxu0 0
        %2872 = vmatpush2.bf16.msra.mxu0 %v2823
        %2873 = vmatprep.mubr.bf16.mxu0 %v2839
        %2874 = vmatmul.mubr.bf16.gmra.mxu0 %v2834
        %v2875 = vpop.f32.mrf.mxu0
        %v2876 = vadd.f32 %v2829, %v2875
        %v2877 = vpop.f32.mrf.mxu0
        %v2878 = vpop.f32.mrf.mxu0
        %v2879 = vpop.f32.mrf.mxu0
        %2880 = vdwg.mxu0
        %v2881 = vmax.f32 %v2876, 0.0
        %v2882 = vpack.c.bf16 %v2881, %v2881
        %v2883 = vld [vmem:[%s15] sm:$0xff]
        %v2884 = vld [vmem:[%s15 + $0x8] sm:$0xff]
        %v2885 = vld [vmem:[%s15 + $0x10] sm:$0xff]
        %v2886 = vld [vmem:[%s15 + $0x18] sm:$0xff]
        %v2887 = vld [vmem:[%s15 + $0x20] sm:$0xff]
        %v2888 = vld [vmem:[%s15 + $0x28] sm:$0xff]
        %v2889 = vld [vmem:[%s15 + $0x30] sm:$0xff]
        %v2890 = vld [vmem:[%s15 + $0x38] sm:$0xff]
        %v2891 = vld [vmem:[%s15 + $0x40] sm:$0xff]
        %v2892 = vld [vmem:[%s15 + $0x48] sm:$0xff]
        %v2893 = vld [vmem:[%s15 + $0x50] sm:$0xff]
        %v2894 = vld [vmem:[%s15 + $0x58] sm:$0xff]
        %v2895 = vld [vmem:[%s15 + $0x60] sm:$0xff]
        %v2896 = vld [vmem:[%s15 + $0x68] sm:$0xff]
        %v2897 = vld [vmem:[%s15 + $0x70] sm:$0xff]
        %v2898 = vld [vmem:[%s15 + $0x78] sm:$0xff]
        %v2915 = vunpack.c.l.b16 %v2883
        %v2916 = vunpack.c.h.b16 %v2883
        %v2917 = vunpack.c.l.b16 %v2884
        %v2918 = vunpack.c.h.b16 %v2884
        %v2919 = vunpack.c.l.b16 %v2885
        %v2920 = vunpack.c.h.b16 %v2885
        %v2921 = vunpack.c.l.b16 %v2886
        %v2922 = vunpack.c.h.b16 %v2886
        %v2923 = vunpack.c.l.b16 %v2887
        %v2924 = vunpack.c.h.b16 %v2887
        %v2925 = vunpack.c.l.b16 %v2888
        %v2926 = vunpack.c.h.b16 %v2888
        %v2927 = vunpack.c.l.b16 %v2889
        %v2928 = vunpack.c.h.b16 %v2889
        %v2929 = vunpack.c.l.b16 %v2890
        %v2930 = vunpack.c.h.b16 %v2890
        %v2931 = vunpack.c.l.b16 %v2891
        %v2932 = vunpack.c.h.b16 %v2891
        %v2933 = vunpack.c.l.b16 %v2892
        %v2934 = vunpack.c.h.b16 %v2892
        %v2935 = vunpack.c.l.b16 %v2893
        %v2936 = vunpack.c.h.b16 %v2893
        %v2937 = vunpack.c.l.b16 %v2894
        %v2938 = vunpack.c.h.b16 %v2894
        %v2939 = vunpack.c.l.b16 %v2895
        %v2940 = vunpack.c.h.b16 %v2895
        %v2941 = vunpack.c.l.b16 %v2896
        %v2942 = vunpack.c.h.b16 %v2896
        %v2943 = vunpack.c.l.b16 %v2897
        %v2944 = vunpack.c.h.b16 %v2897
        %v2945 = vunpack.c.l.b16 %v2898
        %v2946 = vunpack.c.h.b16 %v2898
        %v2947 = vpack.c.b16 %v2917, %v2915
        %v2948 = vpack.c.b16 %v2918, %v2916
        %v2949 = vpack.c.b16 %v2921, %v2919
        %v2950 = vpack.c.b16 %v2922, %v2920
        %v2951 = vpack.c.b16 %v2925, %v2923
        %v2952 = vpack.c.b16 %v2926, %v2924
        %v2953 = vpack.c.b16 %v2929, %v2927
        %v2954 = vpack.c.b16 %v2930, %v2928
        %v2955 = vpack.c.b16 %v2933, %v2931
        %v2956 = vpack.c.b16 %v2934, %v2932
        %v2957 = vpack.c.b16 %v2937, %v2935
        %v2958 = vpack.c.b16 %v2938, %v2936
        %v2959 = vpack.c.b16 %v2941, %v2939
        %v2960 = vpack.c.b16 %v2942, %v2940
        %v2961 = vpack.c.b16 %v2945, %v2943
        %v2962 = vpack.c.b16 %v2946, %v2944
        %2979 = vmatprep.subr.bf16.mxu0 %v2962
        %2980 = vmatpush1.bf16.msra.mxu0 %v2961
        %2981 = vmatprep.subr.bf16.mxu0 %v2960
        %2982 = vmatpush1.bf16.msra.mxu0 %v2959
        %2983 = vmatprep.subr.bf16.mxu0 %v2958
        %2984 = vmatpush1.bf16.msra.mxu0 %v2957
        %2985 = vmatprep.subr.bf16.mxu0 %v2956
        %2986 = vmatpush1.bf16.msra.mxu0 %v2955
        %2987 = vmatprep.subr.bf16.mxu0 %v2954
        %2988 = vmatpush1.bf16.msra.mxu0 %v2953
        %2989 = vmatprep.subr.bf16.mxu0 %v2952
        %2990 = vmatpush1.bf16.msra.mxu0 %v2951
        %2991 = vmatprep.subr.bf16.mxu0 %v2950
        %2992 = vmatpush1.bf16.msra.mxu0 %v2949
        %2993 = vmatprep.subr.bf16.mxu0 %v2948
        %2994 = vmatpush1.bf16.msra.mxu0 %v2947
        %2995 = vmatprep.subr.bf16.mxu0 0
        %2996 = vmatpush2.bf16.msra.mxu0 0
        %2997 = vmatprep.subr.bf16.mxu0 0
        %2998 = vmatpush2.bf16.msra.mxu0 0
        %2999 = vmatprep.subr.bf16.mxu0 0
        %3000 = vmatpush2.bf16.msra.mxu0 0
        %3001 = vmatprep.subr.bf16.mxu0 0
        %3002 = vmatpush2.bf16.msra.mxu0 0
        %3003 = vmatprep.subr.bf16.mxu0 0
        %3004 = vmatpush2.bf16.msra.mxu0 0
        %3005 = vmatprep.subr.bf16.mxu0 0
        %3006 = vmatpush2.bf16.msra.mxu0 0
        %3007 = vmatprep.subr.bf16.mxu0 0
        %3008 = vmatpush2.bf16.msra.mxu0 0
        %3009 = vmatprep.subr.bf16.mxu0 0
        %3010 = vmatpush2.bf16.msra.mxu0 0
        %3011 = vmatprep.mubr.bf16.mxu0 0
        %3012 = vmatmul.mubr.bf16.gmra.mxu0 %v2882
        %v3013 = vpop.f32.mrf.mxu0
        %v3014 = vadd.f32 0.0, %v3013
        %v3015 = vpop.f32.mrf.mxu0
        %v3016 = vadd.f32 0.0, %v3015
        %v3017 = vpop.f32.mrf.mxu0
        %v3018 = vpop.f32.mrf.mxu0
        %3019 = vdwg.mxu0
        %v3020 = vld [vmem:[#allocation18] sm:$0x3]
        %3021 = vrot.lane.b32.xlu0 %v3014, 13
        %v3022 = vpop.permute.xlu0 %3021
        %3023 = vrot.lane.b32.xlu0 %v3016, 13
        %v3024 = vpop.permute.xlu0 %3023
        %vm3025 = vcmp.lt.s32.totalorder %v712, 13
        %v3026 = vsel %vm3025, %v3022, %v3024
        %v3027 = vsel %vm3025, %v3024, %v3022
        %3028 = vrot.lane.b32.xlu0 %v3014, 12
        %v3029 = vpop.permute.xlu0 %3028
        %3030 = vrot.lane.b32.xlu0 %v3016, 12
        %v3031 = vpop.permute.xlu0 %3030
        %vm3032 = vcmp.lt.s32.totalorder %v712, 12
        %v3033 = vsel %vm3032, %v3029, %v3031
        %v3034 = vsel %vm3032, %v3031, %v3029
        %3035 = vrot.lane.b32.xlu0 %v3014, 11
        %v3036 = vpop.permute.xlu0 %3035
        %3037 = vrot.lane.b32.xlu0 %v3016, 11
        %v3038 = vpop.permute.xlu0 %3037
        %vm3039 = vcmp.lt.s32.totalorder %v712, 11
        %v3040 = vsel %vm3039, %v3036, %v3038
        %v3041 = vsel %vm3039, %v3038, %v3036
        %3042 = vrot.lane.b32.xlu0 %v3014, 1
        %v3043 = vpop.permute.xlu0 %3042
        %3044 = vrot.lane.b32.xlu0 %v3016, 1
        %v3045 = vpop.permute.xlu0 %3044
        %v3046 = vsel %vm743, %v3043, %v3045
        %v3047 = vsel %vm743, %v3045, %v3043
        %3048 = vrot.lane.b32.xlu0 %v3014, 127
        %v3049 = vpop.permute.xlu0 %3048
        %3050 = vrot.lane.b32.xlu0 %v3016, 127
        %v3051 = vpop.permute.xlu0 %3050
        %v3052 = vsel %vm753, %v3049, %v3051
        %v3053 = vsel %vm753, %v3051, %v3049
        %3054 = vrot.lane.b32.xlu0 %v3014, 117
        %v3055 = vpop.permute.xlu0 %3054
        %3056 = vrot.lane.b32.xlu0 %v3016, 117
        %v3057 = vpop.permute.xlu0 %3056
        %vm3058 = vcmp.lt.s32.totalorder %v712, 117
        %v3059 = vsel %vm3058, %v3055, %v3057
        %v3060 = vsel %vm3058, %v3057, %v3055
        %3061 = vrot.lane.b32.xlu0 %v3014, 116
        %v3062 = vpop.permute.xlu0 %3061
        %3063 = vrot.lane.b32.xlu0 %v3016, 116
        %v3064 = vpop.permute.xlu0 %3063
        %vm3065 = vcmp.lt.s32.totalorder %v712, 116
        %v3066 = vsel %vm3065, %v3062, %v3064
        %v3067 = vsel %vm3065, %v3064, %v3062
        %3068 = vrot.lane.b32.xlu0 %v3014, 115
        %v3069 = vpop.permute.xlu0 %3068
        %3070 = vrot.lane.b32.xlu0 %v3016, 115
        %v3071 = vpop.permute.xlu0 %3070
        %vm3072 = vcmp.lt.s32.totalorder %v712, 115
        %v3073 = vsel %vm3072, %v3069, %v3071
        %v3074 = vsel %vm3072, %v3071, %v3069
        %v3075 = vpack.c.bf16 %v3034, %v3027
        %v3076 = vpack.c.bf16 %v3033, %v3026
        %v3077 = vpack.c.bf16 %v3047, %v3041
        %v3078 = vpack.c.bf16 %v3046, %v3040
        %v3079 = vpack.c.bf16 %v3052, %v3014
        %v3080 = vpack.c.bf16 %v3053, %v3016
        %v3081 = vpack.c.bf16 %v3066, %v3059
        %v3082 = vpack.c.bf16 %v3067, %v3060
        %v3083 = vpack.c.bf16 %v3073, %v3073
        %v3084 = vpack.c.bf16 %v3074, %v3074
        %v3085 = vld [vmem:[#allocation7] sm:$0xf]
        %v3086 = vld [vmem:[#allocation7 + $0x4] sm:$0xf]
        %v3087 = vld [vmem:[#allocation15] sm:$0xff]
        %v3088 = vld [vmem:[#allocation15 + $0x8] sm:$0xff]
        %3090 = vset.pattern.permute.xlu0 0
        %3091 = vperm.xlu0 %3090, %v3087
        %v3092 = vpop.permute.xlu0 %3091
        %3095 = vset.pattern.permute.xlu0 0
        %3096 = vperm.xlu0 %3095, %v3088
        %v3097 = vpop.permute.xlu0 %3096
        %v3101 = vunpack.c.l.b16 %v3085
        %v3102 = vunpack.c.l.b16 %v3086
        %v3103 = vpack.c.b16 %v3102, %v3101
        %v3105 = vsel %vm840, %v3103, 0
        %v3108 = vsel %vm847, %v3083, 0
        %v3111 = vsel %vm847, %v3084, 0
        %3113 = vmatprep.subr.bf16.mxu0 0
        %3114 = vmatpush1.bf16.msra.mxu0 0
        %3115 = vmatprep.subr.bf16.mxu0 0
        %3116 = vmatpush1.bf16.msra.mxu0 0
        %3117 = vmatprep.subr.bf16.mxu0 0
        %3118 = vmatpush1.bf16.msra.mxu0 0
        %3119 = vmatprep.subr.bf16.mxu0 %v3111
        %3120 = vmatpush1.bf16.msra.mxu0 %v3108
        %3121 = vmatprep.subr.bf16.mxu0 %v3082
        %3122 = vmatpush1.bf16.msra.mxu0 %v3081
        %3123 = vmatprep.subr.bf16.mxu0 %v3080
        %3124 = vmatpush1.bf16.msra.mxu0 %v3079
        %3125 = vmatprep.subr.bf16.mxu0 %v3078
        %3126 = vmatpush1.bf16.msra.mxu0 %v3077
        %3127 = vmatprep.subr.bf16.mxu0 %v3076
        %3128 = vmatpush1.bf16.msra.mxu0 %v3075
        %3129 = vmatprep.subr.bf16.mxu0 0
        %3130 = vmatpush2.bf16.msra.mxu0 0
        %3131 = vmatprep.subr.bf16.mxu0 0
        %3132 = vmatpush2.bf16.msra.mxu0 0
        %3133 = vmatprep.subr.bf16.mxu0 0
        %3134 = vmatpush2.bf16.msra.mxu0 0
        %3135 = vmatprep.subr.bf16.mxu0 0
        %3136 = vmatpush2.bf16.msra.mxu0 0
        %3137 = vmatprep.subr.bf16.mxu0 0
        %3138 = vmatpush2.bf16.msra.mxu0 0
        %3139 = vmatprep.subr.bf16.mxu0 0
        %3140 = vmatpush2.bf16.msra.mxu0 0
        %3141 = vmatprep.subr.bf16.mxu0 0
        %3142 = vmatpush2.bf16.msra.mxu0 0
        %3143 = vmatprep.subr.bf16.mxu0 0
        %3144 = vmatpush2.bf16.msra.mxu0 0
        %3145 = vmatprep.mubr.bf16.mxu0 0
        %3146 = vmatmul.mubr.bf16.gmra.mxu0 %v3105
        %v3147 = vpop.f32.mrf.mxu0
        %v3148 = vadd.f32 %v3092, %v3147
        %v3149 = vpop.f32.mrf.mxu0
        %v3150 = vadd.f32 %v3092, %v3149
        %v3151 = vpop.f32.mrf.mxu0
        %v3152 = vadd.f32 %v3097, %v3151
        %v3153 = vpop.f32.mrf.mxu0
        %v3154 = vadd.f32 %v3097, %v3153
        %3155 = vdwg.mxu0
        %v3156 = vmax.f32 %v3148, 0.0
        %v3157 = vmax.f32 %v3150, 0.0
        %v3158 = vmax.f32 %v3152, 0.0
        %v3159 = vmax.f32 %v3154, 0.0
        %v3161 = vlaneseq
        %v3162 = vshrl.u32 %v3161, 7
        %v3163 = vsub.s32 0, %v3162
        %v3164 = vrot.slane %v3020, %v3163
        %v3165 = vlaneseq
        %v3166 = vshrl.u32 %v3165, 7
        %v3167 = vsub.s32 1, %v3166
        %v3168 = vrot.slane %v3020, %v3167
        %v3171 = vmul.f32 %v3156, %v3164
        %v3172 = vmul.f32 %v3157, %v3168
        %v3173 = vmul.f32 %v3158, %v3164
        %v3174 = vmul.f32 %v3159, %v3168
        %3175 = vrot.lane.b32.xlu0 %v3171, 13
        %v3176 = vpop.permute.xlu0 %3175
        %3177 = vrot.lane.b32.xlu0 %v3173, 13
        %v3178 = vpop.permute.xlu0 %3177
        %3179 = vrot.lane.b32.xlu0 %v3172, 13
        %v3180 = vpop.permute.xlu0 %3179
        %3181 = vrot.lane.b32.xlu0 %v3174, 13
        %v3182 = vpop.permute.xlu0 %3181
        %v3183 = vsel %vm3025, %v3176, %v3180
        %v3184 = vsel %vm3025, %v3178, %v3182
        %v3185 = vsel %vm3025, %v3180, %v3176
        %v3186 = vsel %vm3025, %v3182, %v3178
        %3187 = vrot.lane.b32.xlu0 %v3171, 12
        %v3188 = vpop.permute.xlu0 %3187
        %3189 = vrot.lane.b32.xlu0 %v3173, 12
        %v3190 = vpop.permute.xlu0 %3189
        %3191 = vrot.lane.b32.xlu0 %v3172, 12
        %v3192 = vpop.permute.xlu0 %3191
        %3193 = vrot.lane.b32.xlu0 %v3174, 12
        %v3194 = vpop.permute.xlu0 %3193
        %v3195 = vsel %vm3032, %v3188, %v3192
        %v3196 = vsel %vm3032, %v3190, %v3194
        %v3197 = vsel %vm3032, %v3192, %v3188
        %v3198 = vsel %vm3032, %v3194, %v3190
        %3199 = vrot.lane.b32.xlu0 %v3171, 11
        %v3200 = vpop.permute.xlu0 %3199
        %3201 = vrot.lane.b32.xlu0 %v3173, 11
        %v3202 = vpop.permute.xlu0 %3201
        %3203 = vrot.lane.b32.xlu0 %v3172, 11
        %v3204 = vpop.permute.xlu0 %3203
        %3205 = vrot.lane.b32.xlu0 %v3174, 11
        %v3206 = vpop.permute.xlu0 %3205
        %v3207 = vsel %vm3039, %v3200, %v3204
        %v3208 = vsel %vm3039, %v3202, %v3206
        %v3209 = vsel %vm3039, %v3204, %v3200
        %v3210 = vsel %vm3039, %v3206, %v3202
        %3211 = vrot.lane.b32.xlu0 %v3171, 1
        %v3212 = vpop.permute.xlu0 %3211
        %3213 = vrot.lane.b32.xlu0 %v3173, 1
        %v3214 = vpop.permute.xlu0 %3213
        %3215 = vrot.lane.b32.xlu0 %v3172, 1
        %v3216 = vpop.permute.xlu0 %3215
        %3217 = vrot.lane.b32.xlu0 %v3174, 1
        %v3218 = vpop.permute.xlu0 %3217
        %v3219 = vsel %vm743, %v3212, %v3216
        %v3220 = vsel %vm743, %v3214, %v3218
        %v3221 = vsel %vm743, %v3216, %v3212
        %v3222 = vsel %vm743, %v3218, %v3214
        %3223 = vrot.lane.b32.xlu0 %v3171, 127
        %v3224 = vpop.permute.xlu0 %3223
        %3225 = vrot.lane.b32.xlu0 %v3173, 127
        %v3226 = vpop.permute.xlu0 %3225
        %3227 = vrot.lane.b32.xlu0 %v3172, 127
        %v3228 = vpop.permute.xlu0 %3227
        %3229 = vrot.lane.b32.xlu0 %v3174, 127
        %v3230 = vpop.permute.xlu0 %3229
        %v3231 = vsel %vm753, %v3224, %v3228
        %v3232 = vsel %vm753, %v3226, %v3230
        %v3233 = vsel %vm753, %v3228, %v3224
        %v3234 = vsel %vm753, %v3230, %v3226
        %3235 = vrot.lane.b32.xlu0 %v3171, 117
        %v3236 = vpop.permute.xlu0 %3235
        %3237 = vrot.lane.b32.xlu0 %v3173, 117
        %v3238 = vpop.permute.xlu0 %3237
        %3239 = vrot.lane.b32.xlu0 %v3172, 117
        %v3240 = vpop.permute.xlu0 %3239
        %3241 = vrot.lane.b32.xlu0 %v3174, 117
        %v3242 = vpop.permute.xlu0 %3241
        %v3243 = vsel %vm3058, %v3236, %v3240
        %v3244 = vsel %vm3058, %v3238, %v3242
        %v3245 = vsel %vm3058, %v3240, %v3236
        %v3246 = vsel %vm3058, %v3242, %v3238
        %3247 = vrot.lane.b32.xlu0 %v3171, 116
        %v3248 = vpop.permute.xlu0 %3247
        %3249 = vrot.lane.b32.xlu0 %v3173, 116
        %v3250 = vpop.permute.xlu0 %3249
        %3251 = vrot.lane.b32.xlu0 %v3172, 116
        %v3252 = vpop.permute.xlu0 %3251
        %3253 = vrot.lane.b32.xlu0 %v3174, 116
        %v3254 = vpop.permute.xlu0 %3253
        %v3255 = vsel %vm3065, %v3248, %v3252
        %v3256 = vsel %vm3065, %v3250, %v3254
        %v3257 = vsel %vm3065, %v3252, %v3248
        %v3258 = vsel %vm3065, %v3254, %v3250
        %3259 = vrot.lane.b32.xlu0 %v3171, 115
        %v3260 = vpop.permute.xlu0 %3259
        %3261 = vrot.lane.b32.xlu0 %v3173, 115
        %v3262 = vpop.permute.xlu0 %3261
        %3263 = vrot.lane.b32.xlu0 %v3172, 115
        %v3264 = vpop.permute.xlu0 %3263
        %3265 = vrot.lane.b32.xlu0 %v3174, 115
        %v3266 = vpop.permute.xlu0 %3265
        %v3267 = vsel %vm3072, %v3260, %v3264
        %v3268 = vsel %vm3072, %v3262, %v3266
        %v3269 = vsel %vm3072, %v3264, %v3260
        %v3270 = vsel %vm3072, %v3266, %v3262
        %v3271 = vpack.c.bf16 %v3186, %v3185
        %v3272 = vpack.c.bf16 %v3184, %v3183
        %v3273 = vpack.c.bf16 %v3198, %v3197
        %v3274 = vpack.c.bf16 %v3196, %v3195
        %v3275 = vpack.c.bf16 %v3210, %v3209
        %v3276 = vpack.c.bf16 %v3208, %v3207
        %v3277 = vpack.c.bf16 %v3222, %v3221
        %v3278 = vpack.c.bf16 %v3220, %v3219
        %v3279 = vpack.c.bf16 %v3173, %v3171
        %v3280 = vpack.c.bf16 %v3174, %v3172
        %v3281 = vpack.c.bf16 %v3232, %v3231
        %v3282 = vpack.c.bf16 %v3234, %v3233
        %v3283 = vpack.c.bf16 %v3244, %v3243
        %v3284 = vpack.c.bf16 %v3246, %v3245
        %v3285 = vpack.c.bf16 %v3256, %v3255
        %v3286 = vpack.c.bf16 %v3258, %v3257
        %v3287 = vpack.c.bf16 %v3268, %v3267
        %v3288 = vpack.c.bf16 %v3270, %v3269
        %v3289 = vld [vmem:[#allocation9] sm:$0xff]
        %v3290 = vld [vmem:[#allocation9 + $0x8] sm:$0xff]
        %v3291 = vld [vmem:[#allocation9 + $0x10] sm:$0xff]
        %v3292 = vld [vmem:[#allocation9 + $0x18] sm:$0xff]
        %v3293 = vld [vmem:[%s11] sm:$0xff]
        %v3294 = vld [vmem:[%s11 + $0x8] sm:$0xff]
        %v3295 = vld [vmem:[%s11 + $0x10] sm:$0xff]
        %v3296 = vld [vmem:[%s11 + $0x18] sm:$0xff]
        %3298 = vset.pattern.permute.xlu0 0
        %3299 = vperm.xlu0 %3298, %v3293
        %v3300 = vpop.permute.xlu0 %3299
        %3303 = vset.pattern.permute.xlu0 0
        %3304 = vperm.xlu0 %3303, %v3294
        %v3305 = vpop.permute.xlu0 %3304
        %3308 = vset.pattern.permute.xlu0 0
        %3309 = vperm.xlu0 %3308, %v3295
        %v3310 = vpop.permute.xlu0 %3309
        %3313 = vset.pattern.permute.xlu0 0
        %3314 = vperm.xlu0 %3313, %v3296
        %v3315 = vpop.permute.xlu0 %3314
        %v3321 = vunpack.c.l.b16 %v3289
        %v3322 = vunpack.c.h.b16 %v3289
        %v3323 = vunpack.c.l.b16 %v3290
        %v3324 = vunpack.c.h.b16 %v3290
        %v3325 = vunpack.c.l.b16 %v3291
        %v3326 = vunpack.c.h.b16 %v3291
        %v3327 = vunpack.c.l.b16 %v3292
        %v3328 = vunpack.c.h.b16 %v3292
        %v3329 = vpack.c.b16 %v3323, %v3321
        %v3330 = vpack.c.b16 %v3324, %v3322
        %v3331 = vpack.c.b16 %v3327, %v3325
        %v3332 = vpack.c.b16 %v3328, %v3326
        %v3336 = vsel %vm2837, %v3330, 0
        %v3339 = vsel %vm2837, %v3332, 0
        %3341 = vmatprep.subr.bf16.mxu0 %v3286
        %3342 = vmatpush1.bf16.msra.mxu0 %v3285
        %3343 = vmatprep.subr.bf16.mxu0 %v3284
        %3344 = vmatpush1.bf16.msra.mxu0 %v3283
        %3345 = vmatprep.subr.bf16.mxu0 %v3282
        %3346 = vmatpush1.bf16.msra.mxu0 %v3281
        %3347 = vmatprep.subr.bf16.mxu0 %v3280
        %3348 = vmatpush1.bf16.msra.mxu0 %v3279
        %3349 = vmatprep.subr.bf16.mxu0 %v3278
        %3350 = vmatpush1.bf16.msra.mxu0 %v3277
        %3351 = vmatprep.subr.bf16.mxu0 %v3276
        %3352 = vmatpush1.bf16.msra.mxu0 %v3275
        %3353 = vmatprep.subr.bf16.mxu0 %v3274
        %3354 = vmatpush1.bf16.msra.mxu0 %v3273
        %3355 = vmatprep.subr.bf16.mxu0 %v3272
        %3356 = vmatpush1.bf16.msra.mxu0 %v3271
        %3357 = vmatprep.subr.bf16.mxu0 0
        %3358 = vmatpush2.bf16.msra.mxu0 0
        %3359 = vmatprep.subr.bf16.mxu0 0
        %3360 = vmatpush2.bf16.msra.mxu0 0
        %3361 = vmatprep.subr.bf16.mxu0 0
        %3362 = vmatpush2.bf16.msra.mxu0 0
        %3363 = vmatprep.subr.bf16.mxu0 0
        %3364 = vmatpush2.bf16.msra.mxu0 0
        %3365 = vmatprep.subr.bf16.mxu0 0
        %3366 = vmatpush2.bf16.msra.mxu0 0
        %3367 = vmatprep.subr.bf16.mxu0 0
        %3368 = vmatpush2.bf16.msra.mxu0 0
        %3369 = vmatprep.subr.bf16.mxu0 0
        %3370 = vmatpush2.bf16.msra.mxu0 0
        %3371 = vmatprep.subr.bf16.mxu0 %v3288
        %3372 = vmatpush2.bf16.msra.mxu0 %v3287
        %3373 = vmatprep.mubr.bf16.mxu0 %v3336
        %3374 = vmatmul.mubr.bf16.gmra.mxu0 %v3329
        %v3375 = vpop.f32.mrf.mxu0
        %v3376 = vadd.f32 %v3300, %v3375
        %v3377 = vpop.f32.mrf.mxu0
        %v3378 = vadd.f32 %v3300, %v3377
        %v3379 = vpop.f32.mrf.mxu0
        %v3380 = vadd.f32 %v3305, %v3379
        %v3381 = vpop.f32.mrf.mxu0
        %v3382 = vadd.f32 %v3305, %v3381
        %3383 = vmatprep.mubr.bf16.mxu0 %v3339
        %3384 = vmatmul.mubr.bf16.gmra.mxu0 %v3331
        %v3385 = vpop.f32.mrf.mxu0
        %v3386 = vadd.f32 %v3310, %v3385
        %v3387 = vpop.f32.mrf.mxu0
        %v3388 = vadd.f32 %v3310, %v3387
        %v3389 = vpop.f32.mrf.mxu0
        %v3390 = vadd.f32 %v3315, %v3389
        %v3391 = vpop.f32.mrf.mxu0
        %v3392 = vadd.f32 %v3315, %v3391
        %3393 = vdwg.mxu0
        %v3394 = vmax.f32 %v3376, 0.0
        %v3395 = vmax.f32 %v3378, 0.0
        %v3396 = vmax.f32 %v3380, 0.0
        %v3397 = vmax.f32 %v3382, 0.0
        %v3398 = vmax.f32 %v3386, 0.0
        %v3399 = vmax.f32 %v3388, 0.0
        %v3400 = vmax.f32 %v3390, 0.0
        %v3401 = vmax.f32 %v3392, 0.0
        %v3402 = vmul.f32 %v3394, %v3164
        %v3403 = vmul.f32 %v3395, %v3168
        %v3404 = vmul.f32 %v3396, %v3164
        %v3405 = vmul.f32 %v3397, %v3168
        %v3406 = vmul.f32 %v3398, %v3164
        %v3407 = vmul.f32 %v3399, %v3168
        %v3408 = vmul.f32 %v3400, %v3164
        %v3409 = vmul.f32 %v3401, %v3168
        %3410 = vrot.lane.b32.xlu0 %v3402, 13
        %v3411 = vpop.permute.xlu0 %3410
        %3412 = vrot.lane.b32.xlu0 %v3404, 13
        %v3413 = vpop.permute.xlu0 %3412
        %3414 = vrot.lane.b32.xlu0 %v3406, 13
        %v3415 = vpop.permute.xlu0 %3414
        %3416 = vrot.lane.b32.xlu0 %v3408, 13
        %v3417 = vpop.permute.xlu0 %3416
        %3418 = vrot.lane.b32.xlu0 %v3403, 13
        %v3419 = vpop.permute.xlu0 %3418
        %3420 = vrot.lane.b32.xlu0 %v3405, 13
        %v3421 = vpop.permute.xlu0 %3420
        %3422 = vrot.lane.b32.xlu0 %v3407, 13
        %v3423 = vpop.permute.xlu0 %3422
        %3424 = vrot.lane.b32.xlu0 %v3409, 13
        %v3425 = vpop.permute.xlu0 %3424
        %v3426 = vsel %vm3025, %v3411, %v3419
        %v3427 = vsel %vm3025, %v3413, %v3421
        %v3428 = vsel %vm3025, %v3415, %v3423
        %v3429 = vsel %vm3025, %v3417, %v3425
        %v3430 = vsel %vm3025, %v3419, %v3411
        %v3431 = vsel %vm3025, %v3421, %v3413
        %v3432 = vsel %vm3025, %v3423, %v3415
        %v3433 = vsel %vm3025, %v3425, %v3417
        %3434 = vrot.lane.b32.xlu0 %v3402, 12
        %v3435 = vpop.permute.xlu0 %3434
        %3436 = vrot.lane.b32.xlu0 %v3404, 12
        %v3437 = vpop.permute.xlu0 %3436
        %3438 = vrot.lane.b32.xlu0 %v3406, 12
        %v3439 = vpop.permute.xlu0 %3438
        %3440 = vrot.lane.b32.xlu0 %v3408, 12
        %v3441 = vpop.permute.xlu0 %3440
        %3442 = vrot.lane.b32.xlu0 %v3403, 12
        %v3443 = vpop.permute.xlu0 %3442
        %3444 = vrot.lane.b32.xlu0 %v3405, 12
        %v3445 = vpop.permute.xlu0 %3444
        %3446 = vrot.lane.b32.xlu0 %v3407, 12
        %v3447 = vpop.permute.xlu0 %3446
        %3448 = vrot.lane.b32.xlu0 %v3409, 12
        %v3449 = vpop.permute.xlu0 %3448
        %v3450 = vsel %vm3032, %v3435, %v3443
        %v3451 = vsel %vm3032, %v3437, %v3445
        %v3452 = vsel %vm3032, %v3439, %v3447
        %v3453 = vsel %vm3032, %v3441, %v3449
        %v3454 = vsel %vm3032, %v3443, %v3435
        %v3455 = vsel %vm3032, %v3445, %v3437
        %v3456 = vsel %vm3032, %v3447, %v3439
        %v3457 = vsel %vm3032, %v3449, %v3441
        %3458 = vrot.lane.b32.xlu0 %v3402, 11
        %v3459 = vpop.permute.xlu0 %3458
        %3460 = vrot.lane.b32.xlu0 %v3404, 11
        %v3461 = vpop.permute.xlu0 %3460
        %3462 = vrot.lane.b32.xlu0 %v3406, 11
        %v3463 = vpop.permute.xlu0 %3462
        %3464 = vrot.lane.b32.xlu0 %v3408, 11
        %v3465 = vpop.permute.xlu0 %3464
        %3466 = vrot.lane.b32.xlu0 %v3403, 11
        %v3467 = vpop.permute.xlu0 %3466
        %3468 = vrot.lane.b32.xlu0 %v3405, 11
        %v3469 = vpop.permute.xlu0 %3468
        %3470 = vrot.lane.b32.xlu0 %v3407, 11
        %v3471 = vpop.permute.xlu0 %3470
        %3472 = vrot.lane.b32.xlu0 %v3409, 11
        %v3473 = vpop.permute.xlu0 %3472
        %v3474 = vsel %vm3039, %v3459, %v3467
        %v3475 = vsel %vm3039, %v3461, %v3469
        %v3476 = vsel %vm3039, %v3463, %v3471
        %v3477 = vsel %vm3039, %v3465, %v3473
        %v3478 = vsel %vm3039, %v3467, %v3459
        %v3479 = vsel %vm3039, %v3469, %v3461
        %v3480 = vsel %vm3039, %v3471, %v3463
        %v3481 = vsel %vm3039, %v3473, %v3465
        %3482 = vrot.lane.b32.xlu0 %v3402, 1
        %v3483 = vpop.permute.xlu0 %3482
        %3484 = vrot.lane.b32.xlu0 %v3404, 1
        %v3485 = vpop.permute.xlu0 %3484
        %3486 = vrot.lane.b32.xlu0 %v3406, 1
        %v3487 = vpop.permute.xlu0 %3486
        %3488 = vrot.lane.b32.xlu0 %v3408, 1
        %v3489 = vpop.permute.xlu0 %3488
        %3490 = vrot.lane.b32.xlu0 %v3403, 1
        %v3491 = vpop.permute.xlu0 %3490
        %3492 = vrot.lane.b32.xlu0 %v3405, 1
        %v3493 = vpop.permute.xlu0 %3492
        %3494 = vrot.lane.b32.xlu0 %v3407, 1
        %v3495 = vpop.permute.xlu0 %3494
        %3496 = vrot.lane.b32.xlu0 %v3409, 1
        %v3497 = vpop.permute.xlu0 %3496
        %v3498 = vsel %vm743, %v3483, %v3491
        %v3499 = vsel %vm743, %v3485, %v3493
        %v3500 = vsel %vm743, %v3487, %v3495
        %v3501 = vsel %vm743, %v3489, %v3497
        %v3502 = vsel %vm743, %v3491, %v3483
        %v3503 = vsel %vm743, %v3493, %v3485
        %v3504 = vsel %vm743, %v3495, %v3487
        %v3505 = vsel %vm743, %v3497, %v3489
        %3506 = vrot.lane.b32.xlu0 %v3402, 127
        %v3507 = vpop.permute.xlu0 %3506
        %3508 = vrot.lane.b32.xlu0 %v3404, 127
        %v3509 = vpop.permute.xlu0 %3508
        %3510 = vrot.lane.b32.xlu0 %v3406, 127
        %v3511 = vpop.permute.xlu0 %3510
        %3512 = vrot.lane.b32.xlu0 %v3408, 127
        %v3513 = vpop.permute.xlu0 %3512
        %3514 = vrot.lane.b32.xlu0 %v3403, 127
        %v3515 = vpop.permute.xlu0 %3514
        %3516 = vrot.lane.b32.xlu0 %v3405, 127
        %v3517 = vpop.permute.xlu0 %3516
        %3518 = vrot.lane.b32.xlu0 %v3407, 127
        %v3519 = vpop.permute.xlu0 %3518
        %3520 = vrot.lane.b32.xlu0 %v3409, 127
        %v3521 = vpop.permute.xlu0 %3520
        %v3522 = vsel %vm753, %v3507, %v3515
        %v3523 = vsel %vm753, %v3509, %v3517
        %v3524 = vsel %vm753, %v3511, %v3519
        %v3525 = vsel %vm753, %v3513, %v3521
        %v3526 = vsel %vm753, %v3515, %v3507
        %v3527 = vsel %vm753, %v3517, %v3509
        %v3528 = vsel %vm753, %v3519, %v3511
        %v3529 = vsel %vm753, %v3521, %v3513
        %3530 = vrot.lane.b32.xlu0 %v3402, 117
        %v3531 = vpop.permute.xlu0 %3530
        %3532 = vrot.lane.b32.xlu0 %v3404, 117
        %v3533 = vpop.permute.xlu0 %3532
        %3534 = vrot.lane.b32.xlu0 %v3406, 117
        %v3535 = vpop.permute.xlu0 %3534
        %3536 = vrot.lane.b32.xlu0 %v3408, 117
        %v3537 = vpop.permute.xlu0 %3536
        %3538 = vrot.lane.b32.xlu0 %v3403, 117
        %v3539 = vpop.permute.xlu0 %3538
        %3540 = vrot.lane.b32.xlu0 %v3405, 117
        %v3541 = vpop.permute.xlu0 %3540
        %3542 = vrot.lane.b32.xlu0 %v3407, 117
        %v3543 = vpop.permute.xlu0 %3542
        %3544 = vrot.lane.b32.xlu0 %v3409, 117
        %v3545 = vpop.permute.xlu0 %3544
        %v3546 = vsel %vm3058, %v3531, %v3539
        %v3547 = vsel %vm3058, %v3533, %v3541
        %v3548 = vsel %vm3058, %v3535, %v3543
        %v3549 = vsel %vm3058, %v3537, %v3545
        %v3550 = vsel %vm3058, %v3539, %v3531
        %v3551 = vsel %vm3058, %v3541, %v3533
        %v3552 = vsel %vm3058, %v3543, %v3535
        %v3553 = vsel %vm3058, %v3545, %v3537
        %3554 = vrot.lane.b32.xlu0 %v3402, 116
        %v3555 = vpop.permute.xlu0 %3554
        %3556 = vrot.lane.b32.xlu0 %v3404, 116
        %v3557 = vpop.permute.xlu0 %3556
        %3558 = vrot.lane.b32.xlu0 %v3406, 116
        %v3559 = vpop.permute.xlu0 %3558
        %3560 = vrot.lane.b32.xlu0 %v3408, 116
        %v3561 = vpop.permute.xlu0 %3560
        %3562 = vrot.lane.b32.xlu0 %v3403, 116
        %v3563 = vpop.permute.xlu0 %3562
        %3564 = vrot.lane.b32.xlu0 %v3405, 116
        %v3565 = vpop.permute.xlu0 %3564
        %3566 = vrot.lane.b32.xlu0 %v3407, 116
        %v3567 = vpop.permute.xlu0 %3566
        %3568 = vrot.lane.b32.xlu0 %v3409, 116
        %v3569 = vpop.permute.xlu0 %3568
        %v3570 = vsel %vm3065, %v3555, %v3563
        %v3571 = vsel %vm3065, %v3557, %v3565
        %v3572 = vsel %vm3065, %v3559, %v3567
        %v3573 = vsel %vm3065, %v3561, %v3569
        %v3574 = vsel %vm3065, %v3563, %v3555
        %v3575 = vsel %vm3065, %v3565, %v3557
        %v3576 = vsel %vm3065, %v3567, %v3559
        %v3577 = vsel %vm3065, %v3569, %v3561
        %3578 = vrot.lane.b32.xlu0 %v3402, 115
        %v3579 = vpop.permute.xlu0 %3578
        %3580 = vrot.lane.b32.xlu0 %v3404, 115
        %v3581 = vpop.permute.xlu0 %3580
        %3582 = vrot.lane.b32.xlu0 %v3406, 115
        %v3583 = vpop.permute.xlu0 %3582
        %3584 = vrot.lane.b32.xlu0 %v3408, 115
        %v3585 = vpop.permute.xlu0 %3584
        %3586 = vrot.lane.b32.xlu0 %v3403, 115
        %v3587 = vpop.permute.xlu0 %3586
        %3588 = vrot.lane.b32.xlu0 %v3405, 115
        %v3589 = vpop.permute.xlu0 %3588
        %3590 = vrot.lane.b32.xlu0 %v3407, 115
        %v3591 = vpop.permute.xlu0 %3590
        %3592 = vrot.lane.b32.xlu0 %v3409, 115
        %v3593 = vpop.permute.xlu0 %3592
        %v3594 = vsel %vm3072, %v3579, %v3587
        %v3595 = vsel %vm3072, %v3581, %v3589
        %v3596 = vsel %vm3072, %v3583, %v3591
        %v3597 = vsel %vm3072, %v3585, %v3593
        %v3598 = vsel %vm3072, %v3587, %v3579
        %v3599 = vsel %vm3072, %v3589, %v3581
        %v3600 = vsel %vm3072, %v3591, %v3583
        %v3601 = vsel %vm3072, %v3593, %v3585
        %v3602 = vpack.c.bf16 %v3431, %v3430
        %v3603 = vpack.c.bf16 %v3427, %v3426
        %v3604 = vpack.c.bf16 %v3433, %v3432
        %v3605 = vpack.c.bf16 %v3429, %v3428
        %v3606 = vpack.c.bf16 %v3455, %v3454
        %v3607 = vpack.c.bf16 %v3451, %v3450
        %v3608 = vpack.c.bf16 %v3457, %v3456
        %v3609 = vpack.c.bf16 %v3453, %v3452
        %v3610 = vpack.c.bf16 %v3479, %v3478
        %v3611 = vpack.c.bf16 %v3475, %v3474
        %v3612 = vpack.c.bf16 %v3481, %v3480
        %v3613 = vpack.c.bf16 %v3477, %v3476
        %v3614 = vpack.c.bf16 %v3503, %v3502
        %v3615 = vpack.c.bf16 %v3499, %v3498
        %v3616 = vpack.c.bf16 %v3505, %v3504
        %v3617 = vpack.c.bf16 %v3501, %v3500
        %v3618 = vpack.c.bf16 %v3404, %v3402
        %v3619 = vpack.c.bf16 %v3405, %v3403
        %v3620 = vpack.c.bf16 %v3408, %v3406
        %v3621 = vpack.c.bf16 %v3409, %v3407
        %v3622 = vpack.c.bf16 %v3523, %v3522
        %v3623 = vpack.c.bf16 %v3527, %v3526
        %v3624 = vpack.c.bf16 %v3525, %v3524
        %v3625 = vpack.c.bf16 %v3529, %v3528
        %v3626 = vpack.c.bf16 %v3547, %v3546
        %v3627 = vpack.c.bf16 %v3551, %v3550
        %v3628 = vpack.c.bf16 %v3549, %v3548
        %v3629 = vpack.c.bf16 %v3553, %v3552
        %v3630 = vpack.c.bf16 %v3571, %v3570
        %v3631 = vpack.c.bf16 %v3575, %v3574
        %v3632 = vpack.c.bf16 %v3573, %v3572
        %v3633 = vpack.c.bf16 %v3577, %v3576
        %v3634 = vpack.c.bf16 %v3595, %v3594
        %v3635 = vpack.c.bf16 %v3599, %v3598
        %v3636 = vpack.c.bf16 %v3597, %v3596
        %v3637 = vpack.c.bf16 %v3601, %v3600
        %v3638 = vld [vmem:[#allocation10] sm:$0xff]
        %v3639 = vld [vmem:[#allocation10 + $0x8] sm:$0xf]
        %v3640 = vld [vmem:[%s12] sm:$0xff]
        %3642 = vset.pattern.permute.xlu0 0
        %3643 = vperm.xlu0 %3642, %v3640
        %v3644 = vpop.permute.xlu0 %3643
        %v3648 = vunpack.c.l.b16 %v3638
        %v3649 = vunpack.c.h.b16 %v3638
        %v3650 = vunpack.c.l.b16 %v3639
        %v3651 = vpack.c.b16 %v3648, %v3648
        %v3652 = vpack.c.b16 %v3649, %v3649
        %v3653 = vpack.c.b16 %v3650, %v3650
        %v3657 = vsel %vm2265, %v3653, 0
        %3659 = vmatprep.subr.bf16.mxu0 %v3617
        %3660 = vmatpush1.bf16.msra.mxu0 %v3616
        %3661 = vmatprep.subr.bf16.mxu0 %v3615
        %3662 = vmatpush1.bf16.msra.mxu0 %v3614
        %3663 = vmatprep.subr.bf16.mxu0 %v3613
        %3664 = vmatpush1.bf16.msra.mxu0 %v3612
        %3665 = vmatprep.subr.bf16.mxu0 %v3611
        %3666 = vmatpush1.bf16.msra.mxu0 %v3610
        %3667 = vmatprep.subr.bf16.mxu0 %v3609
        %3668 = vmatpush1.bf16.msra.mxu0 %v3608
        %3669 = vmatprep.subr.bf16.mxu0 %v3607
        %3670 = vmatpush1.bf16.msra.mxu0 %v3606
        %3671 = vmatprep.subr.bf16.mxu0 %v3605
        %3672 = vmatpush1.bf16.msra.mxu0 %v3604
        %3673 = vmatprep.subr.bf16.mxu0 %v3603
        %3674 = vmatpush1.bf16.msra.mxu0 %v3602
        %3675 = vmatprep.subr.bf16.mxu0 %v3633
        %3676 = vmatpush2.bf16.msra.mxu0 %v3632
        %3677 = vmatprep.subr.bf16.mxu0 %v3631
        %3678 = vmatpush2.bf16.msra.mxu0 %v3630
        %3679 = vmatprep.subr.bf16.mxu0 %v3629
        %3680 = vmatpush2.bf16.msra.mxu0 %v3628
        %3681 = vmatprep.subr.bf16.mxu0 %v3627
        %3682 = vmatpush2.bf16.msra.mxu0 %v3626
        %3683 = vmatprep.subr.bf16.mxu0 %v3625
        %3684 = vmatpush2.bf16.msra.mxu0 %v3624
        %3685 = vmatprep.subr.bf16.mxu0 %v3623
        %3686 = vmatpush2.bf16.msra.mxu0 %v3622
        %3687 = vmatprep.subr.bf16.mxu0 %v3621
        %3688 = vmatpush2.bf16.msra.mxu0 %v3620
        %3689 = vmatprep.subr.bf16.mxu0 %v3619
        %3690 = vmatpush2.bf16.msra.mxu0 %v3618
        %3691 = vmatprep.mubr.bf16.mxu0 %v3652
        %3692 = vmatmul.mubr.bf16.gmra.mxu0 %v3651
        %v3693 = vpop.f32.mrf.mxu0
        %v3694 = vadd.f32 %v3644, %v3693
        %v3695 = vpop.f32.mrf.mxu0
        %v3696 = vadd.f32 %v3644, %v3695
        %v3697 = vpop.f32.mrf.mxu0
        %v3698 = vpop.f32.mrf.mxu0
        %3699 = vdwg.mxu0
        %3700 = vmatprep.subr.bf16.mxu0 0
        %3701 = vmatpush1.bf16.msra.mxu0 0
        %3702 = vmatprep.subr.bf16.mxu0 0
        %3703 = vmatpush1.bf16.msra.mxu0 0
        %3704 = vmatprep.subr.bf16.mxu0 0
        %3705 = vmatpush1.bf16.msra.mxu0 0
        %3706 = vmatprep.subr.bf16.mxu0 0
        %3707 = vmatpush1.bf16.msra.mxu0 0
        %3708 = vmatprep.subr.bf16.mxu0 0
        %3709 = vmatpush1.bf16.msra.mxu0 0
        %3710 = vmatprep.subr.bf16.mxu0 0
        %3711 = vmatpush1.bf16.msra.mxu0 0
        %3712 = vmatprep.subr.bf16.mxu0 %v3637
        %3713 = vmatpush1.bf16.msra.mxu0 %v3636
        %3714 = vmatprep.subr.bf16.mxu0 %v3635
        %3715 = vmatpush1.bf16.msra.mxu0 %v3634
        %3716 = vmatprep.subr.bf16.mxu0 0
        %3717 = vmatpush2.bf16.msra.mxu0 0
        %3718 = vmatprep.subr.bf16.mxu0 0
        %3719 = vmatpush2.bf16.msra.mxu0 0
        %3720 = vmatprep.subr.bf16.mxu0 0
        %3721 = vmatpush2.bf16.msra.mxu0 0
        %3722 = vmatprep.subr.bf16.mxu0 0
        %3723 = vmatpush2.bf16.msra.mxu0 0
        %3724 = vmatprep.subr.bf16.mxu0 0
        %3725 = vmatpush2.bf16.msra.mxu0 0
        %3726 = vmatprep.subr.bf16.mxu0 0
        %3727 = vmatpush2.bf16.msra.mxu0 0
        %3728 = vmatprep.subr.bf16.mxu0 0
        %3729 = vmatpush2.bf16.msra.mxu0 0
        %3730 = vmatprep.subr.bf16.mxu0 0
        %3731 = vmatpush2.bf16.msra.mxu0 0
        %3732 = vmatprep.mubr.bf16.mxu0 0
        %3733 = vmatmul.mubr.bf16.gmra.mxu0 %v3657
        %v3734 = vpop.f32.mrf.mxu0
        %v3735 = vadd.f32 %v3694, %v3734
        %v3736 = vpop.f32.mrf.mxu0
        %v3737 = vadd.f32 %v3696, %v3736
        %v3738 = vpop.f32.mrf.mxu0
        %v3739 = vpop.f32.mrf.mxu0
        %3740 = vdwg.mxu0
        %v3741 = vsub.f32 0.0, %v3735
        %v3742 = vsub.f32 0.0, %v3737
        %v3743 = vmul.f32 %v3741, 1.442695
        %v3744 = vpow.pop %v3743
        %v3745 = vmul.f32 %v3742, 1.442695
        %v3746 = vpow.pop %v3745
        %v3747 = vadd.f32 %v3744, 1.0
        %v3748 = vadd.f32 %v3746, 1.0
        %v3749 = vrcp.pop %v3747
        %v3750 = vmul.f32 1.0, %v3749
        %v3751 = vrcp.pop %v3748
        %v3752 = vmul.f32 1.0, %v3751
        %3753 = vst [vmem:[%s700] sm:$0xff] %v3750
        %3754 = vst [vmem:[%s700 + $0x8] sm:$0xff] %v3752
        %p3755 = scmp.lt.s32.totalorder %s34, 1
        %s3756 = scalar_select %p3755, %s34, 1
        %s3757 = smul.addr %s3756, 2
        %s3758 = smul.addr %s3757, 8
        %s3759 = scalar_lea.vmem %s17, %s3758
        // Predicated region
        $region133: #{forward.1} parent=87 // pred_check
          %p3760 = pneg %p414
        $region134: #{forward.1} parent=87 // pred_check_branch
          %3762 = sbr.rel (%p3760) target = $region136
        $region135: #{forward.1} parent=87 // pred_region
          _
        $region136: #{forward.1} parent=87 // pred_fallthru
          _
      $region88: #{forward.1} parent=5 // pred_fallthru
        _
      %p3763 = scmp.le.s32.totalorder 2, %s29
      // Predicated region
      $region137: #{forward.1} parent=5 // pred_check
        %p3764 = pneg %p3763
      $region138: #{forward.1} parent=5 // pred_check_branch
        %3766 = sbr.rel (%p3764) target = $region140
      $region139: #{forward.1} parent=5 // pred_region
        %s3767 = ssub.s32 %s29, 2
        // Predicated region
        $region141: #{forward.1} parent=139 // pred_check
          %p3768 = pneg %p420
        $region142: #{forward.1} parent=139 // pred_check_branch
          %3770 = sbr.rel (%p3768) target = $region144
        $region143: #{forward.1} parent=139 // pred_region
          %p3771 = scmp.lt.s32.totalorder %s35, 1
          %s3772 = scalar_select %p3771, %s35, 1
          %s3773 = smul.addr %s3772, 2
          %s3774 = smul.addr %s3773, 8
          %s3775 = scalar_lea.vmem %s17, %s3774
        $region144: #{forward.1} parent=139 // pred_fallthru
          _
      $region140: #{forward.1} parent=5 // pred_fallthru
        _
    $region6: #{forward.1} parent=1 // loop_footer
      %s33 = sadd.s32 1, %s29
    $region7: #{forward.1} parent=1 // loop_footer_branch
      %28 = sbr.rel target = $region3
    $region8: #{forward.1} parent=1 // loop_exit
      _
    %3776 = vsyncpa [#allocation3], 1
    %s3777 = scalar_lea.sflag [#allocation3], 1
    %3778 = vsyncpa %s3777, 1
    %3779 = vsyncpa [#allocation5], 1
    %3780 = vsyncpa [#allocation8], 1
    %3781 = vsyncpa [#allocation11], 1
    %3782 = vsyncpa [#allocation14], 1
    %3783 = vsyncpa [#allocation17], 1

</llo_original>
